<compile_context>
chip_gen: v6e
topology: v6e:2x2x1
jax: 0.10.0
libtpu: 0.0.40
codegen_flags: <defaults>
</compile_context>

<pallas_src>
import jax
import jax.numpy as jnp
from jax.experimental import pallas as pl
from jax.experimental.pallas import tpu as pltpu


# --------------------------------------------------------------------------
# Pallas kernels
# --------------------------------------------------------------------------
def _box_mlp_kernel(x_ref, w1, b1, w2, b2, w3, b3, w4, b4, box_ref):
    """box_proposals_layers: 4x (1x1 Conv1d [+ ReLU]) as row matmuls.

    x_ref: (R, 1024) bf16 rows (R = batches*positions of this grid block, on
    sublanes).  bf16 MXU matmuls with f32 accumulation; ReLU stays in f32 and the
    bf16 cast happens right before each dot (v5e has no bf16 VPU).
    """
    h = jnp.dot(x_ref[...], w1[...], preferred_element_type=jnp.float32) + b1[...]
    h = jnp.maximum(h, 0.0).astype(jnp.bfloat16)
    h = jnp.dot(h, w2[...], preferred_element_type=jnp.float32) + b2[...]
    h = jnp.maximum(h, 0.0).astype(jnp.bfloat16)
    h = jnp.dot(h, w3[...], preferred_element_type=jnp.float32) + b3[...]
    h = jnp.maximum(h, 0.0).astype(jnp.bfloat16)
    box_ref[...] = jnp.dot(h, w4[...], preferred_element_type=jnp.float32) + b4[...]


def _inst_seg_kernel(x_ref, w1t_ref, beff_ref, w2t_ref, b2_ref, o_ref):
    """inst_seg_pred_layers + sigmoid on NCL features (lane-dense output).

    x_ref: (128, tile) bf16 local features (channels on sublanes, points on lanes).
    w1t: (135, 128) bf16; beff: (135, 1) f32 per-batch bias with the pred-box rows
    of conv1 (and folded BN) already applied; w2t: (1, 135) bf16; b2: (1, 1) f32.
    """
    h = jnp.dot(w1t_ref[...], x_ref[...],
                preferred_element_type=jnp.float32) + beff_ref[...]
    h = jnp.maximum(h, 0.0).astype(jnp.bfloat16)   # BN folded into w1t/beff (inference)
    logits = jnp.dot(w2t_ref[...], h, preferred_element_type=jnp.float32) + b2_ref[...]
    o_ref[...] = jax.nn.sigmoid(logits)            # (1, tile) lane-dense store


# --------------------------------------------------------------------------
# pallas_call wrappers
# --------------------------------------------------------------------------
def _const_spec(a):
    """Full-array BlockSpec whose block index is constant across the grid."""
    zeros = (0,) * a.ndim
    return pl.BlockSpec(a.shape, lambda *args, _z=zeros: _z)


def box_head(x_nlc, box_params, *, split=2):
    """box_proposals_layers over all batches in ONE pallas_call.

    x_nlc: (B, S, 1024) bf16.  Returns box logits (B, S, 6) f32.
    Batch is folded into the matmul M dimension; a `split`-way "parallel" grid
    axis (only when B divides evenly) keeps both v7x TensorCores busy.
    """
    B, S, C = x_nlc.shape
    G = split if (B >= split and B % split == 0) else 1
    R = (B // G) * S
    (w1, b1), (w2, b2), (w3, b3), (w4, b4) = box_params
    xg = x_nlc.reshape(G, R, C)
    args = (xg, w1, b1, w2, b2, w3, b3, w4, b4)
    in_specs = [pl.BlockSpec((None, R, C), lambda g: (g, 0, 0))]
    in_specs += [_const_spec(a) for a in args[1:]]

    box = pl.pallas_call(
        _box_mlp_kernel,
        grid=(G,),
        in_specs=in_specs,
        out_specs=pl.BlockSpec((None, R, 6), lambda g: (g, 0, 0)),
        out_shape=jax.ShapeDtypeStruct((G, R, 6), jnp.float32),
        compiler_params=pltpu.CompilerParams(dimension_semantics=("parallel",)),
    )(*args)
    return box.reshape(B, S, 6)


def inst_seg_head(local_ncl, w1t, beff_col, w2t, b2, n_tile=2048):
    """inst_seg_pred_layers + sigmoid directly on NCL local features.

    local_ncl: (B, 128, N) bf16; beff_col: (B, 135, 1) f32 per-batch folded bias.
    Returns (B, N) f32 in [0, 1].  Points are tiled lane-dense at up to n_tile per
    step; ragged tails use Pallas partial edge blocks (no jnp.pad HBM copy).
    """
    B, C, N = local_ncl.shape
    tile = N if N <= n_tile else n_tile            # n_tile is a multiple of 128
    n_blocks = (N + tile - 1) // tile

    out = pl.pallas_call(
        _inst_seg_kernel,
        grid=(B, n_blocks),
        in_specs=[
            pl.BlockSpec((None, C, tile), lambda b, i: (b, 0, i)),
            _const_spec(w1t),
            pl.BlockSpec((None, 135, 1), lambda b, i: (b, 0, 0)),
            _const_spec(w2t),
            _const_spec(b2),
        ],
        out_specs=pl.BlockSpec((None, 1, tile), lambda b, i: (b, 0, i)),
        out_shape=jax.ShapeDtypeStruct((B, 1, N), jnp.float32),
        compiler_params=pltpu.CompilerParams(
            dimension_semantics=("parallel", "parallel")),
    )(local_ncl, w1t, beff_col, w2t, b2)
    return out.reshape(B, N)


# --------------------------------------------------------------------------
# Deterministic parameter construction
# --------------------------------------------------------------------------
def _dense_init(key, cin, cout):
    kw, kb = jax.random.split(key)
    s = float(cin) ** -0.5
    w = jax.random.uniform(kw, (cin, cout), jnp.float32, minval=-s, maxval=s)
    b = jax.random.uniform(kb, (1, cout), jnp.float32, minval=-s, maxval=s)
    return w, b


def init_params(key, *, s_positions=16):
    ks = jax.random.split(key, 10)
    params = {}

    # box_proposals_layers: weights stored in bf16 (MXU input dtype), biases f32.
    box = []
    for i, (ci, co) in enumerate(((1024, 512), (512, 256), (256, 128), (128, 6))):
        w, b = _dense_init(ks[i], ci, co)
        box.append((w.astype(jnp.bfloat16), b))
    params["box"] = tuple(box)

    # bbox_pred_layers Linear(6*16, 7): torch flattens box_proposals (B, 6, 16)
    # channel-major (k = c*16 + s).  Pre-permute the weight rows to the kernel's
    # row-major (s, c) flatten (k' = s*6 + c) so pred = relu(box).reshape(B,96) @ W.
    bbox_w, bbox_b = _dense_init(ks[4], 6 * s_positions, 7)
    params["bbox_w_perm"] = (
        bbox_w.reshape(6, s_positions, 7).transpose(1, 0, 2).reshape(6 * s_positions, 7))
    params["bbox_b"] = bbox_b

    # inst_seg layer 1: Conv1d(135->135) + BatchNorm1d(135) + ReLU.
    w1, b1 = _dense_init(ks[5], 135, 135)
    bn_gamma = jnp.ones((135,), jnp.float32)
    bn_beta = jnp.zeros((135,), jnp.float32)
    bn_mean = jnp.zeros((135,), jnp.float32)
    bn_var = jnp.ones((135,), jnp.float32)
    # TODO(synk): BatchNorm is applied in inference mode (running stats) and folded
    # into the conv weight/bias; train-mode batch statistics are stateful.
    scale = bn_gamma / jnp.sqrt(bn_var + 1e-5)
    w1f = w1 * scale[None, :]
    b1f = (b1 - bn_mean[None, :]) * scale[None, :] + bn_beta[None, :]
    # Split into local-feature rows (128) and pred-box rows (7, concat order
    # [local(128), pred_box(7)] as in torch.cat); the box part is folded into a
    # per-batch bias computed in plain JAX.
    params["inst_w1t_local"] = w1f[:128, :].T.astype(jnp.bfloat16)   # (135, 128)
    params["inst_w1_box"] = w1f[128:, :]                             # (7, 135) f32
    params["inst_b1"] = b1f                                          # (1, 135) f32

    # inst_seg layer 2: Conv1d(135->1), no activation (sigmoid applied in forward).
    w2, b2 = _dense_init(ks[6], 135, 1)
    params["inst_w2t"] = w2.T.astype(jnp.bfloat16)                   # (1, 135)
    params["inst_b2"] = b2                                           # (1, 1) f32

    # Stub backbone / language module projection weights (plain-JAX glue).
    params["stub_wl"] = jax.random.normal(ks[7], (8, 32), jnp.float32) * 0.1
    params["stub_wg"] = jax.random.normal(ks[8], (6 + 32, 1024), jnp.float32) * 0.05
    params["stub_wloc"] = jax.random.normal(ks[9], (6 + 32, 128), jnp.float32) * 0.1
    return params


# --------------------------------------------------------------------------
# Stub backbone (plain JAX glue)
# --------------------------------------------------------------------------
def stub_backbone(pc, expr, params):
    # TODO(synk): LanguageModule and PointNet2Backbone are external modules not
    # defined in the reference source; stubbed with deterministic projections that
    # produce the feature shapes the head network needs, already in kernel-friendly
    # layouts/dtypes: global features (B, 16, 1024) NLC bf16 and local features
    # (B, 128, N) NCL bf16 (no separate transpose ops, casts fuse into the tanh).
    B, N, _ = pc.shape
    l_feat = jnp.tanh(expr.astype(jnp.float32) @ params["stub_wl"])          # (B, 32)
    pc_l = jnp.concatenate(
        [pc, jnp.broadcast_to(l_feat[:, None, :], (B, N, 32))], axis=2)      # (B, N, 38)
    per_point = jnp.tanh(pc_l @ params["stub_wg"])                           # (B, N, 1024)
    global_nlc = per_point.reshape(B, 16, N // 16, 1024).max(axis=2)         # (B, 16, 1024)
    global_nlc = global_nlc.astype(jnp.bfloat16)
    local_ncl = jnp.tanh(
        jnp.einsum('bnd,dc->bcn', pc_l, params["stub_wloc"])).astype(jnp.bfloat16)
    return global_nlc, local_ncl                                             # NLC, NCL


# --------------------------------------------------------------------------
# Full forward (mirrors ReferModel.forward)
# --------------------------------------------------------------------------
def refer_model_forward(pc, expr, params):
    B = pc.shape[0]
    global_nlc, local_ncl = stub_backbone(pc, expr, params)                  # bf16
    S = global_nlc.shape[1]                                                  # 16

    # box_proposals_layers: one fused Pallas call, batch folded into matmul M.
    box = box_head(global_nlc, params["box"])                                # (B, S, 6) f32

    # bbox_pred_layers = ReLU + Linear(6*S, 7); the torch channel-major flatten is
    # pre-permuted into the weight, so this is one tiny (B,96)@(96,7) in plain JAX.
    hr = jnp.maximum(box, 0.0).reshape(B, S * 6)
    pred_box7 = hr @ params["bbox_w_perm"] + params["bbox_b"]                # (B, 7)

    # Fold the pred-box rows of the inst-seg conv1 (+BN bias) into a per-batch bias,
    # so the (B, N, 135) concat/broadcast tensor is never materialized.
    b_eff = pred_box7 @ params["inst_w1_box"] + params["inst_b1"]            # (B, 135)

    # inst_seg_pred_layers + sigmoid, directly on bf16 NCL local features.
    instance_points = inst_seg_head(
        local_ncl, params["inst_w1t_local"], b_eff[:, :, None],
        params["inst_w2t"], params["inst_b2"], n_tile=2048)                  # (B, N)

    pred_confidence = jax.nn.sigmoid(pred_box7[:, -1:])                      # (B, 1)
    pred_box = pred_box7[:, :-1]                                             # (B, 6)
    return pred_confidence, pred_box, instance_points


# --------------------------------------------------------------------------
if __name__ == "__main__":
    key = jax.random.PRNGKey(0)
    k_pc, k_expr, k_param = jax.random.split(key, 3)

    B, N_POINTS, PC_DIM, SEQ = 2, 512, 6, 8
    pc = jax.random.normal(k_pc, (B, N_POINTS, PC_DIM), jnp.float32)
    expr = jax.random.randint(k_expr, (B, SEQ), 0, 100, jnp.int32)

    params = init_params(k_param)

    fwd = jax.jit(refer_model_forward)
    pred_confidence, pred_box, instance_points = fwd(pc, expr, params)
    jax.block_until_ready((pred_confidence, pred_box, instance_points))

    assert pred_confidence.shape == (B, 1)
    assert pred_box.shape == (B, 6)
    assert instance_points.shape == (B, N_POINTS)
    assert bool(jnp.all(jnp.isfinite(pred_box)))
    print("KERNEL_OK")
</pallas_src>

<mosaic_0001>
module attributes {stable_mosaic.version = 11 : i64} {
  func.func @_box_mlp_kernel(%arg0: i32, %arg1: memref<1x16x1024xbf16, #tpu.memory_space<vmem>>, %arg2: memref<1024x512xbf16, #tpu.memory_space<vmem>>, %arg3: memref<1x512xf32, #tpu.memory_space<vmem>>, %arg4: memref<512x256xbf16, #tpu.memory_space<vmem>>, %arg5: memref<1x256xf32, #tpu.memory_space<vmem>>, %arg6: memref<256x128xbf16, #tpu.memory_space<vmem>>, %arg7: memref<1x128xf32, #tpu.memory_space<vmem>>, %arg8: memref<128x6xbf16, #tpu.memory_space<vmem>>, %arg9: memref<1x6xf32, #tpu.memory_space<vmem>>, %arg10: memref<1x16x6xf32, #tpu.memory_space<vmem>>) attributes {dimension_semantics = [#tpu.dimension_semantics<parallel>], iteration_bounds = array<i64: 2>, scalar_prefetch = 0 : i64, scratch_operands = 0 : i64, tpu.core_type = #tpu.core_type<tc>, window_params = [{transform_indices = @transform_0, window_bounds = array<i64: 1, 16, 1024>}, {pipeline_mode = #tpu.pipeline_mode<synchronous>, transform_indices = @transform_1, window_bounds = array<i64: 1024, 512>}, {pipeline_mode = #tpu.pipeline_mode<synchronous>, transform_indices = @transform_2, window_bounds = array<i64: 1, 512>}, {pipeline_mode = #tpu.pipeline_mode<synchronous>, transform_indices = @transform_3, window_bounds = array<i64: 512, 256>}, {pipeline_mode = #tpu.pipeline_mode<synchronous>, transform_indices = @transform_4, window_bounds = array<i64: 1, 256>}, {pipeline_mode = #tpu.pipeline_mode<synchronous>, transform_indices = @transform_5, window_bounds = array<i64: 256, 128>}, {pipeline_mode = #tpu.pipeline_mode<synchronous>, transform_indices = @transform_6, window_bounds = array<i64: 1, 128>}, {pipeline_mode = #tpu.pipeline_mode<synchronous>, transform_indices = @transform_7, window_bounds = array<i64: 128, 6>}, {pipeline_mode = #tpu.pipeline_mode<synchronous>, transform_indices = @transform_8, window_bounds = array<i64: 1, 6>}, {transform_indices = @transform_9, window_bounds = array<i64: 1, 16, 6>}]} {
    %c0 = arith.constant 0 : index
    %c0_0 = arith.constant 0 : index
    %c0_1 = arith.constant 0 : index
    %0 = vector.load %arg1[%c0, %c0_0, %c0_1] : memref<1x16x1024xbf16, #tpu.memory_space<vmem>>, vector<1x16x1024xbf16>
    %1 = vector.shape_cast %0 : vector<1x16x1024xbf16> to vector<16x1024xbf16>
    %c0_2 = arith.constant 0 : index
    %c0_3 = arith.constant 0 : index
    %2 = vector.load %arg2[%c0_2, %c0_3] : memref<1024x512xbf16, #tpu.memory_space<vmem>>, vector<1024x512xbf16>
    %cst = arith.constant dense<0.000000e+00> : vector<16x512xf32>
    %3 = tpu.matmul %1, %2, %cst {dimension_numbers = #tpu.dot_dimension_numbers<[1], [0], [0], [1], [0, 0, 1, 1], [], []>} : vector<16x1024xbf16>, vector<1024x512xbf16>, vector<16x512xf32> -> vector<16x512xf32>
    %c0_4 = arith.constant 0 : index
    %c0_5 = arith.constant 0 : index
    %4 = vector.load %arg3[%c0_4, %c0_5] : memref<1x512xf32, #tpu.memory_space<vmem>>, vector<1x512xf32>
    %5 = vector.broadcast %4 : vector<1x512xf32> to vector<16x512xf32>
    %6 = arith.addf %3, %5 : vector<16x512xf32>
    %cst_6 = arith.constant 0.000000e+00 : f32
    %7 = vector.broadcast %cst_6 : f32 to vector<16x512xf32>
    %8 = arith.maximumf %6, %7 : vector<16x512xf32>
    %9 = arith.truncf %8 : vector<16x512xf32> to vector<16x512xbf16>
    %c0_7 = arith.constant 0 : index
    %c0_8 = arith.constant 0 : index
    %10 = vector.load %arg4[%c0_7, %c0_8] : memref<512x256xbf16, #tpu.memory_space<vmem>>, vector<512x256xbf16>
    %cst_9 = arith.constant dense<0.000000e+00> : vector<16x256xf32>
    %11 = tpu.matmul %9, %10, %cst_9 {dimension_numbers = #tpu.dot_dimension_numbers<[1], [0], [0], [1], [0, 0, 1, 1], [], []>} : vector<16x512xbf16>, vector<512x256xbf16>, vector<16x256xf32> -> vector<16x256xf32>
    %c0_10 = arith.constant 0 : index
    %c0_11 = arith.constant 0 : index
    %12 = vector.load %arg5[%c0_10, %c0_11] : memref<1x256xf32, #tpu.memory_space<vmem>>, vector<1x256xf32>
    %13 = vector.broadcast %12 : vector<1x256xf32> to vector<16x256xf32>
    %14 = arith.addf %11, %13 : vector<16x256xf32>
    %cst_12 = arith.constant 0.000000e+00 : f32
    %15 = vector.broadcast %cst_12 : f32 to vector<16x256xf32>
    %16 = arith.maximumf %14, %15 : vector<16x256xf32>
    %17 = arith.truncf %16 : vector<16x256xf32> to vector<16x256xbf16>
    %c0_13 = arith.constant 0 : index
    %c0_14 = arith.constant 0 : index
    %18 = vector.load %arg6[%c0_13, %c0_14] : memref<256x128xbf16, #tpu.memory_space<vmem>>, vector<256x128xbf16>
    %cst_15 = arith.constant dense<0.000000e+00> : vector<16x128xf32>
    %19 = tpu.matmul %17, %18, %cst_15 {dimension_numbers = #tpu.dot_dimension_numbers<[1], [0], [0], [1], [0, 0, 1, 1], [], []>} : vector<16x256xbf16>, vector<256x128xbf16>, vector<16x128xf32> -> vector<16x128xf32>
    %c0_16 = arith.constant 0 : index
    %c0_17 = arith.constant 0 : index
    %20 = vector.load %arg7[%c0_16, %c0_17] : memref<1x128xf32, #tpu.memory_space<vmem>>, vector<1x128xf32>
    %21 = vector.broadcast %20 : vector<1x128xf32> to vector<16x128xf32>
    %22 = arith.addf %19, %21 : vector<16x128xf32>
    %cst_18 = arith.constant 0.000000e+00 : f32
    %23 = vector.broadcast %cst_18 : f32 to vector<16x128xf32>
    %24 = arith.maximumf %22, %23 : vector<16x128xf32>
    %25 = arith.truncf %24 : vector<16x128xf32> to vector<16x128xbf16>
    %c0_19 = arith.constant 0 : index
    %c0_20 = arith.constant 0 : index
    %26 = vector.load %arg8[%c0_19, %c0_20] : memref<128x6xbf16, #tpu.memory_space<vmem>>, vector<128x6xbf16>
    %cst_21 = arith.constant dense<0.000000e+00> : vector<16x6xf32>
    %27 = tpu.matmul %25, %26, %cst_21 {dimension_numbers = #tpu.dot_dimension_numbers<[1], [0], [0], [1], [0, 0, 1, 1], [], []>} : vector<16x128xbf16>, vector<128x6xbf16>, vector<16x6xf32> -> vector<16x6xf32>
    %c0_22 = arith.constant 0 : index
    %c0_23 = arith.constant 0 : index
    %28 = vector.load %arg9[%c0_22, %c0_23] : memref<1x6xf32, #tpu.memory_space<vmem>>, vector<1x6xf32>
    %29 = vector.broadcast %28 : vector<1x6xf32> to vector<16x6xf32>
    %30 = arith.addf %27, %29 : vector<16x6xf32>
    %c0_24 = arith.constant 0 : index
    %c0_25 = arith.constant 0 : index
    %c0_26 = arith.constant 0 : index
    %31 = vector.load %arg10[%c0_24, %c0_25, %c0_26] : memref<1x16x6xf32, #tpu.memory_space<vmem>>, vector<1x16x6xf32>
    %32 = vector.shape_cast %31 : vector<1x16x6xf32> to vector<16x6xf32>
    %33 = vector.shape_cast %30 : vector<16x6xf32> to vector<1x16x6xf32>
    tpu.vector_store %arg10[%c0_24, %c0_25, %c0_26], %33 {strides = array<i32>} : memref<1x16x6xf32, #tpu.memory_space<vmem>>, vector<1x16x6xf32>,
    return
  }
  func.func @transform_0(%arg0: i32) -> (i32, i32, i32) {
    %c0_i32 = arith.constant 0 : i32
    %c0_i32_0 = arith.constant 0 : i32
    %c0_i32_1 = arith.constant 0 : i32
    return %arg0, %c0_i32, %c0_i32_0 : i32, i32, i32
  }
  func.func @transform_1(%arg0: i32) -> (i32, i32) {
    %c0_i32 = arith.constant 0 : i32
    %c0_i32_0 = arith.constant 0 : i32
    %c0_i32_1 = arith.constant 0 : i32
    return %c0_i32, %c0_i32_0 : i32, i32
  }
  func.func @transform_2(%arg0: i32) -> (i32, i32) {
    %c0_i32 = arith.constant 0 : i32
    %c0_i32_0 = arith.constant 0 : i32
    %c0_i32_1 = arith.constant 0 : i32
    return %c0_i32, %c0_i32_0 : i32, i32
  }
  func.func @transform_3(%arg0: i32) -> (i32, i32) {
    %c0_i32 = arith.constant 0 : i32
    %c0_i32_0 = arith.constant 0 : i32
    %c0_i32_1 = arith.constant 0 : i32
    return %c0_i32, %c0_i32_0 : i32, i32
  }
  func.func @transform_4(%arg0: i32) -> (i32, i32) {
    %c0_i32 = arith.constant 0 : i32
    %c0_i32_0 = arith.constant 0 : i32
    %c0_i32_1 = arith.constant 0 : i32
    return %c0_i32, %c0_i32_0 : i32, i32
  }
  func.func @transform_5(%arg0: i32) -> (i32, i32) {
    %c0_i32 = arith.constant 0 : i32
    %c0_i32_0 = arith.constant 0 : i32
    %c0_i32_1 = arith.constant 0 : i32
    return %c0_i32, %c0_i32_0 : i32, i32
  }
  func.func @transform_6(%arg0: i32) -> (i32, i32) {
    %c0_i32 = arith.constant 0 : i32
    %c0_i32_0 = arith.constant 0 : i32
    %c0_i32_1 = arith.constant 0 : i32
    return %c0_i32, %c0_i32_0 : i32, i32
  }
  func.func @transform_7(%arg0: i32) -> (i32, i32) {
    %c0_i32 = arith.constant 0 : i32
    %c0_i32_0 = arith.constant 0 : i32
    %c0_i32_1 = arith.constant 0 : i32
    return %c0_i32, %c0_i32_0 : i32, i32
  }
  func.func @transform_8(%arg0: i32) -> (i32, i32) {
    %c0_i32 = arith.constant 0 : i32
    %c0_i32_0 = arith.constant 0 : i32
    %c0_i32_1 = arith.constant 0 : i32
    return %c0_i32, %c0_i32_0 : i32, i32
  }
  func.func @transform_9(%arg0: i32) -> (i32, i32, i32) {
    %c0_i32 = arith.constant 0 : i32
    %c0_i32_0 = arith.constant 0 : i32
    %c0_i32_1 = arith.constant 0 : i32
    return %arg0, %c0_i32, %c0_i32_0 : i32, i32, i32
  }
}

module attributes {stable_mosaic.version = 11 : i64} {
  func.func @_inst_seg_kernel(%arg0: i32, %arg1: i32, %arg2: memref<1x128x512xbf16, #tpu.memory_space<vmem>>, %arg3: memref<135x128xbf16, #tpu.memory_space<vmem>>, %arg4: memref<1x135x1xf32, #tpu.memory_space<vmem>>, %arg5: memref<1x135xbf16, #tpu.memory_space<vmem>>, %arg6: memref<1x1xf32, #tpu.memory_space<vmem>>, %arg7: memref<1x1x512xf32, #tpu.memory_space<vmem>>) attributes {dimension_semantics = [#tpu.dimension_semantics<parallel>, #tpu.dimension_semantics<parallel>], iteration_bounds = array<i64: 2, 1>, scalar_prefetch = 0 : i64, scratch_operands = 0 : i64, tpu.core_type = #tpu.core_type<tc>, window_params = [{transform_indices = @transform_0, window_bounds = array<i64: 1, 128, 512>}, {pipeline_mode = #tpu.pipeline_mode<synchronous>, transform_indices = @transform_1, window_bounds = array<i64: 135, 128>}, {transform_indices = @transform_2, window_bounds = array<i64: 1, 135, 1>}, {pipeline_mode = #tpu.pipeline_mode<synchronous>, transform_indices = @transform_3, window_bounds = array<i64: 1, 135>}, {pipeline_mode = #tpu.pipeline_mode<synchronous>, transform_indices = @transform_4, window_bounds = array<i64: 1, 1>}, {transform_indices = @transform_5, window_bounds = array<i64: 1, 1, 512>}]} {
    %c0 = arith.constant 0 : index
    %c0_0 = arith.constant 0 : index
    %0 = vector.load %arg3[%c0, %c0_0] : memref<135x128xbf16, #tpu.memory_space<vmem>>, vector<135x128xbf16>
    %c0_1 = arith.constant 0 : index
    %c0_2 = arith.constant 0 : index
    %c0_3 = arith.constant 0 : index
    %1 = vector.load %arg2[%c0_1, %c0_2, %c0_3] : memref<1x128x512xbf16, #tpu.memory_space<vmem>>, vector<1x128x512xbf16>
    %2 = vector.shape_cast %1 : vector<1x128x512xbf16> to vector<128x512xbf16>
    %cst = arith.constant dense<0.000000e+00> : vector<135x512xf32>
    %3 = tpu.matmul %0, %2, %cst {dimension_numbers = #tpu.dot_dimension_numbers<[1], [0], [0], [1], [0, 0, 1, 1], [], []>} : vector<135x128xbf16>, vector<128x512xbf16>, vector<135x512xf32> -> vector<135x512xf32>
    %c0_4 = arith.constant 0 : index
    %c0_5 = arith.constant 0 : index
    %c0_6 = arith.constant 0 : index
    %4 = vector.load %arg4[%c0_4, %c0_5, %c0_6] : memref<1x135x1xf32, #tpu.memory_space<vmem>>, vector<1x135x1xf32>
    %5 = vector.shape_cast %4 : vector<1x135x1xf32> to vector<135x1xf32>
    %6 = vector.broadcast %5 : vector<135x1xf32> to vector<135x512xf32>
    %7 = arith.addf %3, %6 : vector<135x512xf32>
    %cst_7 = arith.constant 0.000000e+00 : f32
    %8 = vector.broadcast %cst_7 : f32 to vector<135x512xf32>
    %9 = arith.maximumf %7, %8 : vector<135x512xf32>
    %10 = arith.truncf %9 : vector<135x512xf32> to vector<135x512xbf16>
    %c0_8 = arith.constant 0 : index
    %c0_9 = arith.constant 0 : index
    %11 = vector.load %arg5[%c0_8, %c0_9] : memref<1x135xbf16, #tpu.memory_space<vmem>>, vector<1x135xbf16>
    %cst_10 = arith.constant dense<0.000000e+00> : vector<1x512xf32>
    %12 = tpu.matmul %11, %10, %cst_10 {dimension_numbers = #tpu.dot_dimension_numbers<[1], [0], [0], [1], [0, 0, 1, 1], [], []>} : vector<1x135xbf16>, vector<135x512xbf16>, vector<1x512xf32> -> vector<1x512xf32>
    %c0_11 = arith.constant 0 : index
    %c0_12 = arith.constant 0 : index
    %13 = vector.load %arg6[%c0_11, %c0_12] : memref<1x1xf32, #tpu.memory_space<vmem>>, vector<1x1xf32>
    %14 = vector.broadcast %13 : vector<1x1xf32> to vector<1x512xf32>
    %15 = arith.addf %12, %14 : vector<1x512xf32>
    %16 = arith.negf %15 : vector<1x512xf32>
    %17 = math.exp %16 : vector<1x512xf32>
    %cst_13 = arith.constant 1.000000e+00 : f32
    %18 = vector.broadcast %cst_13 : f32 to vector<1x512xf32>
    %19 = arith.addf %18, %17 : vector<1x512xf32>
    %20 = arith.divf %18, %19 : vector<1x512xf32>
    %c0_14 = arith.constant 0 : index
    %c0_15 = arith.constant 0 : index
    %c0_16 = arith.constant 0 : index
    %21 = vector.load %arg7[%c0_14, %c0_15, %c0_16] : memref<1x1x512xf32, #tpu.memory_space<vmem>>, vector<1x1x512xf32>
    %22 = vector.shape_cast %21 : vector<1x1x512xf32> to vector<1x512xf32>
    %23 = vector.shape_cast %20 : vector<1x512xf32> to vector<1x1x512xf32>
    tpu.vector_store %arg7[%c0_14, %c0_15, %c0_16], %23 {strides = array<i32>} : memref<1x1x512xf32, #tpu.memory_space<vmem>>, vector<1x1x512xf32>,
    return
  }
  func.func @transform_0(%arg0: i32, %arg1: i32) -> (i32, i32, i32) {
    %c0_i32 = arith.constant 0 : i32
    %c0_i32_0 = arith.constant 0 : i32
    return %arg0, %c0_i32, %arg1 : i32, i32, i32
  }
  func.func @transform_1(%arg0: i32, %arg1: i32) -> (i32, i32) {
    %c0_i32 = arith.constant 0 : i32
    %c0_i32_0 = arith.constant 0 : i32
    %c0_i32_1 = arith.constant 0 : i32
    return %c0_i32, %c0_i32_0 : i32, i32
  }
  func.func @transform_2(%arg0: i32, %arg1: i32) -> (i32, i32, i32) {
    %c0_i32 = arith.constant 0 : i32
    %c0_i32_0 = arith.constant 0 : i32
    %c0_i32_1 = arith.constant 0 : i32
    return %arg0, %c0_i32, %c0_i32_0 : i32, i32, i32
  }
  func.func @transform_3(%arg0: i32, %arg1: i32) -> (i32, i32) {
    %c0_i32 = arith.constant 0 : i32
    %c0_i32_0 = arith.constant 0 : i32
    %c0_i32_1 = arith.constant 0 : i32
    return %c0_i32, %c0_i32_0 : i32, i32
  }
  func.func @transform_4(%arg0: i32, %arg1: i32) -> (i32, i32) {
    %c0_i32 = arith.constant 0 : i32
    %c0_i32_0 = arith.constant 0 : i32
    %c0_i32_1 = arith.constant 0 : i32
    return %c0_i32, %c0_i32_0 : i32, i32
  }
  func.func @transform_5(%arg0: i32, %arg1: i32) -> (i32, i32, i32) {
    %c0_i32 = arith.constant 0 : i32
    %c0_i32_0 = arith.constant 0 : i32
    return %arg0, %c0_i32, %arg1 : i32, i32, i32
  }
}

</mosaic_0001>

<llo_original>
// kernel: refer_model_forward.3
$region0: #{refer_model_forward.3}
  #allocation0 [shape = 'u32[]', space=smem, size = 0x4, offset = 0x4, fixed_abs, tag = 'smem constant byte address 0x4 - core index']
  #allocation1 [shape = 'u32[144,128]{1,0:T(1,128)}', space=vmem, size = 0x12000, scoped, tag = 'internal scratch']
  #allocation2 [shape = 'f32[1,1]{1,0:T(1,128)S(1)}', space=vmem, size = 0x200, scoped, tag = 'scoped memory for refer_model_forward.3']
  %s0 = inlined_call_operand.vmem [shape: bf16[2,128,512], index: 0, kind: input, shape index: {}]
  %s1 = inlined_call_operand.vmem [shape: bf16[135,128], index: 1, kind: input, shape index: {}]
  %s2 = inlined_call_operand.vmem [shape: f32[2,135,1], index: 2, kind: input, shape index: {}]
  %s3 = inlined_call_operand.vmem [shape: bf16[1,135], index: 3, kind: input, shape index: {}]
  %s4 = inlined_call_operand.<no memory space> [shape: f32[1,1], index: 4, kind: input, shape index: {}]
  %s5 = inlined_call_operand.vmem [shape: f32[2,1,512], index: 5, kind: output, shape index: {}]
  %s6 = sld [smem:[#allocation0]]
  $region53: #{refer_model_forward.3} parent=0
    _
  %s8 = ssub.s32 1, %s6
  %s9 = scalar_select 0, %s8, %s6
  %v10 = vstv %s4
  %11 = vst [vmem:[#allocation2] sm:$0x1] %v10
  loop: start=0, step=1, limit=4
  $region2: #{refer_model_forward.3} parent=0 // loop_pre_header
    _
  $region3: #{refer_model_forward.3} parent=0 // loop_header
    %s13 = sphi 0, %s17
    %p14 = scmp.ge.s32.totalorder %s13, 4
    %s20 = sphi 0, %s32
    %s21 = sphi 0, %s28
    %s22 = sphi 0, %s20
    %s23 = sphi 0, %s21
    %s24 = sphi 0, %s22
    %s25 = sphi 0, %s23
    %s37 = sphi 0, %s39
    %s40 = sphi 0, %s37
    %s41 = sphi 0, %s40
    %s57 = sphi 0, %s41
    %s61 = sphi 0, %s61
    %s63 = sphi 0, %s61
    %s64 = sphi 0, %s63
    %s78 = sphi 0, %s64
    %s84 = sphi 0, %s86
    %s87 = sphi 0, %s84
    %s88 = sphi 0, %s87
    %s104 = sphi 0, %s88
    %s108 = sphi 0, %s108
    %s110 = sphi 0, %s108
    %s111 = sphi 0, %s110
    %s125 = sphi 0, %s111
    %s129 = sphi 0, %s129
    %s131 = sphi 0, %s129
    %s132 = sphi 0, %s131
    %s146 = sphi 0, %s132
    %s154 = sphi 0, %s156
    %s157 = sphi 0, %s154
    %s158 = sphi 0, %s157
    %s174 = sphi 0, %s158
  $region4: #{refer_model_forward.3} parent=0 // loop_header_branch
    %16 = sbr.rel (%p14) target = $region8
  $region5: #{refer_model_forward.3} parent=0 // loop_body
    %s18 = ssub.s32 %s13, 1
    %s19 = ssub.s32 %s13, 2
    %s26 = sadd.s32 1, %s21
    %p27 = scmp.ge.s32.totalorder %s26, 1
    %s28 = scalar_select %p27, 0, %s26
    %s29 = sadd.s32 1, %s20
    %s30 = scalar_select %p27, %s29, %s20
    %p31 = scmp.ge.s32.totalorder %s30, 2
    %s32 = scalar_select %p31, 0, %s30
    %s33 = ssub.s32 %s20, %s32
    %s34 = ssub.s32 %s21, %s28
    %s35 = sor.u32 %s33, %s34
    %p36 = scmp.eq.s32.totalorder %s35, 0
    %s38 = sadd.s32 %s37, 1
    %s39 = scalar_select %p36, %s37, %s38
    %p42 = pneg %p36
    %p43 = scmp.eq.s32.totalorder %s13, 1
    %p44 = por %p42, %p43
    %p45 = scmp.ne.s32.totalorder %s37, %s40
    %p46 = scmp.eq.s32.totalorder %s13, 0
    %p47 = por %p45, %p46
    %p48 = scmp.ne.s32.totalorder %s37, %s40
    %p49 = scmp.eq.s32.totalorder %s18, 1
    %p50 = por %p48, %p49
    %p51 = scmp.ne.s32.totalorder %s40, %s41
    %p52 = scmp.eq.s32.totalorder %s18, 0
    %p53 = por %p51, %p52
    %p54 = scmp.ne.s32.totalorder %s40, %s41
    %p55 = scmp.eq.s32.totalorder %s19, 1
    %p56 = por %p54, %p55
    %p58 = scmp.ne.s32.totalorder %s41, %s57
    %p59 = scmp.eq.s32.totalorder %s19, 0
    %p60 = por %p58, %p59
    %s62 = sadd.s32 %s61, 1
    %p65 = scmp.eq.s32.totalorder %s13, 1
    %p66 = scmp.ne.s32.totalorder %s61, %s63
    %p67 = scmp.eq.s32.totalorder %s13, 0
    %p68 = por %p66, %p67
    %p69 = scmp.ne.s32.totalorder %s61, %s63
    %p70 = scmp.eq.s32.totalorder %s18, 1
    %p71 = por %p69, %p70
    %p72 = scmp.ne.s32.totalorder %s63, %s64
    %p73 = scmp.eq.s32.totalorder %s18, 0
    %p74 = por %p72, %p73
    %p75 = scmp.ne.s32.totalorder %s63, %s64
    %p76 = scmp.eq.s32.totalorder %s19, 1
    %p77 = por %p75, %p76
    %p79 = scmp.ne.s32.totalorder %s64, %s78
    %p80 = scmp.eq.s32.totalorder %s19, 0
    %p81 = por %p79, %p80
    %s82 = ssub.s32 %s20, %s32
    %p83 = scmp.eq.s32.totalorder %s82, 0
    %s85 = sadd.s32 %s84, 1
    %s86 = scalar_select %p83, %s84, %s85
    %p89 = pneg %p83
    %p90 = scmp.eq.s32.totalorder %s13, 1
    %p91 = por %p89, %p90
    %p92 = scmp.ne.s32.totalorder %s84, %s87
    %p93 = scmp.eq.s32.totalorder %s13, 0
    %p94 = por %p92, %p93
    %p95 = scmp.ne.s32.totalorder %s84, %s87
    %p96 = scmp.eq.s32.totalorder %s18, 1
    %p97 = por %p95, %p96
    %p98 = scmp.ne.s32.totalorder %s87, %s88
    %p99 = scmp.eq.s32.totalorder %s18, 0
    %p100 = por %p98, %p99
    %p101 = scmp.ne.s32.totalorder %s87, %s88
    %p102 = scmp.eq.s32.totalorder %s19, 1
    %p103 = por %p101, %p102
    %p105 = scmp.ne.s32.totalorder %s88, %s104
    %p106 = scmp.eq.s32.totalorder %s19, 0
    %p107 = por %p105, %p106
    %s109 = sadd.s32 %s108, 1
    %p112 = scmp.eq.s32.totalorder %s13, 1
    %p113 = scmp.ne.s32.totalorder %s108, %s110
    %p114 = scmp.eq.s32.totalorder %s13, 0
    %p115 = por %p113, %p114
    %p116 = scmp.ne.s32.totalorder %s108, %s110
    %p117 = scmp.eq.s32.totalorder %s18, 1
    %p118 = por %p116, %p117
    %p119 = scmp.ne.s32.totalorder %s110, %s111
    %p120 = scmp.eq.s32.totalorder %s18, 0
    %p121 = por %p119, %p120
    %p122 = scmp.ne.s32.totalorder %s110, %s111
    %p123 = scmp.eq.s32.totalorder %s19, 1
    %p124 = por %p122, %p123
    %p126 = scmp.ne.s32.totalorder %s111, %s125
    %p127 = scmp.eq.s32.totalorder %s19, 0
    %p128 = por %p126, %p127
    %s130 = sadd.s32 %s129, 1
    %p133 = scmp.eq.s32.totalorder %s13, 1
    %p134 = scmp.ne.s32.totalorder %s129, %s131
    %p135 = scmp.eq.s32.totalorder %s13, 0
    %p136 = por %p134, %p135
    %p137 = scmp.ne.s32.totalorder %s129, %s131
    %p138 = scmp.eq.s32.totalorder %s18, 1
    %p139 = por %p137, %p138
    %p140 = scmp.ne.s32.totalorder %s131, %s132
    %p141 = scmp.eq.s32.totalorder %s18, 0
    %p142 = por %p140, %p141
    %p143 = scmp.ne.s32.totalorder %s131, %s132
    %p144 = scmp.eq.s32.totalorder %s19, 1
    %p145 = por %p143, %p144
    %p147 = scmp.ne.s32.totalorder %s132, %s146
    %p148 = scmp.eq.s32.totalorder %s19, 0
    %p149 = por %p147, %p148
    %s150 = ssub.s32 %s20, %s32
    %s151 = ssub.s32 %s21, %s28
    %s152 = sor.u32 %s150, %s151
    %p153 = scmp.eq.s32.totalorder %s152, 0
    %s155 = sadd.s32 %s154, 1
    %s156 = scalar_select %p153, %s154, %s155
    %p159 = pneg %p153
    %p160 = scmp.eq.s32.totalorder %s13, 1
    %p161 = por %p159, %p160
    %p162 = scmp.ne.s32.totalorder %s154, %s157
    %p163 = scmp.eq.s32.totalorder %s13, 0
    %p164 = por %p162, %p163
    %p165 = scmp.ne.s32.totalorder %s154, %s157
    %p166 = scmp.eq.s32.totalorder %s18, 1
    %p167 = por %p165, %p166
    %p168 = scmp.ne.s32.totalorder %s157, %s158
    %p169 = scmp.eq.s32.totalorder %s18, 0
    %p170 = por %p168, %p169
    %p171 = scmp.ne.s32.totalorder %s157, %s158
    %p172 = scmp.eq.s32.totalorder %s19, 1
    %p173 = por %p171, %p172
    %p175 = scmp.ne.s32.totalorder %s158, %s174
    %p176 = scmp.eq.s32.totalorder %s19, 0
    %p177 = por %p175, %p176
    %p178 = scmp.le.s32.totalorder 1, %s13
    %p179 = scmp.lt.s32.totalorder %s13, 3
    %p180 = pnand %p178, %p179
    %p181 = pneg %p180
    // Predicated region
    $region9: #{refer_model_forward.3} parent=5 // pred_check
      _
    $region10: #{refer_model_forward.3} parent=5 // pred_check_branch
      %183 = sbr.rel (%p180) target = $region12
    $region11: #{refer_model_forward.3} parent=5 // pred_region
      %s184 = ssub.s32 %s13, 1
      // Predicated region
      $region13: #{refer_model_forward.3} parent=11 // pred_check
        %p185 = pneg %p74
      $region14: #{refer_model_forward.3} parent=11 // pred_check_branch
        %187 = sbr.rel (%p185) target = $region16
      $region15: #{refer_model_forward.3} parent=11 // pred_region
        _
      $region16: #{refer_model_forward.3} parent=11 // pred_fallthru
        _
      // Predicated region
      $region17: #{refer_model_forward.3} parent=11 // pred_check
        %p188 = pneg %p121
      $region18: #{refer_model_forward.3} parent=11 // pred_check_branch
        %190 = sbr.rel (%p188) target = $region20
      $region19: #{refer_model_forward.3} parent=11 // pred_region
        _
      $region20: #{refer_model_forward.3} parent=11 // pred_fallthru
        _
      // Predicated region
      $region21: #{refer_model_forward.3} parent=11 // pred_check
        %p191 = pneg %p142
      $region22: #{refer_model_forward.3} parent=11 // pred_check_branch
        %193 = sbr.rel (%p191) target = $region24
      $region23: #{refer_model_forward.3} parent=11 // pred_region
        _
      $region24: #{refer_model_forward.3} parent=11 // pred_fallthru
        _
    $region12: #{refer_model_forward.3} parent=5 // pred_fallthru
      _
    %p194 = scmp.lt.s32.totalorder %s13, 2
    // Predicated region
    $region25: #{refer_model_forward.3} parent=5 // pred_check
      %p195 = pneg %p194
    $region26: #{refer_model_forward.3} parent=5 // pred_check_branch
      %197 = sbr.rel (%p195) target = $region28
    $region27: #{refer_model_forward.3} parent=5 // pred_region
      // Predicated region
      $region29: #{refer_model_forward.3} parent=27 // pred_check
        %p198 = pneg %p47
      $region30: #{refer_model_forward.3} parent=27 // pred_check_branch
        %200 = sbr.rel (%p198) target = $region32
      $region31: #{refer_model_forward.3} parent=27 // pred_region
        %s201 = smul.u32 4, %s21
        %p202 = scmp.lt.s32.totalorder %s20, 1
        %s203 = scalar_select %p202, %s20, 1
        %p204 = scmp.lt.s32.totalorder %s201, 3
        %s205 = scalar_select %p204, %s201, 3
        %s206 = smul.addr %s203, 64
        %s207 = sadd.s32 %s205, %s206
        %s208 = smul.addr %s207, 4
        %s209 = scalar_lea.vmem %s0, %s208
        %s210 = smul.u32 4, %s21
      $region32: #{refer_model_forward.3} parent=27 // pred_fallthru
        _
      // Predicated region
      $region33: #{refer_model_forward.3} parent=27 // pred_check
        %p211 = pneg %p94
      $region34: #{refer_model_forward.3} parent=27 // pred_check_branch
        %213 = sbr.rel (%p211) target = $region36
      $region35: #{refer_model_forward.3} parent=27 // pred_region
        %p214 = scmp.lt.s32.totalorder %s20, 1
        %s215 = scalar_select %p214, %s20, 1
        %s216 = smul.addr %s215, 17
        %s217 = smul.addr %s216, 8
        %s218 = scalar_lea.vmem %s2, %s217
      $region36: #{refer_model_forward.3} parent=27 // pred_fallthru
        _
    $region28: #{refer_model_forward.3} parent=5 // pred_fallthru
      _
    %p219 = scmp.le.s32.totalorder 1, %s13
    %p220 = scmp.lt.s32.totalorder %s13, 3
    %p221 = pnand %p219, %p220
    %p222 = pneg %p221
    // Predicated region
    $region37: #{refer_model_forward.3} parent=5 // pred_check
      _
    $region38: #{refer_model_forward.3} parent=5 // pred_check_branch
      %224 = sbr.rel (%p221) target = $region40
    $region39: #{refer_model_forward.3} parent=5 // pred_region
      %s225 = ssub.s32 %s13, 1
      %s226 = smul.u32 4, %s23
      %p227 = scmp.lt.s32.totalorder %s22, 1
      %s228 = scalar_select %p227, %s22, 1
      %p229 = scmp.lt.s32.totalorder %s226, 3
      %s230 = scalar_select %p229, %s226, 3
      %s231 = smul.addr %s228, 64
      %s232 = sadd.s32 %s230, %s231
      %s233 = smul.addr %s232, 4
      %s234 = scalar_lea.vmem %s0, %s233
      %p235 = pneg %p53
      %p236 = pneg %p50
      %p237 = pneg %p74
      %p238 = pneg %p71
      %p239 = scmp.lt.s32.totalorder %s22, 1
      %s240 = scalar_select %p239, %s22, 1
      %s241 = smul.addr %s240, 17
      %s242 = smul.addr %s241, 8
      %s243 = scalar_lea.vmem %s2, %s242
      %p244 = pneg %p100
      %p245 = pneg %p97
      %p246 = pneg %p121
      %p247 = pneg %p118
      %p248 = pneg %p142
      %p249 = pneg %p139
      %p250 = pneg %p170
      %p251 = pneg %p167
      %s252 = smul.u32 4, %s23
      %p253 = scmp.lt.s32.totalorder %s22, 1
      %s254 = scalar_select %p253, %s22, 1
      %p255 = scmp.lt.s32.totalorder %s252, 3
      %s256 = scalar_select %p255, %s252, 3
      %s257 = smul.addr %s254, 4
      %s258 = sadd.s32 %s256, %s257
      %s259 = scalar_lea.vmem %s5, %s258
      %s260 = smul.u32 4, %s23
      %p261 = scmp.lt.s32.totalorder %s22, 1
      %s262 = scalar_select %p261, %s22, 1
      %p263 = scmp.lt.s32.totalorder %s260, 3
      %s264 = scalar_select %p263, %s260, 3
      %s265 = smul.addr %s262, 64
      %s266 = sadd.s32 %s264, %s265
      %s267 = smul.addr %s266, 4
      %s268 = scalar_lea.vmem %s0, %s267
      %s269 = smul.u32 4, %s23
      %p270 = scmp.lt.s32.totalorder %s22, 1
      %s271 = scalar_select %p270, %s22, 1
      %s272 = smul.addr %s271, 17
      %s273 = smul.addr %s272, 8
      %s274 = scalar_lea.vmem %s2, %s273
      %s275 = smul.u32 4, %s23
      %p276 = scmp.lt.s32.totalorder %s22, 1
      %s277 = scalar_select %p276, %s22, 1
      %p278 = scmp.lt.s32.totalorder %s275, 3
      %s279 = scalar_select %p278, %s275, 3
      %s280 = smul.addr %s277, 4
      %s281 = sadd.s32 %s279, %s280
      %s282 = scalar_lea.vmem %s5, %s281
      %s283 = smul.u32 4, %s23
      %v285 = vld [vmem:[%s1] sm:$0xf]
      %v286 = vld [vmem:[%s1 + $0x4] sm:$0xf]
      %v287 = vld [vmem:[%s1 + $0x8] sm:$0xf]
      %v288 = vld [vmem:[%s1 + $0xc] sm:$0xf]
      %v289 = vld [vmem:[%s1 + $0x10] sm:$0xf]
      %v290 = vld [vmem:[%s1 + $0x14] sm:$0xf]
      %v291 = vld [vmem:[%s1 + $0x18] sm:$0xf]
      %v292 = vld [vmem:[%s1 + $0x1c] sm:$0xf]
      %v293 = vld [vmem:[%s1 + $0x20] sm:$0xf]
      %v294 = vld [vmem:[%s1 + $0x24] sm:$0xf]
      %v295 = vld [vmem:[%s1 + $0x28] sm:$0xf]
      %v296 = vld [vmem:[%s1 + $0x2c] sm:$0xf]
      %v297 = vld [vmem:[%s1 + $0x30] sm:$0xf]
      %v298 = vld [vmem:[%s1 + $0x34] sm:$0xf]
      %v299 = vld [vmem:[%s1 + $0x38] sm:$0xf]
      %v300 = vld [vmem:[%s1 + $0x3c] sm:$0xf]
      %v301 = vld [vmem:[%s1 + $0x40] sm:$0xf]
      %v302 = vld [vmem:[%s268] sm:$0xff]
      %v303 = vld [vmem:[%s268 + $0x8] sm:$0xff]
      %v304 = vld [vmem:[%s268 + $0x10] sm:$0xff]
      %v305 = vld [vmem:[%s268 + $0x18] sm:$0xff]
      %v306 = vld [vmem:[%s268 + $0x20] sm:$0xff]
      %v307 = vld [vmem:[%s268 + $0x28] sm:$0xff]
      %v308 = vld [vmem:[%s268 + $0x30] sm:$0xff]
      %v309 = vld [vmem:[%s268 + $0x38] sm:$0xff]
      %v310 = vld [vmem:[%s268 + $0x40] sm:$0xff]
      %v311 = vld [vmem:[%s268 + $0x48] sm:$0xff]
      %v312 = vld [vmem:[%s268 + $0x50] sm:$0xff]
      %v313 = vld [vmem:[%s268 + $0x58] sm:$0xff]
      %v314 = vld [vmem:[%s268 + $0x60] sm:$0xff]
      %v315 = vld [vmem:[%s268 + $0x68] sm:$0xff]
      %v316 = vld [vmem:[%s268 + $0x70] sm:$0xff]
      %v317 = vld [vmem:[%s268 + $0x78] sm:$0xff]
      %v318 = vld [vmem:[%s268 + $0x80] sm:$0xff]
      %v319 = vld [vmem:[%s268 + $0x88] sm:$0xff]
      %v320 = vld [vmem:[%s268 + $0x90] sm:$0xff]
      %v321 = vld [vmem:[%s268 + $0x98] sm:$0xff]
      %v322 = vld [vmem:[%s268 + $0xa0] sm:$0xff]
      %v323 = vld [vmem:[%s268 + $0xa8] sm:$0xff]
      %v324 = vld [vmem:[%s268 + $0xb0] sm:$0xff]
      %v325 = vld [vmem:[%s268 + $0xb8] sm:$0xff]
      %v326 = vld [vmem:[%s268 + $0xc0] sm:$0xff]
      %v327 = vld [vmem:[%s268 + $0xc8] sm:$0xff]
      %v328 = vld [vmem:[%s268 + $0xd0] sm:$0xff]
      %v329 = vld [vmem:[%s268 + $0xd8] sm:$0xff]
      %v330 = vld [vmem:[%s268 + $0xe0] sm:$0xff]
      %v331 = vld [vmem:[%s268 + $0xe8] sm:$0xff]
      %v332 = vld [vmem:[%s268 + $0xf0] sm:$0xff]
      %v333 = vld [vmem:[%s268 + $0xf8] sm:$0xff]
      %v334 = vld [vmem:[%s274] sm:$0xff]
      %v335 = vld [vmem:[%s274 + $0x8] sm:$0xff]
      %v336 = vld [vmem:[%s274 + $0x10] sm:$0xff]
      %v337 = vld [vmem:[%s274 + $0x18] sm:$0xff]
      %v338 = vld [vmem:[%s274 + $0x20] sm:$0xff]
      %v339 = vld [vmem:[%s274 + $0x28] sm:$0xff]
      %v340 = vld [vmem:[%s274 + $0x30] sm:$0xff]
      %v341 = vld [vmem:[%s274 + $0x38] sm:$0xff]
      %v342 = vld [vmem:[%s274 + $0x40] sm:$0xff]
      %v343 = vld [vmem:[%s274 + $0x48] sm:$0xff]
      %v344 = vld [vmem:[%s274 + $0x50] sm:$0xff]
      %v345 = vld [vmem:[%s274 + $0x58] sm:$0xff]
      %v346 = vld [vmem:[%s274 + $0x60] sm:$0xff]
      %v347 = vld [vmem:[%s274 + $0x68] sm:$0xff]
      %v348 = vld [vmem:[%s274 + $0x70] sm:$0xff]
      %v349 = vld [vmem:[%s274 + $0x78] sm:$0xff]
      %v350 = vld [vmem:[%s274 + $0x80] sm:$0x7f]
      %352 = vset.pattern.permute.xlu0 0
      %353 = vperm.xlu0 %352, %v334
      %v354 = vpop.permute.xlu0 %353
      %357 = vset.pattern.permute.xlu0 0
      %358 = vperm.xlu0 %357, %v335
      %v359 = vpop.permute.xlu0 %358
      %362 = vset.pattern.permute.xlu0 0
      %363 = vperm.xlu0 %362, %v336
      %v364 = vpop.permute.xlu0 %363
      %367 = vset.pattern.permute.xlu0 0
      %368 = vperm.xlu0 %367, %v337
      %v369 = vpop.permute.xlu0 %368
      %372 = vset.pattern.permute.xlu0 0
      %373 = vperm.xlu0 %372, %v338
      %v374 = vpop.permute.xlu0 %373
      %377 = vset.pattern.permute.xlu0 0
      %378 = vperm.xlu0 %377, %v339
      %v379 = vpop.permute.xlu0 %378
      %382 = vset.pattern.permute.xlu0 0
      %383 = vperm.xlu0 %382, %v340
      %v384 = vpop.permute.xlu0 %383
      %387 = vset.pattern.permute.xlu0 0
      %388 = vperm.xlu0 %387, %v341
      %v389 = vpop.permute.xlu0 %388
      %392 = vset.pattern.permute.xlu0 0
      %393 = vperm.xlu0 %392, %v342
      %v394 = vpop.permute.xlu0 %393
      %397 = vset.pattern.permute.xlu0 0
      %398 = vperm.xlu0 %397, %v343
      %v399 = vpop.permute.xlu0 %398
      %402 = vset.pattern.permute.xlu0 0
      %403 = vperm.xlu0 %402, %v344
      %v404 = vpop.permute.xlu0 %403
      %407 = vset.pattern.permute.xlu0 0
      %408 = vperm.xlu0 %407, %v345
      %v409 = vpop.permute.xlu0 %408
      %412 = vset.pattern.permute.xlu0 0
      %413 = vperm.xlu0 %412, %v346
      %v414 = vpop.permute.xlu0 %413
      %417 = vset.pattern.permute.xlu0 0
      %418 = vperm.xlu0 %417, %v347
      %v419 = vpop.permute.xlu0 %418
      %422 = vset.pattern.permute.xlu0 0
      %423 = vperm.xlu0 %422, %v348
      %v424 = vpop.permute.xlu0 %423
      %427 = vset.pattern.permute.xlu0 0
      %428 = vperm.xlu0 %427, %v349
      %v429 = vpop.permute.xlu0 %428
      %432 = vset.pattern.permute.xlu0 0
      %433 = vperm.xlu0 %432, %v350
      %v434 = vpop.permute.xlu0 %433
      %v453 = vunpack.c.l.b16 %v285
      %v454 = vunpack.c.l.b16 %v286
      %v455 = vunpack.c.l.b16 %v287
      %v456 = vunpack.c.l.b16 %v288
      %v457 = vunpack.c.l.b16 %v289
      %v458 = vunpack.c.l.b16 %v290
      %v459 = vunpack.c.l.b16 %v291
      %v460 = vunpack.c.l.b16 %v292
      %v461 = vunpack.c.l.b16 %v293
      %v462 = vunpack.c.l.b16 %v294
      %v463 = vunpack.c.l.b16 %v295
      %v464 = vunpack.c.l.b16 %v296
      %v465 = vunpack.c.l.b16 %v297
      %v466 = vunpack.c.l.b16 %v298
      %v467 = vunpack.c.l.b16 %v299
      %v468 = vunpack.c.l.b16 %v300
      %v469 = vunpack.c.l.b16 %v301
      %v470 = vpack.c.b16 %v454, %v453
      %v471 = vpack.c.b16 %v456, %v455
      %v472 = vpack.c.b16 %v458, %v457
      %v473 = vpack.c.b16 %v460, %v459
      %v474 = vpack.c.b16 %v462, %v461
      %v475 = vpack.c.b16 %v464, %v463
      %v476 = vpack.c.b16 %v466, %v465
      %v477 = vpack.c.b16 %v468, %v467
      %v478 = vpack.c.b16 %v469, %v469
      %v520 = vunpack.c.l.b16 %v302
      %v521 = vunpack.c.h.b16 %v302
      %v522 = vunpack.c.l.b16 %v303
      %v523 = vunpack.c.h.b16 %v303
      %v524 = vunpack.c.l.b16 %v304
      %v525 = vunpack.c.h.b16 %v304
      %v526 = vunpack.c.l.b16 %v305
      %v527 = vunpack.c.h.b16 %v305
      %v528 = vunpack.c.l.b16 %v306
      %v529 = vunpack.c.h.b16 %v306
      %v530 = vunpack.c.l.b16 %v307
      %v531 = vunpack.c.h.b16 %v307
      %v532 = vunpack.c.l.b16 %v308
      %v533 = vunpack.c.h.b16 %v308
      %v534 = vunpack.c.l.b16 %v309
      %v535 = vunpack.c.h.b16 %v309
      %v536 = vunpack.c.l.b16 %v310
      %v537 = vunpack.c.h.b16 %v310
      %v538 = vunpack.c.l.b16 %v311
      %v539 = vunpack.c.h.b16 %v311
      %v540 = vunpack.c.l.b16 %v312
      %v541 = vunpack.c.h.b16 %v312
      %v542 = vunpack.c.l.b16 %v313
      %v543 = vunpack.c.h.b16 %v313
      %v544 = vunpack.c.l.b16 %v314
      %v545 = vunpack.c.h.b16 %v314
      %v546 = vunpack.c.l.b16 %v315
      %v547 = vunpack.c.h.b16 %v315
      %v548 = vunpack.c.l.b16 %v316
      %v549 = vunpack.c.h.b16 %v316
      %v550 = vunpack.c.l.b16 %v317
      %v551 = vunpack.c.h.b16 %v317
      %v552 = vunpack.c.l.b16 %v318
      %v553 = vunpack.c.h.b16 %v318
      %v554 = vunpack.c.l.b16 %v319
      %v555 = vunpack.c.h.b16 %v319
      %v556 = vunpack.c.l.b16 %v320
      %v557 = vunpack.c.h.b16 %v320
      %v558 = vunpack.c.l.b16 %v321
      %v559 = vunpack.c.h.b16 %v321
      %v560 = vunpack.c.l.b16 %v322
      %v561 = vunpack.c.h.b16 %v322
      %v562 = vunpack.c.l.b16 %v323
      %v563 = vunpack.c.h.b16 %v323
      %v564 = vunpack.c.l.b16 %v324
      %v565 = vunpack.c.h.b16 %v324
      %v566 = vunpack.c.l.b16 %v325
      %v567 = vunpack.c.h.b16 %v325
      %v568 = vunpack.c.l.b16 %v326
      %v569 = vunpack.c.h.b16 %v326
      %v570 = vunpack.c.l.b16 %v327
      %v571 = vunpack.c.h.b16 %v327
      %v572 = vunpack.c.l.b16 %v328
      %v573 = vunpack.c.h.b16 %v328
      %v574 = vunpack.c.l.b16 %v329
      %v575 = vunpack.c.h.b16 %v329
      %v576 = vunpack.c.l.b16 %v330
      %v577 = vunpack.c.h.b16 %v330
      %v578 = vunpack.c.l.b16 %v331
      %v579 = vunpack.c.h.b16 %v331
      %v580 = vunpack.c.l.b16 %v332
      %v581 = vunpack.c.h.b16 %v332
      %v582 = vunpack.c.l.b16 %v333
      %v583 = vunpack.c.h.b16 %v333
      %v584 = vpack.c.b16 %v524, %v520
      %v585 = vpack.c.b16 %v525, %v521
      %v586 = vpack.c.b16 %v526, %v522
      %v587 = vpack.c.b16 %v527, %v523
      %v588 = vpack.c.b16 %v532, %v528
      %v589 = vpack.c.b16 %v533, %v529
      %v590 = vpack.c.b16 %v534, %v530
      %v591 = vpack.c.b16 %v535, %v531
      %v592 = vpack.c.b16 %v540, %v536
      %v593 = vpack.c.b16 %v541, %v537
      %v594 = vpack.c.b16 %v542, %v538
      %v595 = vpack.c.b16 %v543, %v539
      %v596 = vpack.c.b16 %v548, %v544
      %v597 = vpack.c.b16 %v549, %v545
      %v598 = vpack.c.b16 %v550, %v546
      %v599 = vpack.c.b16 %v551, %v547
      %v600 = vpack.c.b16 %v556, %v552
      %v601 = vpack.c.b16 %v557, %v553
      %v602 = vpack.c.b16 %v558, %v554
      %v603 = vpack.c.b16 %v559, %v555
      %v604 = vpack.c.b16 %v564, %v560
      %v605 = vpack.c.b16 %v565, %v561
      %v606 = vpack.c.b16 %v566, %v562
      %v607 = vpack.c.b16 %v567, %v563
      %v608 = vpack.c.b16 %v572, %v568
      %v609 = vpack.c.b16 %v573, %v569
      %v610 = vpack.c.b16 %v574, %v570
      %v611 = vpack.c.b16 %v575, %v571
      %v612 = vpack.c.b16 %v580, %v576
      %v613 = vpack.c.b16 %v581, %v577
      %v614 = vpack.c.b16 %v582, %v578
      %v615 = vpack.c.b16 %v583, %v579
      %648 = vmatprep.subr.bf16.mxu0 %v613
      %649 = vmatpush1.bf16.msra.mxu0 %v612
      %650 = vmatprep.subr.bf16.mxu0 %v609
      %651 = vmatpush1.bf16.msra.mxu0 %v608
      %652 = vmatprep.subr.bf16.mxu0 %v605
      %653 = vmatpush1.bf16.msra.mxu0 %v604
      %654 = vmatprep.subr.bf16.mxu0 %v601
      %655 = vmatpush1.bf16.msra.mxu0 %v600
      %656 = vmatprep.subr.bf16.mxu0 %v597
      %657 = vmatpush1.bf16.msra.mxu0 %v596
      %658 = vmatprep.subr.bf16.mxu0 %v593
      %659 = vmatpush1.bf16.msra.mxu0 %v592
      %660 = vmatprep.subr.bf16.mxu0 %v589
      %661 = vmatpush1.bf16.msra.mxu0 %v588
      %662 = vmatprep.subr.bf16.mxu0 %v585
      %663 = vmatpush1.bf16.msra.mxu0 %v584
      %664 = vmatprep.subr.bf16.mxu0 0
      %665 = vmatpush2.bf16.msra.mxu0 0
      %666 = vmatprep.subr.bf16.mxu0 0
      %667 = vmatpush2.bf16.msra.mxu0 0
      %668 = vmatprep.subr.bf16.mxu0 0
      %669 = vmatpush2.bf16.msra.mxu0 0
      %670 = vmatprep.subr.bf16.mxu0 0
      %671 = vmatpush2.bf16.msra.mxu0 0
      %672 = vmatprep.subr.bf16.mxu0 0
      %673 = vmatpush2.bf16.msra.mxu0 0
      %674 = vmatprep.subr.bf16.mxu0 0
      %675 = vmatpush2.bf16.msra.mxu0 0
      %676 = vmatprep.subr.bf16.mxu0 0
      %677 = vmatpush2.bf16.msra.mxu0 0
      %678 = vmatprep.subr.bf16.mxu0 0
      %679 = vmatpush2.bf16.msra.mxu0 0
      %680 = vmatprep.mubr.bf16.mxu0 0
      %681 = vmatmul.mubr.bf16.gmra.mxu0 %v470
      %v682 = vpop.f32.mrf.mxu0
      %v683 = vadd.f32 %v354, %v682
      %v684 = vpop.f32.mrf.mxu0
      %v685 = vadd.f32 %v354, %v684
      %v686 = vpop.f32.mrf.mxu0
      %v687 = vadd.f32 %v359, %v686
      %v688 = vpop.f32.mrf.mxu0
      %v689 = vadd.f32 %v359, %v688
      %690 = vmatprep.mubr.bf16.mxu0 0
      %691 = vmatmul.mubr.bf16.gmra.mxu0 %v471
      %v692 = vpop.f32.mrf.mxu0
      %v693 = vadd.f32 %v364, %v692
      %v694 = vpop.f32.mrf.mxu0
      %v695 = vadd.f32 %v364, %v694
      %v696 = vpop.f32.mrf.mxu0
      %v697 = vadd.f32 %v369, %v696
      %v698 = vpop.f32.mrf.mxu0
      %v699 = vadd.f32 %v369, %v698
      %700 = vmatprep.mubr.bf16.mxu0 0
      %701 = vmatmul.mubr.bf16.gmra.mxu0 %v472
      %v702 = vpop.f32.mrf.mxu0
      %v703 = vadd.f32 %v374, %v702
      %v704 = vpop.f32.mrf.mxu0
      %v705 = vadd.f32 %v374, %v704
      %v706 = vpop.f32.mrf.mxu0
      %v707 = vadd.f32 %v379, %v706
      %v708 = vpop.f32.mrf.mxu0
      %v709 = vadd.f32 %v379, %v708
      %710 = vmatprep.mubr.bf16.mxu0 0
      %711 = vmatmul.mubr.bf16.gmra.mxu0 %v473
      %v712 = vpop.f32.mrf.mxu0
      %v713 = vadd.f32 %v384, %v712
      %v714 = vpop.f32.mrf.mxu0
      %v715 = vadd.f32 %v384, %v714
      %v716 = vpop.f32.mrf.mxu0
      %v717 = vadd.f32 %v389, %v716
      %v718 = vpop.f32.mrf.mxu0
      %v719 = vadd.f32 %v389, %v718
      %720 = vmatprep.mubr.bf16.mxu0 0
      %721 = vmatmul.mubr.bf16.gmra.mxu0 %v474
      %v722 = vpop.f32.mrf.mxu0
      %v723 = vadd.f32 %v394, %v722
      %v724 = vpop.f32.mrf.mxu0
      %v725 = vadd.f32 %v394, %v724
      %v726 = vpop.f32.mrf.mxu0
      %v727 = vadd.f32 %v399, %v726
      %v728 = vpop.f32.mrf.mxu0
      %v729 = vadd.f32 %v399, %v728
      %730 = vmatprep.mubr.bf16.mxu0 0
      %731 = vmatmul.mubr.bf16.gmra.mxu0 %v475
      %v732 = vpop.f32.mrf.mxu0
      %v733 = vadd.f32 %v404, %v732
      %v734 = vpop.f32.mrf.mxu0
      %v735 = vadd.f32 %v404, %v734
      %v736 = vpop.f32.mrf.mxu0
      %v737 = vadd.f32 %v409, %v736
      %v738 = vpop.f32.mrf.mxu0
      %v739 = vadd.f32 %v409, %v738
      %740 = vmatprep.mubr.bf16.mxu0 0
      %741 = vmatmul.mubr.bf16.gmra.mxu0 %v476
      %v742 = vpop.f32.mrf.mxu0
      %v743 = vadd.f32 %v414, %v742
      %v744 = vpop.f32.mrf.mxu0
      %v745 = vadd.f32 %v414, %v744
      %v746 = vpop.f32.mrf.mxu0
      %v747 = vadd.f32 %v419, %v746
      %v748 = vpop.f32.mrf.mxu0
      %v749 = vadd.f32 %v419, %v748
      %750 = vmatprep.mubr.bf16.mxu0 0
      %751 = vmatmul.mubr.bf16.gmra.mxu0 %v477
      %v752 = vpop.f32.mrf.mxu0
      %v753 = vadd.f32 %v424, %v752
      %v754 = vpop.f32.mrf.mxu0
      %v755 = vadd.f32 %v424, %v754
      %v756 = vpop.f32.mrf.mxu0
      %v757 = vadd.f32 %v429, %v756
      %v758 = vpop.f32.mrf.mxu0
      %v759 = vadd.f32 %v429, %v758
      %760 = vmatprep.mubr.bf16.mxu0 0
      %761 = vmatmul.mubr.bf16.gmra.mxu0 %v478
      %v762 = vpop.f32.mrf.mxu0
      %v763 = vadd.f32 %v434, %v762
      %v764 = vpop.f32.mrf.mxu0
      %v765 = vadd.f32 %v434, %v764
      %v766 = vpop.f32.mrf.mxu0
      %v767 = vpop.f32.mrf.mxu0
      %768 = vdwg.mxu0
      %769 = vmatprep.subr.bf16.mxu0 %v615
      %770 = vmatpush1.bf16.msra.mxu0 %v614
      %771 = vmatprep.subr.bf16.mxu0 %v611
      %772 = vmatpush1.bf16.msra.mxu0 %v610
      %773 = vmatprep.subr.bf16.mxu0 %v607
      %774 = vmatpush1.bf16.msra.mxu0 %v606
      %775 = vmatprep.subr.bf16.mxu0 %v603
      %776 = vmatpush1.bf16.msra.mxu0 %v602
      %777 = vmatprep.subr.bf16.mxu0 %v599
      %778 = vmatpush1.bf16.msra.mxu0 %v598
      %779 = vmatprep.subr.bf16.mxu0 %v595
      %780 = vmatpush1.bf16.msra.mxu0 %v594
      %781 = vmatprep.subr.bf16.mxu0 %v591
      %782 = vmatpush1.bf16.msra.mxu0 %v590
      %783 = vmatprep.subr.bf16.mxu0 %v587
      %784 = vmatpush1.bf16.msra.mxu0 %v586
      %785 = vmatprep.subr.bf16.mxu0 0
      %786 = vmatpush2.bf16.msra.mxu0 0
      %787 = vmatprep.subr.bf16.mxu0 0
      %788 = vmatpush2.bf16.msra.mxu0 0
      %789 = vmatprep.subr.bf16.mxu0 0
      %790 = vmatpush2.bf16.msra.mxu0 0
      %791 = vmatprep.subr.bf16.mxu0 0
      %792 = vmatpush2.bf16.msra.mxu0 0
      %793 = vmatprep.subr.bf16.mxu0 0
      %794 = vmatpush2.bf16.msra.mxu0 0
      %795 = vmatprep.subr.bf16.mxu0 0
      %796 = vmatpush2.bf16.msra.mxu0 0
      %797 = vmatprep.subr.bf16.mxu0 0
      %798 = vmatpush2.bf16.msra.mxu0 0
      %799 = vmatprep.subr.bf16.mxu0 0
      %800 = vmatpush2.bf16.msra.mxu0 0
      %801 = vmatprep.mubr.bf16.mxu0 0
      %802 = vmatmul.mubr.bf16.gmra.mxu0 %v470
      %v803 = vpop.f32.mrf.mxu0
      %v804 = vadd.f32 %v354, %v803
      %v805 = vpop.f32.mrf.mxu0
      %v806 = vadd.f32 %v354, %v805
      %v807 = vpop.f32.mrf.mxu0
      %v808 = vadd.f32 %v359, %v807
      %v809 = vpop.f32.mrf.mxu0
      %v810 = vadd.f32 %v359, %v809
      %811 = vmatprep.mubr.bf16.mxu0 0
      %812 = vmatmul.mubr.bf16.gmra.mxu0 %v471
      %v813 = vpop.f32.mrf.mxu0
      %v814 = vadd.f32 %v364, %v813
      %v815 = vpop.f32.mrf.mxu0
      %v816 = vadd.f32 %v364, %v815
      %v817 = vpop.f32.mrf.mxu0
      %v818 = vadd.f32 %v369, %v817
      %v819 = vpop.f32.mrf.mxu0
      %v820 = vadd.f32 %v369, %v819
      %821 = vmatprep.mubr.bf16.mxu0 0
      %822 = vmatmul.mubr.bf16.gmra.mxu0 %v472
      %v823 = vpop.f32.mrf.mxu0
      %v824 = vadd.f32 %v374, %v823
      %v825 = vpop.f32.mrf.mxu0
      %v826 = vadd.f32 %v374, %v825
      %v827 = vpop.f32.mrf.mxu0
      %v828 = vadd.f32 %v379, %v827
      %v829 = vpop.f32.mrf.mxu0
      %v830 = vadd.f32 %v379, %v829
      %831 = vmatprep.mubr.bf16.mxu0 0
      %832 = vmatmul.mubr.bf16.gmra.mxu0 %v473
      %v833 = vpop.f32.mrf.mxu0
      %v834 = vadd.f32 %v384, %v833
      %v835 = vpop.f32.mrf.mxu0
      %v836 = vadd.f32 %v384, %v835
      %v837 = vpop.f32.mrf.mxu0
      %v838 = vadd.f32 %v389, %v837
      %v839 = vpop.f32.mrf.mxu0
      %v840 = vadd.f32 %v389, %v839
      %841 = vmatprep.mubr.bf16.mxu0 0
      %842 = vmatmul.mubr.bf16.gmra.mxu0 %v474
      %v843 = vpop.f32.mrf.mxu0
      %v844 = vadd.f32 %v394, %v843
      %v845 = vpop.f32.mrf.mxu0
      %v846 = vadd.f32 %v394, %v845
      %v847 = vpop.f32.mrf.mxu0
      %v848 = vadd.f32 %v399, %v847
      %v849 = vpop.f32.mrf.mxu0
      %v850 = vadd.f32 %v399, %v849
      %851 = vmatprep.mubr.bf16.mxu0 0
      %852 = vmatmul.mubr.bf16.gmra.mxu0 %v475
      %v853 = vpop.f32.mrf.mxu0
      %v854 = vadd.f32 %v404, %v853
      %v855 = vpop.f32.mrf.mxu0
      %v856 = vadd.f32 %v404, %v855
      %v857 = vpop.f32.mrf.mxu0
      %v858 = vadd.f32 %v409, %v857
      %v859 = vpop.f32.mrf.mxu0
      %v860 = vadd.f32 %v409, %v859
      %861 = vmatprep.mubr.bf16.mxu0 0
      %862 = vmatmul.mubr.bf16.gmra.mxu0 %v476
      %v863 = vpop.f32.mrf.mxu0
      %v864 = vadd.f32 %v414, %v863
      %v865 = vpop.f32.mrf.mxu0
      %v866 = vadd.f32 %v414, %v865
      %v867 = vpop.f32.mrf.mxu0
      %v868 = vadd.f32 %v419, %v867
      %v869 = vpop.f32.mrf.mxu0
      %v870 = vadd.f32 %v419, %v869
      %871 = vmatprep.mubr.bf16.mxu0 0
      %872 = vmatmul.mubr.bf16.gmra.mxu0 %v477
      %v873 = vpop.f32.mrf.mxu0
      %v874 = vadd.f32 %v424, %v873
      %v875 = vpop.f32.mrf.mxu0
      %v876 = vadd.f32 %v424, %v875
      %v877 = vpop.f32.mrf.mxu0
      %v878 = vadd.f32 %v429, %v877
      %v879 = vpop.f32.mrf.mxu0
      %v880 = vadd.f32 %v429, %v879
      %881 = vmatprep.mubr.bf16.mxu0 0
      %882 = vmatmul.mubr.bf16.gmra.mxu0 %v478
      %v883 = vpop.f32.mrf.mxu0
      %v884 = vadd.f32 %v434, %v883
      %v885 = vpop.f32.mrf.mxu0
      %v886 = vadd.f32 %v434, %v885
      %v887 = vpop.f32.mrf.mxu0
      %v888 = vpop.f32.mrf.mxu0
      %889 = vdwg.mxu0
      %v890 = vmax.f32 %v683, 0.0
      %v891 = vmax.f32 %v685, 0.0
      %v892 = vmax.f32 %v804, 0.0
      %v893 = vmax.f32 %v806, 0.0
      %v894 = vmax.f32 %v687, 0.0
      %v895 = vmax.f32 %v689, 0.0
      %v896 = vmax.f32 %v808, 0.0
      %v897 = vmax.f32 %v810, 0.0
      %v898 = vmax.f32 %v693, 0.0
      %v899 = vmax.f32 %v695, 0.0
      %v900 = vmax.f32 %v814, 0.0
      %v901 = vmax.f32 %v816, 0.0
      %v902 = vmax.f32 %v697, 0.0
      %v903 = vmax.f32 %v699, 0.0
      %v904 = vmax.f32 %v818, 0.0
      %v905 = vmax.f32 %v820, 0.0
      %v906 = vmax.f32 %v703, 0.0
      %v907 = vmax.f32 %v705, 0.0
      %v908 = vmax.f32 %v824, 0.0
      %v909 = vmax.f32 %v826, 0.0
      %v910 = vmax.f32 %v707, 0.0
      %v911 = vmax.f32 %v709, 0.0
      %v912 = vmax.f32 %v828, 0.0
      %v913 = vmax.f32 %v830, 0.0
      %v914 = vmax.f32 %v713, 0.0
      %v915 = vmax.f32 %v715, 0.0
      %v916 = vmax.f32 %v834, 0.0
      %v917 = vmax.f32 %v836, 0.0
      %v918 = vmax.f32 %v717, 0.0
      %v919 = vmax.f32 %v719, 0.0
      %v920 = vmax.f32 %v838, 0.0
      %v921 = vmax.f32 %v840, 0.0
      %v922 = vmax.f32 %v723, 0.0
      %v923 = vmax.f32 %v725, 0.0
      %v924 = vmax.f32 %v844, 0.0
      %v925 = vmax.f32 %v846, 0.0
      %v926 = vmax.f32 %v727, 0.0
      %v927 = vmax.f32 %v729, 0.0
      %v928 = vmax.f32 %v848, 0.0
      %v929 = vmax.f32 %v850, 0.0
      %v930 = vmax.f32 %v733, 0.0
      %v931 = vmax.f32 %v735, 0.0
      %v932 = vmax.f32 %v854, 0.0
      %v933 = vmax.f32 %v856, 0.0
      %v934 = vmax.f32 %v737, 0.0
      %v935 = vmax.f32 %v739, 0.0
      %v936 = vmax.f32 %v858, 0.0
      %v937 = vmax.f32 %v860, 0.0
      %v938 = vmax.f32 %v743, 0.0
      %v939 = vmax.f32 %v745, 0.0
      %v940 = vmax.f32 %v864, 0.0
      %v941 = vmax.f32 %v866, 0.0
      %v942 = vmax.f32 %v747, 0.0
      %v943 = vmax.f32 %v749, 0.0
      %v944 = vmax.f32 %v868, 0.0
      %v945 = vmax.f32 %v870, 0.0
      %v946 = vmax.f32 %v753, 0.0
      %v947 = vmax.f32 %v755, 0.0
      %v948 = vmax.f32 %v874, 0.0
      %v949 = vmax.f32 %v876, 0.0
      %v950 = vmax.f32 %v757, 0.0
      %v951 = vmax.f32 %v759, 0.0
      %v952 = vmax.f32 %v878, 0.0
      %v953 = vmax.f32 %v880, 0.0
      %v954 = vmax.f32 %v763, 0.0
      %v955 = vmax.f32 %v765, 0.0
      %v956 = vmax.f32 %v884, 0.0
      %v957 = vmax.f32 %v886, 0.0
      %v958 = vpack.c.bf16 %v894, %v890
      %v959 = vpack.c.bf16 %v895, %v891
      %v960 = vpack.c.bf16 %v896, %v892
      %v961 = vpack.c.bf16 %v897, %v893
      %v962 = vpack.c.bf16 %v902, %v898
      %v963 = vpack.c.bf16 %v903, %v899
      %v964 = vpack.c.bf16 %v904, %v900
      %v965 = vpack.c.bf16 %v905, %v901
      %v966 = vpack.c.bf16 %v910, %v906
      %v967 = vpack.c.bf16 %v911, %v907
      %v968 = vpack.c.bf16 %v912, %v908
      %v969 = vpack.c.bf16 %v913, %v909
      %v970 = vpack.c.bf16 %v918, %v914
      %v971 = vpack.c.bf16 %v919, %v915
      %v972 = vpack.c.bf16 %v920, %v916
      %v973 = vpack.c.bf16 %v921, %v917
      %v974 = vpack.c.bf16 %v926, %v922
      %v975 = vpack.c.bf16 %v927, %v923
      %v976 = vpack.c.bf16 %v928, %v924
      %v977 = vpack.c.bf16 %v929, %v925
      %v978 = vpack.c.bf16 %v934, %v930
      %v979 = vpack.c.bf16 %v935, %v931
      %v980 = vpack.c.bf16 %v936, %v932
      %v981 = vpack.c.bf16 %v937, %v933
      %v982 = vpack.c.bf16 %v942, %v938
      %v983 = vpack.c.bf16 %v943, %v939
      %v984 = vpack.c.bf16 %v944, %v940
      %v985 = vpack.c.bf16 %v945, %v941
      %v986 = vpack.c.bf16 %v950, %v946
      %v987 = vpack.c.bf16 %v951, %v947
      %v988 = vpack.c.bf16 %v952, %v948
      %v989 = vpack.c.bf16 %v953, %v949
      %v990 = vpack.c.bf16 %v954, %v954
      %v991 = vpack.c.bf16 %v955, %v955
      %v992 = vpack.c.bf16 %v956, %v956
      %v993 = vpack.c.bf16 %v957, %v957
      %v994 = vld [vmem:[%s3] sm:$0x3]
      %v995 = vld [vmem:[#allocation2] sm:$0x1]
      %997 = vset.pattern.permute.xlu0 0
      %998 = vperm.xlu0 %997, %v995
      %v999 = vpop.permute.xlu0 %998
      %v1001 = vlaneseq
      %v1002 = vshrl.u32 %v1001, 7
      %v1003 = vsub.s32 0, %v1002
      %v1004 = vrot.slane %v999, %v1003
      %v1007 = vunpack.c.l.s4 1966171168
      %v1008 = vunpack.c.0.s8 %v1007
      %v1009 = vlaneseq
      %v1010 = vshrl.u32 %v1009, 7
      %v1011 = vsub.s32 %v1008, %v1010
      %v1012 = vrot.slane %v994, %v1011
      %v1013 = vcombine.high %v1012, %v1012
      %v1015 = vunpack.c.l.s4 1966171168
      %v1016 = vunpack.c.0.s8 %v1015
      %v1017 = vlaneseq
      %v1018 = vshrl.u32 %v1017, 7
      %v1019 = vsub.s32 %v1016, %v1018
      %v1020 = vrot.slane %v1012, %v1019
      %v1022 = vunpack.c.l.s4 1966171168
      %v1023 = vunpack.c.0.s8 %v1022
      %v1024 = vlaneseq
      %v1025 = vshrl.u32 %v1024, 7
      %v1026 = vsub.s32 %v1023, %v1025
      %v1027 = vrot.slane %v1013, %v1026
      %vm1029 = vcmask 56320
      %v1031 = vsel %vm1029, %v1027, 0
      %vm1033 = vcmask 1042432
      %vm1034 = vcmask 1043456
      %v1035 = vsel %vm1033, 4294967295, 65535
      %v1036 = vsel %vm1034, %v1035, 0
      %v1038 = vand.u32 %v990, %v1036
      %v1041 = vand.u32 %v991, %v1036
      %v1044 = vand.u32 %v992, %v1036
      %v1047 = vand.u32 %v993, %v1036
      %1049 = vmatprep.subr.bf16.mxu0 %v987
      %1050 = vmatpush1.bf16.msra.mxu0 %v986
      %1051 = vmatprep.subr.bf16.mxu0 %v983
      %1052 = vmatpush1.bf16.msra.mxu0 %v982
      %1053 = vmatprep.subr.bf16.mxu0 %v979
      %1054 = vmatpush1.bf16.msra.mxu0 %v978
      %1055 = vmatprep.subr.bf16.mxu0 %v975
      %1056 = vmatpush1.bf16.msra.mxu0 %v974
      %1057 = vmatprep.subr.bf16.mxu0 %v971
      %1058 = vmatpush1.bf16.msra.mxu0 %v970
      %1059 = vmatprep.subr.bf16.mxu0 %v967
      %1060 = vmatpush1.bf16.msra.mxu0 %v966
      %1061 = vmatprep.subr.bf16.mxu0 %v963
      %1062 = vmatpush1.bf16.msra.mxu0 %v962
      %1063 = vmatprep.subr.bf16.mxu0 %v959
      %1064 = vmatpush1.bf16.msra.mxu0 %v958
      %1065 = vmatprep.subr.bf16.mxu0 0
      %1066 = vmatpush2.bf16.msra.mxu0 0
      %1067 = vmatprep.subr.bf16.mxu0 0
      %1068 = vmatpush2.bf16.msra.mxu0 0
      %1069 = vmatprep.subr.bf16.mxu0 0
      %1070 = vmatpush2.bf16.msra.mxu0 0
      %1071 = vmatprep.subr.bf16.mxu0 0
      %1072 = vmatpush2.bf16.msra.mxu0 0
      %1073 = vmatprep.subr.bf16.mxu0 0
      %1074 = vmatpush2.bf16.msra.mxu0 0
      %1075 = vmatprep.subr.bf16.mxu0 0
      %1076 = vmatpush2.bf16.msra.mxu0 0
      %1077 = vmatprep.subr.bf16.mxu0 0
      %1078 = vmatpush2.bf16.msra.mxu0 0
      %1079 = vmatprep.subr.bf16.mxu0 %v1041
      %1080 = vmatpush2.bf16.msra.mxu0 %v1038
      %1081 = vmatprep.mubr.bf16.mxu0 %v1031
      %1082 = vmatmul.mubr.bf16.gmra.mxu0 %v1020
      %v1083 = vpop.f32.mrf.mxu0
      %v1084 = vadd.f32 %v1004, %v1083
      %v1085 = vpop.f32.mrf.mxu0
      %v1086 = vadd.f32 %v1004, %v1085
      %v1087 = vpop.f32.mrf.mxu0
      %v1088 = vpop.f32.mrf.mxu0
      %1089 = vdwg.mxu0
      %1090 = vmatprep.subr.bf16.mxu0 %v989
      %1091 = vmatpush1.bf16.msra.mxu0 %v988
      %1092 = vmatprep.subr.bf16.mxu0 %v985
      %1093 = vmatpush1.bf16.msra.mxu0 %v984
      %1094 = vmatprep.subr.bf16.mxu0 %v981
      %1095 = vmatpush1.bf16.msra.mxu0 %v980
      %1096 = vmatprep.subr.bf16.mxu0 %v977
      %1097 = vmatpush1.bf16.msra.mxu0 %v976
      %1098 = vmatprep.subr.bf16.mxu0 %v973
      %1099 = vmatpush1.bf16.msra.mxu0 %v972
      %1100 = vmatprep.subr.bf16.mxu0 %v969
      %1101 = vmatpush1.bf16.msra.mxu0 %v968
      %1102 = vmatprep.subr.bf16.mxu0 %v965
      %1103 = vmatpush1.bf16.msra.mxu0 %v964
      %1104 = vmatprep.subr.bf16.mxu0 %v961
      %1105 = vmatpush1.bf16.msra.mxu0 %v960
      %1106 = vmatprep.subr.bf16.mxu0 0
      %1107 = vmatpush2.bf16.msra.mxu0 0
      %1108 = vmatprep.subr.bf16.mxu0 0
      %1109 = vmatpush2.bf16.msra.mxu0 0
      %1110 = vmatprep.subr.bf16.mxu0 0
      %1111 = vmatpush2.bf16.msra.mxu0 0
      %1112 = vmatprep.subr.bf16.mxu0 0
      %1113 = vmatpush2.bf16.msra.mxu0 0
      %1114 = vmatprep.subr.bf16.mxu0 0
      %1115 = vmatpush2.bf16.msra.mxu0 0
      %1116 = vmatprep.subr.bf16.mxu0 0
      %1117 = vmatpush2.bf16.msra.mxu0 0
      %1118 = vmatprep.subr.bf16.mxu0 0
      %1119 = vmatpush2.bf16.msra.mxu0 0
      %1120 = vmatprep.subr.bf16.mxu0 %v1047
      %1121 = vmatpush2.bf16.msra.mxu0 %v1044
      %1122 = vmatprep.mubr.bf16.mxu0 %v1031
      %1123 = vmatmul.mubr.bf16.gmra.mxu0 %v1020
      %v1124 = vpop.f32.mrf.mxu0
      %v1125 = vadd.f32 %v1004, %v1124
      %v1126 = vpop.f32.mrf.mxu0
      %v1127 = vadd.f32 %v1004, %v1126
      %v1128 = vpop.f32.mrf.mxu0
      %v1129 = vpop.f32.mrf.mxu0
      %1130 = vdwg.mxu0
      %v1131 = vxor.u32 %v1084, 2147483648
      %v1132 = vxor.u32 %v1086, 2147483648
      %v1133 = vxor.u32 %v1125, 2147483648
      %v1134 = vxor.u32 %v1127, 2147483648
      %v1135 = vmul.f32 %v1131, 1.442695
      %v1136 = vpow.pop %v1135
      %v1137 = vmul.f32 %v1132, 1.442695
      %v1138 = vpow.pop %v1137
      %v1139 = vmul.f32 %v1133, 1.442695
      %v1140 = vpow.pop %v1139
      %v1141 = vmul.f32 %v1134, 1.442695
      %v1142 = vpow.pop %v1141
      %v1143 = vadd.f32 %v1136, 1.0
      %v1144 = vadd.f32 %v1138, 1.0
      %v1145 = vadd.f32 %v1140, 1.0
      %v1146 = vadd.f32 %v1142, 1.0
      %v1147 = vrcp.pop %v1143
      %v1148 = vmul.f32 1.0, %v1147
      %v1149 = vrcp.pop %v1144
      %v1150 = vmul.f32 1.0, %v1149
      %v1151 = vrcp.pop %v1145
      %v1152 = vmul.f32 1.0, %v1151
      %v1153 = vrcp.pop %v1146
      %v1154 = vmul.f32 1.0, %v1153
      %v1159 = vcombine.low %v1148, %v1150
      %v1160 = vcombine.low %v1152, %v1154
      %v1162 = vunpack.c.l.s4 1966171168
      %v1163 = vunpack.c.0.s8 %v1162
      %v1164 = vlaneseq
      %v1165 = vshrl.u32 %v1164, 7
      %v1166 = vsub.s32 %v1163, %v1165
      %v1167 = vrot.slane %v1159, %v1166
      %v1169 = vunpack.c.l.s4 1966171168
      %v1170 = vunpack.c.0.s8 %v1169
      %v1171 = vlaneseq
      %v1172 = vshrl.u32 %v1171, 7
      %v1173 = vsub.s32 %v1170, %v1172
      %v1174 = vrot.slane %v1160, %v1173
      %v1175 = vcombine.low %v1167, %v1174
      %v1177 = vunpack.c.l.s4 1966171168
      %v1178 = vunpack.c.0.s8 %v1177
      %v1179 = vlaneseq
      %v1180 = vshrl.u32 %v1179, 7
      %v1181 = vsub.s32 %v1178, %v1180
      %v1182 = vrot.slane %v1175, %v1181
      %v1184 = vlaneseq
      %vm1185 = vcmp.ge.s32.totalorder %v1184, 0
      %vm1186 = vcmp.lt.s32.totalorder %v1184, 512
      %vm1187 = vmand %vm1185, %vm1186
      %1188 = vst.msk [vmem:[%s282] sm:$0xf] %vm1187, %v1182
      %s1189 = smul.u32 4, %s23
      %p1190 = scmp.lt.s32.totalorder %s22, 1
      %s1191 = scalar_select %p1190, %s22, 1
      %p1192 = scmp.lt.s32.totalorder %s1189, 3
      %s1193 = scalar_select %p1192, %s1189, 3
      %s1194 = smul.addr %s1191, 4
      %s1195 = sadd.s32 %s1193, %s1194
      %s1196 = scalar_lea.vmem %s5, %s1195
      // Predicated region
      $region41: #{refer_model_forward.3} parent=39 // pred_check
        %p1197 = pneg %p167
      $region42: #{refer_model_forward.3} parent=39 // pred_check_branch
        %1199 = sbr.rel (%p1197) target = $region44
      $region43: #{refer_model_forward.3} parent=39 // pred_region
        %s1200 = smul.u32 4, %s23
      $region44: #{refer_model_forward.3} parent=39 // pred_fallthru
        _
    $region40: #{refer_model_forward.3} parent=5 // pred_fallthru
      _
    %p1201 = scmp.le.s32.totalorder 2, %s13
    // Predicated region
    $region45: #{refer_model_forward.3} parent=5 // pred_check
      %p1202 = pneg %p1201
    $region46: #{refer_model_forward.3} parent=5 // pred_check_branch
      %1204 = sbr.rel (%p1202) target = $region48
    $region47: #{refer_model_forward.3} parent=5 // pred_region
      %s1205 = ssub.s32 %s13, 2
      // Predicated region
      $region49: #{refer_model_forward.3} parent=47 // pred_check
        %p1206 = pneg %p173
      $region50: #{refer_model_forward.3} parent=47 // pred_check_branch
        %1208 = sbr.rel (%p1206) target = $region52
      $region51: #{refer_model_forward.3} parent=47 // pred_region
        %s1209 = smul.u32 4, %s25
        %p1210 = scmp.lt.s32.totalorder %s24, 1
        %s1211 = scalar_select %p1210, %s24, 1
        %p1212 = scmp.lt.s32.totalorder %s1209, 3
        %s1213 = scalar_select %p1212, %s1209, 3
        %s1214 = smul.addr %s1211, 4
        %s1215 = sadd.s32 %s1213, %s1214
        %s1216 = scalar_lea.vmem %s5, %s1215
      $region52: #{refer_model_forward.3} parent=47 // pred_fallthru
        _
    $region48: #{refer_model_forward.3} parent=5 // pred_fallthru
      _
  $region6: #{refer_model_forward.3} parent=0 // loop_footer
    %s17 = sadd.s32 1, %s13
  $region7: #{refer_model_forward.3} parent=0 // loop_footer_branch
    %12 = sbr.rel target = $region3
  $region8: #{refer_model_forward.3} parent=0 // loop_exit
    _

// kernel: refer_model_forward.2
$region0: #{refer_model_forward.2}
  #allocation0 [shape = 'u32[]', space=smem, size = 0x4, offset = 0x4, fixed_abs, tag = 'smem constant byte address 0x4 - core index']
  #allocation1 [shape = 'u32[144,128]{1,0:T(1,128)}', space=vmem, size = 0x12000, scoped, tag = 'internal scratch']
  %s0 = inlined_call_operand.vmem [shape: bf16[2,16,1024], index: 0, kind: input, shape index: {}]
  %s1 = inlined_call_operand.vmem [shape: bf16[1024,512], index: 1, kind: input, shape index: {}]
  %s2 = inlined_call_operand.vmem [shape: f32[1,512], index: 2, kind: input, shape index: {}]
  %s3 = inlined_call_operand.vmem [shape: bf16[512,256], index: 3, kind: input, shape index: {}]
  %s4 = inlined_call_operand.vmem [shape: f32[1,256], index: 4, kind: input, shape index: {}]
  %s5 = inlined_call_operand.vmem [shape: bf16[256,128], index: 5, kind: input, shape index: {}]
  %s6 = inlined_call_operand.vmem [shape: f32[1,128], index: 6, kind: input, shape index: {}]
  %s7 = inlined_call_operand.vmem [shape: bf16[128,6], index: 7, kind: input, shape index: {}]
  %s8 = inlined_call_operand.vmem [shape: f32[1,6], index: 8, kind: input, shape index: {}]
  %s9 = inlined_call_operand.vmem [shape: f32[2,16,6], index: 9, kind: output, shape index: {}]
  %s10 = sld [smem:[#allocation0]]
  $region69: #{refer_model_forward.2} parent=0
    _
  %s12 = ssub.s32 1, %s10
  %s13 = scalar_select 0, %s12, %s10
  loop: start=0, step=1, limit=4
  $region2: #{refer_model_forward.2} parent=0 // loop_pre_header
    _
  $region3: #{refer_model_forward.2} parent=0 // loop_header
    %s15 = sphi 0, %s19
    %p16 = scmp.ge.s32.totalorder %s15, 4
    %s25 = sphi 0, %s27
    %s28 = sphi 0, %s25
    %s29 = sphi 0, %s28
    %s45 = sphi 0, %s29
    %s49 = sphi 0, %s49
    %s51 = sphi 0, %s49
    %s52 = sphi 0, %s51
    %s66 = sphi 0, %s52
    %s70 = sphi 0, %s70
    %s72 = sphi 0, %s70
    %s73 = sphi 0, %s72
    %s87 = sphi 0, %s73
    %s91 = sphi 0, %s91
    %s93 = sphi 0, %s91
    %s94 = sphi 0, %s93
    %s108 = sphi 0, %s94
    %s112 = sphi 0, %s112
    %s114 = sphi 0, %s112
    %s115 = sphi 0, %s114
    %s129 = sphi 0, %s115
    %s133 = sphi 0, %s133
    %s135 = sphi 0, %s133
    %s136 = sphi 0, %s135
    %s150 = sphi 0, %s136
    %s154 = sphi 0, %s154
    %s156 = sphi 0, %s154
    %s157 = sphi 0, %s156
    %s171 = sphi 0, %s157
    %s175 = sphi 0, %s175
    %s177 = sphi 0, %s175
    %s178 = sphi 0, %s177
    %s192 = sphi 0, %s178
    %s196 = sphi 0, %s196
    %s198 = sphi 0, %s196
    %s199 = sphi 0, %s198
    %s213 = sphi 0, %s199
    %s219 = sphi 0, %s221
    %s222 = sphi 0, %s219
    %s223 = sphi 0, %s222
    %s239 = sphi 0, %s223
  $region4: #{refer_model_forward.2} parent=0 // loop_header_branch
    %18 = sbr.rel (%p16) target = $region8
  $region5: #{refer_model_forward.2} parent=0 // loop_body
    %s20 = ssub.s32 %s15, 1
    %s21 = ssub.s32 %s15, 2
    %s22 = sadd.s32 %s15, 1
    %s23 = ssub.s32 %s15, %s22
    %p24 = scmp.eq.s32.totalorder %s23, 0
    %s26 = sadd.s32 %s25, 1
    %s27 = scalar_select %p24, %s25, %s26
    %p30 = pneg %p24
    %p31 = scmp.eq.s32.totalorder %s15, 1
    %p32 = por %p30, %p31
    %p33 = scmp.ne.s32.totalorder %s25, %s28
    %p34 = scmp.eq.s32.totalorder %s15, 0
    %p35 = por %p33, %p34
    %p36 = scmp.ne.s32.totalorder %s25, %s28
    %p37 = scmp.eq.s32.totalorder %s20, 1
    %p38 = por %p36, %p37
    %p39 = scmp.ne.s32.totalorder %s28, %s29
    %p40 = scmp.eq.s32.totalorder %s20, 0
    %p41 = por %p39, %p40
    %p42 = scmp.ne.s32.totalorder %s28, %s29
    %p43 = scmp.eq.s32.totalorder %s21, 1
    %p44 = por %p42, %p43
    %p46 = scmp.ne.s32.totalorder %s29, %s45
    %p47 = scmp.eq.s32.totalorder %s21, 0
    %p48 = por %p46, %p47
    %s50 = sadd.s32 %s49, 1
    %p53 = scmp.eq.s32.totalorder %s15, 1
    %p54 = scmp.ne.s32.totalorder %s49, %s51
    %p55 = scmp.eq.s32.totalorder %s15, 0
    %p56 = por %p54, %p55
    %p57 = scmp.ne.s32.totalorder %s49, %s51
    %p58 = scmp.eq.s32.totalorder %s20, 1
    %p59 = por %p57, %p58
    %p60 = scmp.ne.s32.totalorder %s51, %s52
    %p61 = scmp.eq.s32.totalorder %s20, 0
    %p62 = por %p60, %p61
    %p63 = scmp.ne.s32.totalorder %s51, %s52
    %p64 = scmp.eq.s32.totalorder %s21, 1
    %p65 = por %p63, %p64
    %p67 = scmp.ne.s32.totalorder %s52, %s66
    %p68 = scmp.eq.s32.totalorder %s21, 0
    %p69 = por %p67, %p68
    %s71 = sadd.s32 %s70, 1
    %p74 = scmp.eq.s32.totalorder %s15, 1
    %p75 = scmp.ne.s32.totalorder %s70, %s72
    %p76 = scmp.eq.s32.totalorder %s15, 0
    %p77 = por %p75, %p76
    %p78 = scmp.ne.s32.totalorder %s70, %s72
    %p79 = scmp.eq.s32.totalorder %s20, 1
    %p80 = por %p78, %p79
    %p81 = scmp.ne.s32.totalorder %s72, %s73
    %p82 = scmp.eq.s32.totalorder %s20, 0
    %p83 = por %p81, %p82
    %p84 = scmp.ne.s32.totalorder %s72, %s73
    %p85 = scmp.eq.s32.totalorder %s21, 1
    %p86 = por %p84, %p85
    %p88 = scmp.ne.s32.totalorder %s73, %s87
    %p89 = scmp.eq.s32.totalorder %s21, 0
    %p90 = por %p88, %p89
    %s92 = sadd.s32 %s91, 1
    %p95 = scmp.eq.s32.totalorder %s15, 1
    %p96 = scmp.ne.s32.totalorder %s91, %s93
    %p97 = scmp.eq.s32.totalorder %s15, 0
    %p98 = por %p96, %p97
    %p99 = scmp.ne.s32.totalorder %s91, %s93
    %p100 = scmp.eq.s32.totalorder %s20, 1
    %p101 = por %p99, %p100
    %p102 = scmp.ne.s32.totalorder %s93, %s94
    %p103 = scmp.eq.s32.totalorder %s20, 0
    %p104 = por %p102, %p103
    %p105 = scmp.ne.s32.totalorder %s93, %s94
    %p106 = scmp.eq.s32.totalorder %s21, 1
    %p107 = por %p105, %p106
    %p109 = scmp.ne.s32.totalorder %s94, %s108
    %p110 = scmp.eq.s32.totalorder %s21, 0
    %p111 = por %p109, %p110
    %s113 = sadd.s32 %s112, 1
    %p116 = scmp.eq.s32.totalorder %s15, 1
    %p117 = scmp.ne.s32.totalorder %s112, %s114
    %p118 = scmp.eq.s32.totalorder %s15, 0
    %p119 = por %p117, %p118
    %p120 = scmp.ne.s32.totalorder %s112, %s114
    %p121 = scmp.eq.s32.totalorder %s20, 1
    %p122 = por %p120, %p121
    %p123 = scmp.ne.s32.totalorder %s114, %s115
    %p124 = scmp.eq.s32.totalorder %s20, 0
    %p125 = por %p123, %p124
    %p126 = scmp.ne.s32.totalorder %s114, %s115
    %p127 = scmp.eq.s32.totalorder %s21, 1
    %p128 = por %p126, %p127
    %p130 = scmp.ne.s32.totalorder %s115, %s129
    %p131 = scmp.eq.s32.totalorder %s21, 0
    %p132 = por %p130, %p131
    %s134 = sadd.s32 %s133, 1
    %p137 = scmp.eq.s32.totalorder %s15, 1
    %p138 = scmp.ne.s32.totalorder %s133, %s135
    %p139 = scmp.eq.s32.totalorder %s15, 0
    %p140 = por %p138, %p139
    %p141 = scmp.ne.s32.totalorder %s133, %s135
    %p142 = scmp.eq.s32.totalorder %s20, 1
    %p143 = por %p141, %p142
    %p144 = scmp.ne.s32.totalorder %s135, %s136
    %p145 = scmp.eq.s32.totalorder %s20, 0
    %p146 = por %p144, %p145
    %p147 = scmp.ne.s32.totalorder %s135, %s136
    %p148 = scmp.eq.s32.totalorder %s21, 1
    %p149 = por %p147, %p148
    %p151 = scmp.ne.s32.totalorder %s136, %s150
    %p152 = scmp.eq.s32.totalorder %s21, 0
    %p153 = por %p151, %p152
    %s155 = sadd.s32 %s154, 1
    %p158 = scmp.eq.s32.totalorder %s15, 1
    %p159 = scmp.ne.s32.totalorder %s154, %s156
    %p160 = scmp.eq.s32.totalorder %s15, 0
    %p161 = por %p159, %p160
    %p162 = scmp.ne.s32.totalorder %s154, %s156
    %p163 = scmp.eq.s32.totalorder %s20, 1
    %p164 = por %p162, %p163
    %p165 = scmp.ne.s32.totalorder %s156, %s157
    %p166 = scmp.eq.s32.totalorder %s20, 0
    %p167 = por %p165, %p166
    %p168 = scmp.ne.s32.totalorder %s156, %s157
    %p169 = scmp.eq.s32.totalorder %s21, 1
    %p170 = por %p168, %p169
    %p172 = scmp.ne.s32.totalorder %s157, %s171
    %p173 = scmp.eq.s32.totalorder %s21, 0
    %p174 = por %p172, %p173
    %s176 = sadd.s32 %s175, 1
    %p179 = scmp.eq.s32.totalorder %s15, 1
    %p180 = scmp.ne.s32.totalorder %s175, %s177
    %p181 = scmp.eq.s32.totalorder %s15, 0
    %p182 = por %p180, %p181
    %p183 = scmp.ne.s32.totalorder %s175, %s177
    %p184 = scmp.eq.s32.totalorder %s20, 1
    %p185 = por %p183, %p184
    %p186 = scmp.ne.s32.totalorder %s177, %s178
    %p187 = scmp.eq.s32.totalorder %s20, 0
    %p188 = por %p186, %p187
    %p189 = scmp.ne.s32.totalorder %s177, %s178
    %p190 = scmp.eq.s32.totalorder %s21, 1
    %p191 = por %p189, %p190
    %p193 = scmp.ne.s32.totalorder %s178, %s192
    %p194 = scmp.eq.s32.totalorder %s21, 0
    %p195 = por %p193, %p194
    %s197 = sadd.s32 %s196, 1
    %p200 = scmp.eq.s32.totalorder %s15, 1
    %p201 = scmp.ne.s32.totalorder %s196, %s198
    %p202 = scmp.eq.s32.totalorder %s15, 0
    %p203 = por %p201, %p202
    %p204 = scmp.ne.s32.totalorder %s196, %s198
    %p205 = scmp.eq.s32.totalorder %s20, 1
    %p206 = por %p204, %p205
    %p207 = scmp.ne.s32.totalorder %s198, %s199
    %p208 = scmp.eq.s32.totalorder %s20, 0
    %p209 = por %p207, %p208
    %p210 = scmp.ne.s32.totalorder %s198, %s199
    %p211 = scmp.eq.s32.totalorder %s21, 1
    %p212 = por %p210, %p211
    %p214 = scmp.ne.s32.totalorder %s199, %s213
    %p215 = scmp.eq.s32.totalorder %s21, 0
    %p216 = por %p214, %p215
    %s217 = ssub.s32 %s15, %s22
    %p218 = scmp.eq.s32.totalorder %s217, 0
    %s220 = sadd.s32 %s219, 1
    %s221 = scalar_select %p218, %s219, %s220
    %p224 = pneg %p218
    %p225 = scmp.eq.s32.totalorder %s15, 1
    %p226 = por %p224, %p225
    %p227 = scmp.ne.s32.totalorder %s219, %s222
    %p228 = scmp.eq.s32.totalorder %s15, 0
    %p229 = por %p227, %p228
    %p230 = scmp.ne.s32.totalorder %s219, %s222
    %p231 = scmp.eq.s32.totalorder %s20, 1
    %p232 = por %p230, %p231
    %p233 = scmp.ne.s32.totalorder %s222, %s223
    %p234 = scmp.eq.s32.totalorder %s20, 0
    %p235 = por %p233, %p234
    %p236 = scmp.ne.s32.totalorder %s222, %s223
    %p237 = scmp.eq.s32.totalorder %s21, 1
    %p238 = por %p236, %p237
    %p240 = scmp.ne.s32.totalorder %s223, %s239
    %p241 = scmp.eq.s32.totalorder %s21, 0
    %p242 = por %p240, %p241
    %p243 = scmp.le.s32.totalorder 1, %s15
    %p244 = scmp.lt.s32.totalorder %s15, 3
    %p245 = pnand %p243, %p244
    %p246 = pneg %p245
    // Predicated region
    $region9: #{refer_model_forward.2} parent=5 // pred_check
      _
    $region10: #{refer_model_forward.2} parent=5 // pred_check_branch
      %248 = sbr.rel (%p245) target = $region12
    $region11: #{refer_model_forward.2} parent=5 // pred_region
      %s249 = ssub.s32 %s15, 1
      // Predicated region
      $region13: #{refer_model_forward.2} parent=11 // pred_check
        %p250 = pneg %p62
      $region14: #{refer_model_forward.2} parent=11 // pred_check_branch
        %252 = sbr.rel (%p250) target = $region16
      $region15: #{refer_model_forward.2} parent=11 // pred_region
        _
      $region16: #{refer_model_forward.2} parent=11 // pred_fallthru
        _
      // Predicated region
      $region17: #{refer_model_forward.2} parent=11 // pred_check
        %p253 = pneg %p83
      $region18: #{refer_model_forward.2} parent=11 // pred_check_branch
        %255 = sbr.rel (%p253) target = $region20
      $region19: #{refer_model_forward.2} parent=11 // pred_region
        _
      $region20: #{refer_model_forward.2} parent=11 // pred_fallthru
        _
      // Predicated region
      $region21: #{refer_model_forward.2} parent=11 // pred_check
        %p256 = pneg %p104
      $region22: #{refer_model_forward.2} parent=11 // pred_check_branch
        %258 = sbr.rel (%p256) target = $region24
      $region23: #{refer_model_forward.2} parent=11 // pred_region
        _
      $region24: #{refer_model_forward.2} parent=11 // pred_fallthru
        _
      // Predicated region
      $region25: #{refer_model_forward.2} parent=11 // pred_check
        %p259 = pneg %p125
      $region26: #{refer_model_forward.2} parent=11 // pred_check_branch
        %261 = sbr.rel (%p259) target = $region28
      $region27: #{refer_model_forward.2} parent=11 // pred_region
        _
      $region28: #{refer_model_forward.2} parent=11 // pred_fallthru
        _
      // Predicated region
      $region29: #{refer_model_forward.2} parent=11 // pred_check
        %p262 = pneg %p146
      $region30: #{refer_model_forward.2} parent=11 // pred_check_branch
        %264 = sbr.rel (%p262) target = $region32
      $region31: #{refer_model_forward.2} parent=11 // pred_region
        _
      $region32: #{refer_model_forward.2} parent=11 // pred_fallthru
        _
      // Predicated region
      $region33: #{refer_model_forward.2} parent=11 // pred_check
        %p265 = pneg %p167
      $region34: #{refer_model_forward.2} parent=11 // pred_check_branch
        %267 = sbr.rel (%p265) target = $region36
      $region35: #{refer_model_forward.2} parent=11 // pred_region
        _
      $region36: #{refer_model_forward.2} parent=11 // pred_fallthru
        _
      // Predicated region
      $region37: #{refer_model_forward.2} parent=11 // pred_check
        %p268 = pneg %p188
      $region38: #{refer_model_forward.2} parent=11 // pred_check_branch
        %270 = sbr.rel (%p268) target = $region40
      $region39: #{refer_model_forward.2} parent=11 // pred_region
        _
      $region40: #{refer_model_forward.2} parent=11 // pred_fallthru
        _
      // Predicated region
      $region41: #{refer_model_forward.2} parent=11 // pred_check
        %p271 = pneg %p209
      $region42: #{refer_model_forward.2} parent=11 // pred_check_branch
        %273 = sbr.rel (%p271) target = $region44
      $region43: #{refer_model_forward.2} parent=11 // pred_region
        _
      $region44: #{refer_model_forward.2} parent=11 // pred_fallthru
        _
    $region12: #{refer_model_forward.2} parent=5 // pred_fallthru
      _
    %p274 = scmp.lt.s32.totalorder %s15, 2
    // Predicated region
    $region45: #{refer_model_forward.2} parent=5 // pred_check
      %p275 = pneg %p274
    $region46: #{refer_model_forward.2} parent=5 // pred_check_branch
      %277 = sbr.rel (%p275) target = $region48
    $region47: #{refer_model_forward.2} parent=5 // pred_region
      // Predicated region
      $region49: #{refer_model_forward.2} parent=47 // pred_check
        %p278 = pneg %p35
      $region50: #{refer_model_forward.2} parent=47 // pred_check_branch
        %280 = sbr.rel (%p278) target = $region52
      $region51: #{refer_model_forward.2} parent=47 // pred_region
        %p281 = scmp.lt.s32.totalorder %s15, 1
        %s282 = scalar_select %p281, %s15, 1
        %s283 = smul.addr %s282, 16
        %s284 = smul.addr %s283, 4
        %s285 = scalar_lea.vmem %s0, %s284
      $region52: #{refer_model_forward.2} parent=47 // pred_fallthru
        _
    $region48: #{refer_model_forward.2} parent=5 // pred_fallthru
      _
    %p286 = scmp.le.s32.totalorder 1, %s15
    %p287 = scmp.lt.s32.totalorder %s15, 3
    %p288 = pnand %p286, %p287
    %p289 = pneg %p288
    // Predicated region
    $region53: #{refer_model_forward.2} parent=5 // pred_check
      _
    $region54: #{refer_model_forward.2} parent=5 // pred_check_branch
      %291 = sbr.rel (%p288) target = $region56
    $region55: #{refer_model_forward.2} parent=5 // pred_region
      %s292 = ssub.s32 %s15, 1
      %p293 = scmp.lt.s32.totalorder %s20, 1
      %s294 = scalar_select %p293, %s20, 1
      %s295 = smul.addr %s294, 16
      %s296 = smul.addr %s295, 4
      %s297 = scalar_lea.vmem %s0, %s296
      %p298 = pneg %p41
      %p299 = pneg %p38
      %p300 = pneg %p62
      %p301 = pneg %p59
      %p302 = pneg %p83
      %p303 = pneg %p80
      %p304 = pneg %p104
      %p305 = pneg %p101
      %p306 = pneg %p125
      %p307 = pneg %p122
      %p308 = pneg %p146
      %p309 = pneg %p143
      %p310 = pneg %p167
      %p311 = pneg %p164
      %p312 = pneg %p188
      %p313 = pneg %p185
      %p314 = pneg %p209
      %p315 = pneg %p206
      %p316 = pneg %p235
      %p317 = pneg %p232
      %p318 = scmp.lt.s32.totalorder %s20, 1
      %s319 = scalar_select %p318, %s20, 1
      %s320 = smul.addr %s319, 2
      %s321 = smul.addr %s320, 8
      %s322 = scalar_lea.vmem %s9, %s321
      %p323 = scmp.lt.s32.totalorder %s20, 1
      %s324 = scalar_select %p323, %s20, 1
      %s325 = smul.addr %s324, 16
      %s326 = smul.addr %s325, 4
      %s327 = scalar_lea.vmem %s0, %s326
      %p328 = scmp.lt.s32.totalorder %s20, 1
      %s329 = scalar_select %p328, %s20, 1
      %s330 = smul.addr %s329, 2
      %s331 = smul.addr %s330, 8
      %s332 = scalar_lea.vmem %s9, %s331
      %v334 = vld [vmem:[%s327] sm:$0xff]
      %v335 = vld [vmem:[%s327 + $0x8] sm:$0xff]
      %v336 = vld [vmem:[%s327 + $0x10] sm:$0xff]
      %v337 = vld [vmem:[%s327 + $0x18] sm:$0xff]
      %v338 = vld [vmem:[%s327 + $0x20] sm:$0xff]
      %v339 = vld [vmem:[%s327 + $0x28] sm:$0xff]
      %v340 = vld [vmem:[%s327 + $0x30] sm:$0xff]
      %v341 = vld [vmem:[%s327 + $0x38] sm:$0xff]
      %v342 = vld [vmem:[%s1] sm:$0xff]
      %v343 = vld [vmem:[%s1 + $0x8] sm:$0xff]
      %v344 = vld [vmem:[%s1 + $0x10] sm:$0xff]
      %v345 = vld [vmem:[%s1 + $0x18] sm:$0xff]
      %v346 = vld [vmem:[%s1 + $0x20] sm:$0xff]
      %v347 = vld [vmem:[%s1 + $0x28] sm:$0xff]
      %v348 = vld [vmem:[%s1 + $0x30] sm:$0xff]
      %v349 = vld [vmem:[%s1 + $0x38] sm:$0xff]
      %v350 = vld [vmem:[%s1 + $0x40] sm:$0xff]
      %v351 = vld [vmem:[%s1 + $0x48] sm:$0xff]
      %v352 = vld [vmem:[%s1 + $0x50] sm:$0xff]
      %v353 = vld [vmem:[%s1 + $0x58] sm:$0xff]
      %v354 = vld [vmem:[%s1 + $0x60] sm:$0xff]
      %v355 = vld [vmem:[%s1 + $0x68] sm:$0xff]
      %v356 = vld [vmem:[%s1 + $0x70] sm:$0xff]
      %v357 = vld [vmem:[%s1 + $0x78] sm:$0xff]
      %v358 = vld [vmem:[%s1 + $0x80] sm:$0xff]
      %v359 = vld [vmem:[%s1 + $0x88] sm:$0xff]
      %v360 = vld [vmem:[%s1 + $0x90] sm:$0xff]
      %v361 = vld [vmem:[%s1 + $0x98] sm:$0xff]
      %v362 = vld [vmem:[%s1 + $0xa0] sm:$0xff]
      %v363 = vld [vmem:[%s1 + $0xa8] sm:$0xff]
      %v364 = vld [vmem:[%s1 + $0xb0] sm:$0xff]
      %v365 = vld [vmem:[%s1 + $0xb8] sm:$0xff]
      %v366 = vld [vmem:[%s1 + $0xc0] sm:$0xff]
      %v367 = vld [vmem:[%s1 + $0xc8] sm:$0xff]
      %v368 = vld [vmem:[%s1 + $0xd0] sm:$0xff]
      %v369 = vld [vmem:[%s1 + $0xd8] sm:$0xff]
      %v370 = vld [vmem:[%s1 + $0xe0] sm:$0xff]
      %v371 = vld [vmem:[%s1 + $0xe8] sm:$0xff]
      %v372 = vld [vmem:[%s1 + $0xf0] sm:$0xff]
      %v373 = vld [vmem:[%s1 + $0xf8] sm:$0xff]
      %v374 = vld [vmem:[%s1 + $0x100] sm:$0xff]
      %v375 = vld [vmem:[%s1 + $0x108] sm:$0xff]
      %v376 = vld [vmem:[%s1 + $0x110] sm:$0xff]
      %v377 = vld [vmem:[%s1 + $0x118] sm:$0xff]
      %v378 = vld [vmem:[%s1 + $0x120] sm:$0xff]
      %v379 = vld [vmem:[%s1 + $0x128] sm:$0xff]
      %v380 = vld [vmem:[%s1 + $0x130] sm:$0xff]
      %v381 = vld [vmem:[%s1 + $0x138] sm:$0xff]
      %v382 = vld [vmem:[%s1 + $0x140] sm:$0xff]
      %v383 = vld [vmem:[%s1 + $0x148] sm:$0xff]
      %v384 = vld [vmem:[%s1 + $0x150] sm:$0xff]
      %v385 = vld [vmem:[%s1 + $0x158] sm:$0xff]
      %v386 = vld [vmem:[%s1 + $0x160] sm:$0xff]
      %v387 = vld [vmem:[%s1 + $0x168] sm:$0xff]
      %v388 = vld [vmem:[%s1 + $0x170] sm:$0xff]
      %v389 = vld [vmem:[%s1 + $0x178] sm:$0xff]
      %v390 = vld [vmem:[%s1 + $0x180] sm:$0xff]
      %v391 = vld [vmem:[%s1 + $0x188] sm:$0xff]
      %v392 = vld [vmem:[%s1 + $0x190] sm:$0xff]
      %v393 = vld [vmem:[%s1 + $0x198] sm:$0xff]
      %v394 = vld [vmem:[%s1 + $0x1a0] sm:$0xff]
      %v395 = vld [vmem:[%s1 + $0x1a8] sm:$0xff]
      %v396 = vld [vmem:[%s1 + $0x1b0] sm:$0xff]
      %v397 = vld [vmem:[%s1 + $0x1b8] sm:$0xff]
      %v398 = vld [vmem:[%s1 + $0x1c0] sm:$0xff]
      %v399 = vld [vmem:[%s1 + $0x1c8] sm:$0xff]
      %v400 = vld [vmem:[%s1 + $0x1d0] sm:$0xff]
      %v401 = vld [vmem:[%s1 + $0x1d8] sm:$0xff]
      %v402 = vld [vmem:[%s1 + $0x1e0] sm:$0xff]
      %v403 = vld [vmem:[%s1 + $0x1e8] sm:$0xff]
      %v404 = vld [vmem:[%s1 + $0x1f0] sm:$0xff]
      %v405 = vld [vmem:[%s1 + $0x1f8] sm:$0xff]
      %v406 = vld [vmem:[%s1 + $0x200] sm:$0xff]
      %v407 = vld [vmem:[%s1 + $0x208] sm:$0xff]
      %v408 = vld [vmem:[%s1 + $0x210] sm:$0xff]
      %v409 = vld [vmem:[%s1 + $0x218] sm:$0xff]
      %v410 = vld [vmem:[%s1 + $0x220] sm:$0xff]
      %v411 = vld [vmem:[%s1 + $0x228] sm:$0xff]
      %v412 = vld [vmem:[%s1 + $0x230] sm:$0xff]
      %v413 = vld [vmem:[%s1 + $0x238] sm:$0xff]
      %v414 = vld [vmem:[%s1 + $0x240] sm:$0xff]
      %v415 = vld [vmem:[%s1 + $0x248] sm:$0xff]
      %v416 = vld [vmem:[%s1 + $0x250] sm:$0xff]
      %v417 = vld [vmem:[%s1 + $0x258] sm:$0xff]
      %v418 = vld [vmem:[%s1 + $0x260] sm:$0xff]
      %v419 = vld [vmem:[%s1 + $0x268] sm:$0xff]
      %v420 = vld [vmem:[%s1 + $0x270] sm:$0xff]
      %v421 = vld [vmem:[%s1 + $0x278] sm:$0xff]
      %v422 = vld [vmem:[%s1 + $0x280] sm:$0xff]
      %v423 = vld [vmem:[%s1 + $0x288] sm:$0xff]
      %v424 = vld [vmem:[%s1 + $0x290] sm:$0xff]
      %v425 = vld [vmem:[%s1 + $0x298] sm:$0xff]
      %v426 = vld [vmem:[%s1 + $0x2a0] sm:$0xff]
      %v427 = vld [vmem:[%s1 + $0x2a8] sm:$0xff]
      %v428 = vld [vmem:[%s1 + $0x2b0] sm:$0xff]
      %v429 = vld [vmem:[%s1 + $0x2b8] sm:$0xff]
      %v430 = vld [vmem:[%s1 + $0x2c0] sm:$0xff]
      %v431 = vld [vmem:[%s1 + $0x2c8] sm:$0xff]
      %v432 = vld [vmem:[%s1 + $0x2d0] sm:$0xff]
      %v433 = vld [vmem:[%s1 + $0x2d8] sm:$0xff]
      %v434 = vld [vmem:[%s1 + $0x2e0] sm:$0xff]
      %v435 = vld [vmem:[%s1 + $0x2e8] sm:$0xff]
      %v436 = vld [vmem:[%s1 + $0x2f0] sm:$0xff]
      %v437 = vld [vmem:[%s1 + $0x2f8] sm:$0xff]
      %v438 = vld [vmem:[%s1 + $0x300] sm:$0xff]
      %v439 = vld [vmem:[%s1 + $0x308] sm:$0xff]
      %v440 = vld [vmem:[%s1 + $0x310] sm:$0xff]
      %v441 = vld [vmem:[%s1 + $0x318] sm:$0xff]
      %v442 = vld [vmem:[%s1 + $0x320] sm:$0xff]
      %v443 = vld [vmem:[%s1 + $0x328] sm:$0xff]
      %v444 = vld [vmem:[%s1 + $0x330] sm:$0xff]
      %v445 = vld [vmem:[%s1 + $0x338] sm:$0xff]
      %v446 = vld [vmem:[%s1 + $0x340] sm:$0xff]
      %v447 = vld [vmem:[%s1 + $0x348] sm:$0xff]
      %v448 = vld [vmem:[%s1 + $0x350] sm:$0xff]
      %v449 = vld [vmem:[%s1 + $0x358] sm:$0xff]
      %v450 = vld [vmem:[%s1 + $0x360] sm:$0xff]
      %v451 = vld [vmem:[%s1 + $0x368] sm:$0xff]
      %v452 = vld [vmem:[%s1 + $0x370] sm:$0xff]
      %v453 = vld [vmem:[%s1 + $0x378] sm:$0xff]
      %v454 = vld [vmem:[%s1 + $0x380] sm:$0xff]
      %v455 = vld [vmem:[%s1 + $0x388] sm:$0xff]
      %v456 = vld [vmem:[%s1 + $0x390] sm:$0xff]
      %v457 = vld [vmem:[%s1 + $0x398] sm:$0xff]
      %v458 = vld [vmem:[%s1 + $0x3a0] sm:$0xff]
      %v459 = vld [vmem:[%s1 + $0x3a8] sm:$0xff]
      %v460 = vld [vmem:[%s1 + $0x3b0] sm:$0xff]
      %v461 = vld [vmem:[%s1 + $0x3b8] sm:$0xff]
      %v462 = vld [vmem:[%s1 + $0x3c0] sm:$0xff]
      %v463 = vld [vmem:[%s1 + $0x3c8] sm:$0xff]
      %v464 = vld [vmem:[%s1 + $0x3d0] sm:$0xff]
      %v465 = vld [vmem:[%s1 + $0x3d8] sm:$0xff]
      %v466 = vld [vmem:[%s1 + $0x3e0] sm:$0xff]
      %v467 = vld [vmem:[%s1 + $0x3e8] sm:$0xff]
      %v468 = vld [vmem:[%s1 + $0x3f0] sm:$0xff]
      %v469 = vld [vmem:[%s1 + $0x3f8] sm:$0xff]
      %v470 = vld [vmem:[%s1 + $0x400] sm:$0xff]
      %v471 = vld [vmem:[%s1 + $0x408] sm:$0xff]
      %v472 = vld [vmem:[%s1 + $0x410] sm:$0xff]
      %v473 = vld [vmem:[%s1 + $0x418] sm:$0xff]
      %v474 = vld [vmem:[%s1 + $0x420] sm:$0xff]
      %v475 = vld [vmem:[%s1 + $0x428] sm:$0xff]
      %v476 = vld [vmem:[%s1 + $0x430] sm:$0xff]
      %v477 = vld [vmem:[%s1 + $0x438] sm:$0xff]
      %v478 = vld [vmem:[%s1 + $0x440] sm:$0xff]
      %v479 = vld [vmem:[%s1 + $0x448] sm:$0xff]
      %v480 = vld [vmem:[%s1 + $0x450] sm:$0xff]
      %v481 = vld [vmem:[%s1 + $0x458] sm:$0xff]
      %v482 = vld [vmem:[%s1 + $0x460] sm:$0xff]
      %v483 = vld [vmem:[%s1 + $0x468] sm:$0xff]
      %v484 = vld [vmem:[%s1 + $0x470] sm:$0xff]
      %v485 = vld [vmem:[%s1 + $0x478] sm:$0xff]
      %v486 = vld [vmem:[%s1 + $0x480] sm:$0xff]
      %v487 = vld [vmem:[%s1 + $0x488] sm:$0xff]
      %v488 = vld [vmem:[%s1 + $0x490] sm:$0xff]
      %v489 = vld [vmem:[%s1 + $0x498] sm:$0xff]
      %v490 = vld [vmem:[%s1 + $0x4a0] sm:$0xff]
      %v491 = vld [vmem:[%s1 + $0x4a8] sm:$0xff]
      %v492 = vld [vmem:[%s1 + $0x4b0] sm:$0xff]
      %v493 = vld [vmem:[%s1 + $0x4b8] sm:$0xff]
      %v494 = vld [vmem:[%s1 + $0x4c0] sm:$0xff]
      %v495 = vld [vmem:[%s1 + $0x4c8] sm:$0xff]
      %v496 = vld [vmem:[%s1 + $0x4d0] sm:$0xff]
      %v497 = vld [vmem:[%s1 + $0x4d8] sm:$0xff]
      %v498 = vld [vmem:[%s1 + $0x4e0] sm:$0xff]
      %v499 = vld [vmem:[%s1 + $0x4e8] sm:$0xff]
      %v500 = vld [vmem:[%s1 + $0x4f0] sm:$0xff]
      %v501 = vld [vmem:[%s1 + $0x4f8] sm:$0xff]
      %v502 = vld [vmem:[%s1 + $0x500] sm:$0xff]
      %v503 = vld [vmem:[%s1 + $0x508] sm:$0xff]
      %v504 = vld [vmem:[%s1 + $0x510] sm:$0xff]
      %v505 = vld [vmem:[%s1 + $0x518] sm:$0xff]
      %v506 = vld [vmem:[%s1 + $0x520] sm:$0xff]
      %v507 = vld [vmem:[%s1 + $0x528] sm:$0xff]
      %v508 = vld [vmem:[%s1 + $0x530] sm:$0xff]
      %v509 = vld [vmem:[%s1 + $0x538] sm:$0xff]
      %v510 = vld [vmem:[%s1 + $0x540] sm:$0xff]
      %v511 = vld [vmem:[%s1 + $0x548] sm:$0xff]
      %v512 = vld [vmem:[%s1 + $0x550] sm:$0xff]
      %v513 = vld [vmem:[%s1 + $0x558] sm:$0xff]
      %v514 = vld [vmem:[%s1 + $0x560] sm:$0xff]
      %v515 = vld [vmem:[%s1 + $0x568] sm:$0xff]
      %v516 = vld [vmem:[%s1 + $0x570] sm:$0xff]
      %v517 = vld [vmem:[%s1 + $0x578] sm:$0xff]
      %v518 = vld [vmem:[%s1 + $0x580] sm:$0xff]
      %v519 = vld [vmem:[%s1 + $0x588] sm:$0xff]
      %v520 = vld [vmem:[%s1 + $0x590] sm:$0xff]
      %v521 = vld [vmem:[%s1 + $0x598] sm:$0xff]
      %v522 = vld [vmem:[%s1 + $0x5a0] sm:$0xff]
      %v523 = vld [vmem:[%s1 + $0x5a8] sm:$0xff]
      %v524 = vld [vmem:[%s1 + $0x5b0] sm:$0xff]
      %v525 = vld [vmem:[%s1 + $0x5b8] sm:$0xff]
      %v526 = vld [vmem:[%s1 + $0x5c0] sm:$0xff]
      %v527 = vld [vmem:[%s1 + $0x5c8] sm:$0xff]
      %v528 = vld [vmem:[%s1 + $0x5d0] sm:$0xff]
      %v529 = vld [vmem:[%s1 + $0x5d8] sm:$0xff]
      %v530 = vld [vmem:[%s1 + $0x5e0] sm:$0xff]
      %v531 = vld [vmem:[%s1 + $0x5e8] sm:$0xff]
      %v532 = vld [vmem:[%s1 + $0x5f0] sm:$0xff]
      %v533 = vld [vmem:[%s1 + $0x5f8] sm:$0xff]
      %v534 = vld [vmem:[%s1 + $0x600] sm:$0xff]
      %v535 = vld [vmem:[%s1 + $0x608] sm:$0xff]
      %v536 = vld [vmem:[%s1 + $0x610] sm:$0xff]
      %v537 = vld [vmem:[%s1 + $0x618] sm:$0xff]
      %v538 = vld [vmem:[%s1 + $0x620] sm:$0xff]
      %v539 = vld [vmem:[%s1 + $0x628] sm:$0xff]
      %v540 = vld [vmem:[%s1 + $0x630] sm:$0xff]
      %v541 = vld [vmem:[%s1 + $0x638] sm:$0xff]
      %v542 = vld [vmem:[%s1 + $0x640] sm:$0xff]
      %v543 = vld [vmem:[%s1 + $0x648] sm:$0xff]
      %v544 = vld [vmem:[%s1 + $0x650] sm:$0xff]
      %v545 = vld [vmem:[%s1 + $0x658] sm:$0xff]
      %v546 = vld [vmem:[%s1 + $0x660] sm:$0xff]
      %v547 = vld [vmem:[%s1 + $0x668] sm:$0xff]
      %v548 = vld [vmem:[%s1 + $0x670] sm:$0xff]
      %v549 = vld [vmem:[%s1 + $0x678] sm:$0xff]
      %v550 = vld [vmem:[%s1 + $0x680] sm:$0xff]
      %v551 = vld [vmem:[%s1 + $0x688] sm:$0xff]
      %v552 = vld [vmem:[%s1 + $0x690] sm:$0xff]
      %v553 = vld [vmem:[%s1 + $0x698] sm:$0xff]
      %v554 = vld [vmem:[%s1 + $0x6a0] sm:$0xff]
      %v555 = vld [vmem:[%s1 + $0x6a8] sm:$0xff]
      %v556 = vld [vmem:[%s1 + $0x6b0] sm:$0xff]
      %v557 = vld [vmem:[%s1 + $0x6b8] sm:$0xff]
      %v558 = vld [vmem:[%s1 + $0x6c0] sm:$0xff]
      %v559 = vld [vmem:[%s1 + $0x6c8] sm:$0xff]
      %v560 = vld [vmem:[%s1 + $0x6d0] sm:$0xff]
      %v561 = vld [vmem:[%s1 + $0x6d8] sm:$0xff]
      %v562 = vld [vmem:[%s1 + $0x6e0] sm:$0xff]
      %v563 = vld [vmem:[%s1 + $0x6e8] sm:$0xff]
      %v564 = vld [vmem:[%s1 + $0x6f0] sm:$0xff]
      %v565 = vld [vmem:[%s1 + $0x6f8] sm:$0xff]
      %v566 = vld [vmem:[%s1 + $0x700] sm:$0xff]
      %v567 = vld [vmem:[%s1 + $0x708] sm:$0xff]
      %v568 = vld [vmem:[%s1 + $0x710] sm:$0xff]
      %v569 = vld [vmem:[%s1 + $0x718] sm:$0xff]
      %v570 = vld [vmem:[%s1 + $0x720] sm:$0xff]
      %v571 = vld [vmem:[%s1 + $0x728] sm:$0xff]
      %v572 = vld [vmem:[%s1 + $0x730] sm:$0xff]
      %v573 = vld [vmem:[%s1 + $0x738] sm:$0xff]
      %v574 = vld [vmem:[%s1 + $0x740] sm:$0xff]
      %v575 = vld [vmem:[%s1 + $0x748] sm:$0xff]
      %v576 = vld [vmem:[%s1 + $0x750] sm:$0xff]
      %v577 = vld [vmem:[%s1 + $0x758] sm:$0xff]
      %v578 = vld [vmem:[%s1 + $0x760] sm:$0xff]
      %v579 = vld [vmem:[%s1 + $0x768] sm:$0xff]
      %v580 = vld [vmem:[%s1 + $0x770] sm:$0xff]
      %v581 = vld [vmem:[%s1 + $0x778] sm:$0xff]
      %v582 = vld [vmem:[%s1 + $0x780] sm:$0xff]
      %v583 = vld [vmem:[%s1 + $0x788] sm:$0xff]
      %v584 = vld [vmem:[%s1 + $0x790] sm:$0xff]
      %v585 = vld [vmem:[%s1 + $0x798] sm:$0xff]
      %v586 = vld [vmem:[%s1 + $0x7a0] sm:$0xff]
      %v587 = vld [vmem:[%s1 + $0x7a8] sm:$0xff]
      %v588 = vld [vmem:[%s1 + $0x7b0] sm:$0xff]
      %v589 = vld [vmem:[%s1 + $0x7b8] sm:$0xff]
      %v590 = vld [vmem:[%s1 + $0x7c0] sm:$0xff]
      %v591 = vld [vmem:[%s1 + $0x7c8] sm:$0xff]
      %v592 = vld [vmem:[%s1 + $0x7d0] sm:$0xff]
      %v593 = vld [vmem:[%s1 + $0x7d8] sm:$0xff]
      %v594 = vld [vmem:[%s1 + $0x7e0] sm:$0xff]
      %v595 = vld [vmem:[%s1 + $0x7e8] sm:$0xff]
      %v596 = vld [vmem:[%s1 + $0x7f0] sm:$0xff]
      %v597 = vld [vmem:[%s1 + $0x7f8] sm:$0xff]
      %v598 = vld [vmem:[%s2] sm:$0xf]
      %v600 = vlaneseq
      %v601 = vshrl.u32 %v600, 7
      %v602 = vsub.s32 0, %v601
      %v603 = vrot.slane %v598, %v602
      %v604 = vlaneseq
      %v605 = vshrl.u32 %v604, 7
      %v606 = vsub.s32 1, %v605
      %v607 = vrot.slane %v598, %v606
      %v608 = vlaneseq
      %v609 = vshrl.u32 %v608, 7
      %v610 = vsub.s32 2, %v609
      %v611 = vrot.slane %v598, %v610
      %v612 = vlaneseq
      %v613 = vshrl.u32 %v612, 7
      %v614 = vsub.s32 3, %v613
      %v615 = vrot.slane %v598, %v614
      %v628 = vunpack.c.l.b16 %v334
      %v629 = vunpack.c.h.b16 %v334
      %v630 = vunpack.c.l.b16 %v335
      %v631 = vunpack.c.h.b16 %v335
      %v632 = vunpack.c.l.b16 %v336
      %v633 = vunpack.c.h.b16 %v336
      %v634 = vunpack.c.l.b16 %v337
      %v635 = vunpack.c.h.b16 %v337
      %v636 = vunpack.c.l.b16 %v338
      %v637 = vunpack.c.h.b16 %v338
      %v638 = vunpack.c.l.b16 %v339
      %v639 = vunpack.c.h.b16 %v339
      %v640 = vunpack.c.l.b16 %v340
      %v641 = vunpack.c.h.b16 %v340
      %v642 = vunpack.c.l.b16 %v341
      %v643 = vunpack.c.h.b16 %v341
      %v644 = vpack.c.b16 %v636, %v628
      %v645 = vpack.c.b16 %v637, %v629
      %v646 = vpack.c.b16 %v638, %v630
      %v647 = vpack.c.b16 %v639, %v631
      %v648 = vpack.c.b16 %v640, %v632
      %v649 = vpack.c.b16 %v641, %v633
      %v650 = vpack.c.b16 %v642, %v634
      %v651 = vpack.c.b16 %v643, %v635
      %v916 = vunpack.c.l.b16 %v342
      %v917 = vunpack.c.h.b16 %v342
      %v918 = vunpack.c.l.b16 %v343
      %v919 = vunpack.c.h.b16 %v343
      %v920 = vunpack.c.l.b16 %v344
      %v921 = vunpack.c.h.b16 %v344
      %v922 = vunpack.c.l.b16 %v345
      %v923 = vunpack.c.h.b16 %v345
      %v924 = vunpack.c.l.b16 %v346
      %v925 = vunpack.c.h.b16 %v346
      %v926 = vunpack.c.l.b16 %v347
      %v927 = vunpack.c.h.b16 %v347
      %v928 = vunpack.c.l.b16 %v348
      %v929 = vunpack.c.h.b16 %v348
      %v930 = vunpack.c.l.b16 %v349
      %v931 = vunpack.c.h.b16 %v349
      %v932 = vunpack.c.l.b16 %v350
      %v933 = vunpack.c.h.b16 %v350
      %v934 = vunpack.c.l.b16 %v351
      %v935 = vunpack.c.h.b16 %v351
      %v936 = vunpack.c.l.b16 %v352
      %v937 = vunpack.c.h.b16 %v352
      %v938 = vunpack.c.l.b16 %v353
      %v939 = vunpack.c.h.b16 %v353
      %v940 = vunpack.c.l.b16 %v354
      %v941 = vunpack.c.h.b16 %v354
      %v942 = vunpack.c.l.b16 %v355
      %v943 = vunpack.c.h.b16 %v355
      %v944 = vunpack.c.l.b16 %v356
      %v945 = vunpack.c.h.b16 %v356
      %v946 = vunpack.c.l.b16 %v357
      %v947 = vunpack.c.h.b16 %v357
      %v948 = vunpack.c.l.b16 %v358
      %v949 = vunpack.c.h.b16 %v358
      %v950 = vunpack.c.l.b16 %v359
      %v951 = vunpack.c.h.b16 %v359
      %v952 = vunpack.c.l.b16 %v360
      %v953 = vunpack.c.h.b16 %v360
      %v954 = vunpack.c.l.b16 %v361
      %v955 = vunpack.c.h.b16 %v361
      %v956 = vunpack.c.l.b16 %v362
      %v957 = vunpack.c.h.b16 %v362
      %v958 = vunpack.c.l.b16 %v363
      %v959 = vunpack.c.h.b16 %v363
      %v960 = vunpack.c.l.b16 %v364
      %v961 = vunpack.c.h.b16 %v364
      %v962 = vunpack.c.l.b16 %v365
      %v963 = vunpack.c.h.b16 %v365
      %v964 = vunpack.c.l.b16 %v366
      %v965 = vunpack.c.h.b16 %v366
      %v966 = vunpack.c.l.b16 %v367
      %v967 = vunpack.c.h.b16 %v367
      %v968 = vunpack.c.l.b16 %v368
      %v969 = vunpack.c.h.b16 %v368
      %v970 = vunpack.c.l.b16 %v369
      %v971 = vunpack.c.h.b16 %v369
      %v972 = vunpack.c.l.b16 %v370
      %v973 = vunpack.c.h.b16 %v370
      %v974 = vunpack.c.l.b16 %v371
      %v975 = vunpack.c.h.b16 %v371
      %v976 = vunpack.c.l.b16 %v372
      %v977 = vunpack.c.h.b16 %v372
      %v978 = vunpack.c.l.b16 %v373
      %v979 = vunpack.c.h.b16 %v373
      %v980 = vunpack.c.l.b16 %v374
      %v981 = vunpack.c.h.b16 %v374
      %v982 = vunpack.c.l.b16 %v375
      %v983 = vunpack.c.h.b16 %v375
      %v984 = vunpack.c.l.b16 %v376
      %v985 = vunpack.c.h.b16 %v376
      %v986 = vunpack.c.l.b16 %v377
      %v987 = vunpack.c.h.b16 %v377
      %v988 = vunpack.c.l.b16 %v378
      %v989 = vunpack.c.h.b16 %v378
      %v990 = vunpack.c.l.b16 %v379
      %v991 = vunpack.c.h.b16 %v379
      %v992 = vunpack.c.l.b16 %v380
      %v993 = vunpack.c.h.b16 %v380
      %v994 = vunpack.c.l.b16 %v381
      %v995 = vunpack.c.h.b16 %v381
      %v996 = vunpack.c.l.b16 %v382
      %v997 = vunpack.c.h.b16 %v382
      %v998 = vunpack.c.l.b16 %v383
      %v999 = vunpack.c.h.b16 %v383
      %v1000 = vunpack.c.l.b16 %v384
      %v1001 = vunpack.c.h.b16 %v384
      %v1002 = vunpack.c.l.b16 %v385
      %v1003 = vunpack.c.h.b16 %v385
      %v1004 = vunpack.c.l.b16 %v386
      %v1005 = vunpack.c.h.b16 %v386
      %v1006 = vunpack.c.l.b16 %v387
      %v1007 = vunpack.c.h.b16 %v387
      %v1008 = vunpack.c.l.b16 %v388
      %v1009 = vunpack.c.h.b16 %v388
      %v1010 = vunpack.c.l.b16 %v389
      %v1011 = vunpack.c.h.b16 %v389
      %v1012 = vunpack.c.l.b16 %v390
      %v1013 = vunpack.c.h.b16 %v390
      %v1014 = vunpack.c.l.b16 %v391
      %v1015 = vunpack.c.h.b16 %v391
      %v1016 = vunpack.c.l.b16 %v392
      %v1017 = vunpack.c.h.b16 %v392
      %v1018 = vunpack.c.l.b16 %v393
      %v1019 = vunpack.c.h.b16 %v393
      %v1020 = vunpack.c.l.b16 %v394
      %v1021 = vunpack.c.h.b16 %v394
      %v1022 = vunpack.c.l.b16 %v395
      %v1023 = vunpack.c.h.b16 %v395
      %v1024 = vunpack.c.l.b16 %v396
      %v1025 = vunpack.c.h.b16 %v396
      %v1026 = vunpack.c.l.b16 %v397
      %v1027 = vunpack.c.h.b16 %v397
      %v1028 = vunpack.c.l.b16 %v398
      %v1029 = vunpack.c.h.b16 %v398
      %v1030 = vunpack.c.l.b16 %v399
      %v1031 = vunpack.c.h.b16 %v399
      %v1032 = vunpack.c.l.b16 %v400
      %v1033 = vunpack.c.h.b16 %v400
      %v1034 = vunpack.c.l.b16 %v401
      %v1035 = vunpack.c.h.b16 %v401
      %v1036 = vunpack.c.l.b16 %v402
      %v1037 = vunpack.c.h.b16 %v402
      %v1038 = vunpack.c.l.b16 %v403
      %v1039 = vunpack.c.h.b16 %v403
      %v1040 = vunpack.c.l.b16 %v404
      %v1041 = vunpack.c.h.b16 %v404
      %v1042 = vunpack.c.l.b16 %v405
      %v1043 = vunpack.c.h.b16 %v405
      %v1044 = vunpack.c.l.b16 %v406
      %v1045 = vunpack.c.h.b16 %v406
      %v1046 = vunpack.c.l.b16 %v407
      %v1047 = vunpack.c.h.b16 %v407
      %v1048 = vunpack.c.l.b16 %v408
      %v1049 = vunpack.c.h.b16 %v408
      %v1050 = vunpack.c.l.b16 %v409
      %v1051 = vunpack.c.h.b16 %v409
      %v1052 = vunpack.c.l.b16 %v410
      %v1053 = vunpack.c.h.b16 %v410
      %v1054 = vunpack.c.l.b16 %v411
      %v1055 = vunpack.c.h.b16 %v411
      %v1056 = vunpack.c.l.b16 %v412
      %v1057 = vunpack.c.h.b16 %v412
      %v1058 = vunpack.c.l.b16 %v413
      %v1059 = vunpack.c.h.b16 %v413
      %v1060 = vunpack.c.l.b16 %v414
      %v1061 = vunpack.c.h.b16 %v414
      %v1062 = vunpack.c.l.b16 %v415
      %v1063 = vunpack.c.h.b16 %v415
      %v1064 = vunpack.c.l.b16 %v416
      %v1065 = vunpack.c.h.b16 %v416
      %v1066 = vunpack.c.l.b16 %v417
      %v1067 = vunpack.c.h.b16 %v417
      %v1068 = vunpack.c.l.b16 %v418
      %v1069 = vunpack.c.h.b16 %v418
      %v1070 = vunpack.c.l.b16 %v419
      %v1071 = vunpack.c.h.b16 %v419
      %v1072 = vunpack.c.l.b16 %v420
      %v1073 = vunpack.c.h.b16 %v420
      %v1074 = vunpack.c.l.b16 %v421
      %v1075 = vunpack.c.h.b16 %v421
      %v1076 = vunpack.c.l.b16 %v422
      %v1077 = vunpack.c.h.b16 %v422
      %v1078 = vunpack.c.l.b16 %v423
      %v1079 = vunpack.c.h.b16 %v423
      %v1080 = vunpack.c.l.b16 %v424
      %v1081 = vunpack.c.h.b16 %v424
      %v1082 = vunpack.c.l.b16 %v425
      %v1083 = vunpack.c.h.b16 %v425
      %v1084 = vunpack.c.l.b16 %v426
      %v1085 = vunpack.c.h.b16 %v426
      %v1086 = vunpack.c.l.b16 %v427
      %v1087 = vunpack.c.h.b16 %v427
      %v1088 = vunpack.c.l.b16 %v428
      %v1089 = vunpack.c.h.b16 %v428
      %v1090 = vunpack.c.l.b16 %v429
      %v1091 = vunpack.c.h.b16 %v429
      %v1092 = vunpack.c.l.b16 %v430
      %v1093 = vunpack.c.h.b16 %v430
      %v1094 = vunpack.c.l.b16 %v431
      %v1095 = vunpack.c.h.b16 %v431
      %v1096 = vunpack.c.l.b16 %v432
      %v1097 = vunpack.c.h.b16 %v432
      %v1098 = vunpack.c.l.b16 %v433
      %v1099 = vunpack.c.h.b16 %v433
      %v1100 = vunpack.c.l.b16 %v434
      %v1101 = vunpack.c.h.b16 %v434
      %v1102 = vunpack.c.l.b16 %v435
      %v1103 = vunpack.c.h.b16 %v435
      %v1104 = vunpack.c.l.b16 %v436
      %v1105 = vunpack.c.h.b16 %v436
      %v1106 = vunpack.c.l.b16 %v437
      %v1107 = vunpack.c.h.b16 %v437
      %v1108 = vunpack.c.l.b16 %v438
      %v1109 = vunpack.c.h.b16 %v438
      %v1110 = vunpack.c.l.b16 %v439
      %v1111 = vunpack.c.h.b16 %v439
      %v1112 = vunpack.c.l.b16 %v440
      %v1113 = vunpack.c.h.b16 %v440
      %v1114 = vunpack.c.l.b16 %v441
      %v1115 = vunpack.c.h.b16 %v441
      %v1116 = vunpack.c.l.b16 %v442
      %v1117 = vunpack.c.h.b16 %v442
      %v1118 = vunpack.c.l.b16 %v443
      %v1119 = vunpack.c.h.b16 %v443
      %v1120 = vunpack.c.l.b16 %v444
      %v1121 = vunpack.c.h.b16 %v444
      %v1122 = vunpack.c.l.b16 %v445
      %v1123 = vunpack.c.h.b16 %v445
      %v1124 = vunpack.c.l.b16 %v446
      %v1125 = vunpack.c.h.b16 %v446
      %v1126 = vunpack.c.l.b16 %v447
      %v1127 = vunpack.c.h.b16 %v447
      %v1128 = vunpack.c.l.b16 %v448
      %v1129 = vunpack.c.h.b16 %v448
      %v1130 = vunpack.c.l.b16 %v449
      %v1131 = vunpack.c.h.b16 %v449
      %v1132 = vunpack.c.l.b16 %v450
      %v1133 = vunpack.c.h.b16 %v450
      %v1134 = vunpack.c.l.b16 %v451
      %v1135 = vunpack.c.h.b16 %v451
      %v1136 = vunpack.c.l.b16 %v452
      %v1137 = vunpack.c.h.b16 %v452
      %v1138 = vunpack.c.l.b16 %v453
      %v1139 = vunpack.c.h.b16 %v453
      %v1140 = vunpack.c.l.b16 %v454
      %v1141 = vunpack.c.h.b16 %v454
      %v1142 = vunpack.c.l.b16 %v455
      %v1143 = vunpack.c.h.b16 %v455
      %v1144 = vunpack.c.l.b16 %v456
      %v1145 = vunpack.c.h.b16 %v456
      %v1146 = vunpack.c.l.b16 %v457
      %v1147 = vunpack.c.h.b16 %v457
      %v1148 = vunpack.c.l.b16 %v458
      %v1149 = vunpack.c.h.b16 %v458
      %v1150 = vunpack.c.l.b16 %v459
      %v1151 = vunpack.c.h.b16 %v459
      %v1152 = vunpack.c.l.b16 %v460
      %v1153 = vunpack.c.h.b16 %v460
      %v1154 = vunpack.c.l.b16 %v461
      %v1155 = vunpack.c.h.b16 %v461
      %v1156 = vunpack.c.l.b16 %v462
      %v1157 = vunpack.c.h.b16 %v462
      %v1158 = vunpack.c.l.b16 %v463
      %v1159 = vunpack.c.h.b16 %v463
      %v1160 = vunpack.c.l.b16 %v464
      %v1161 = vunpack.c.h.b16 %v464
      %v1162 = vunpack.c.l.b16 %v465
      %v1163 = vunpack.c.h.b16 %v465
      %v1164 = vunpack.c.l.b16 %v466
      %v1165 = vunpack.c.h.b16 %v466
      %v1166 = vunpack.c.l.b16 %v467
      %v1167 = vunpack.c.h.b16 %v467
      %v1168 = vunpack.c.l.b16 %v468
      %v1169 = vunpack.c.h.b16 %v468
      %v1170 = vunpack.c.l.b16 %v469
      %v1171 = vunpack.c.h.b16 %v469
      %v1172 = vunpack.c.l.b16 %v470
      %v1173 = vunpack.c.h.b16 %v470
      %v1174 = vunpack.c.l.b16 %v471
      %v1175 = vunpack.c.h.b16 %v471
      %v1176 = vunpack.c.l.b16 %v472
      %v1177 = vunpack.c.h.b16 %v472
      %v1178 = vunpack.c.l.b16 %v473
      %v1179 = vunpack.c.h.b16 %v473
      %v1180 = vunpack.c.l.b16 %v474
      %v1181 = vunpack.c.h.b16 %v474
      %v1182 = vunpack.c.l.b16 %v475
      %v1183 = vunpack.c.h.b16 %v475
      %v1184 = vunpack.c.l.b16 %v476
      %v1185 = vunpack.c.h.b16 %v476
      %v1186 = vunpack.c.l.b16 %v477
      %v1187 = vunpack.c.h.b16 %v477
      %v1188 = vunpack.c.l.b16 %v478
      %v1189 = vunpack.c.h.b16 %v478
      %v1190 = vunpack.c.l.b16 %v479
      %v1191 = vunpack.c.h.b16 %v479
      %v1192 = vunpack.c.l.b16 %v480
      %v1193 = vunpack.c.h.b16 %v480
      %v1194 = vunpack.c.l.b16 %v481
      %v1195 = vunpack.c.h.b16 %v481
      %v1196 = vunpack.c.l.b16 %v482
      %v1197 = vunpack.c.h.b16 %v482
      %v1198 = vunpack.c.l.b16 %v483
      %v1199 = vunpack.c.h.b16 %v483
      %v1200 = vunpack.c.l.b16 %v484
      %v1201 = vunpack.c.h.b16 %v484
      %v1202 = vunpack.c.l.b16 %v485
      %v1203 = vunpack.c.h.b16 %v485
      %v1204 = vunpack.c.l.b16 %v486
      %v1205 = vunpack.c.h.b16 %v486
      %v1206 = vunpack.c.l.b16 %v487
      %v1207 = vunpack.c.h.b16 %v487
      %v1208 = vunpack.c.l.b16 %v488
      %v1209 = vunpack.c.h.b16 %v488
      %v1210 = vunpack.c.l.b16 %v489
      %v1211 = vunpack.c.h.b16 %v489
      %v1212 = vunpack.c.l.b16 %v490
      %v1213 = vunpack.c.h.b16 %v490
      %v1214 = vunpack.c.l.b16 %v491
      %v1215 = vunpack.c.h.b16 %v491
      %v1216 = vunpack.c.l.b16 %v492
      %v1217 = vunpack.c.h.b16 %v492
      %v1218 = vunpack.c.l.b16 %v493
      %v1219 = vunpack.c.h.b16 %v493
      %v1220 = vunpack.c.l.b16 %v494
      %v1221 = vunpack.c.h.b16 %v494
      %v1222 = vunpack.c.l.b16 %v495
      %v1223 = vunpack.c.h.b16 %v495
      %v1224 = vunpack.c.l.b16 %v496
      %v1225 = vunpack.c.h.b16 %v496
      %v1226 = vunpack.c.l.b16 %v497
      %v1227 = vunpack.c.h.b16 %v497
      %v1228 = vunpack.c.l.b16 %v498
      %v1229 = vunpack.c.h.b16 %v498
      %v1230 = vunpack.c.l.b16 %v499
      %v1231 = vunpack.c.h.b16 %v499
      %v1232 = vunpack.c.l.b16 %v500
      %v1233 = vunpack.c.h.b16 %v500
      %v1234 = vunpack.c.l.b16 %v501
      %v1235 = vunpack.c.h.b16 %v501
      %v1236 = vunpack.c.l.b16 %v502
      %v1237 = vunpack.c.h.b16 %v502
      %v1238 = vunpack.c.l.b16 %v503
      %v1239 = vunpack.c.h.b16 %v503
      %v1240 = vunpack.c.l.b16 %v504
      %v1241 = vunpack.c.h.b16 %v504
      %v1242 = vunpack.c.l.b16 %v505
      %v1243 = vunpack.c.h.b16 %v505
      %v1244 = vunpack.c.l.b16 %v506
      %v1245 = vunpack.c.h.b16 %v506
      %v1246 = vunpack.c.l.b16 %v507
      %v1247 = vunpack.c.h.b16 %v507
      %v1248 = vunpack.c.l.b16 %v508
      %v1249 = vunpack.c.h.b16 %v508
      %v1250 = vunpack.c.l.b16 %v509
      %v1251 = vunpack.c.h.b16 %v509
      %v1252 = vunpack.c.l.b16 %v510
      %v1253 = vunpack.c.h.b16 %v510
      %v1254 = vunpack.c.l.b16 %v511
      %v1255 = vunpack.c.h.b16 %v511
      %v1256 = vunpack.c.l.b16 %v512
      %v1257 = vunpack.c.h.b16 %v512
      %v1258 = vunpack.c.l.b16 %v513
      %v1259 = vunpack.c.h.b16 %v513
      %v1260 = vunpack.c.l.b16 %v514
      %v1261 = vunpack.c.h.b16 %v514
      %v1262 = vunpack.c.l.b16 %v515
      %v1263 = vunpack.c.h.b16 %v515
      %v1264 = vunpack.c.l.b16 %v516
      %v1265 = vunpack.c.h.b16 %v516
      %v1266 = vunpack.c.l.b16 %v517
      %v1267 = vunpack.c.h.b16 %v517
      %v1268 = vunpack.c.l.b16 %v518
      %v1269 = vunpack.c.h.b16 %v518
      %v1270 = vunpack.c.l.b16 %v519
      %v1271 = vunpack.c.h.b16 %v519
      %v1272 = vunpack.c.l.b16 %v520
      %v1273 = vunpack.c.h.b16 %v520
      %v1274 = vunpack.c.l.b16 %v521
      %v1275 = vunpack.c.h.b16 %v521
      %v1276 = vunpack.c.l.b16 %v522
      %v1277 = vunpack.c.h.b16 %v522
      %v1278 = vunpack.c.l.b16 %v523
      %v1279 = vunpack.c.h.b16 %v523
      %v1280 = vunpack.c.l.b16 %v524
      %v1281 = vunpack.c.h.b16 %v524
      %v1282 = vunpack.c.l.b16 %v525
      %v1283 = vunpack.c.h.b16 %v525
      %v1284 = vunpack.c.l.b16 %v526
      %v1285 = vunpack.c.h.b16 %v526
      %v1286 = vunpack.c.l.b16 %v527
      %v1287 = vunpack.c.h.b16 %v527
      %v1288 = vunpack.c.l.b16 %v528
      %v1289 = vunpack.c.h.b16 %v528
      %v1290 = vunpack.c.l.b16 %v529
      %v1291 = vunpack.c.h.b16 %v529
      %v1292 = vunpack.c.l.b16 %v530
      %v1293 = vunpack.c.h.b16 %v530
      %v1294 = vunpack.c.l.b16 %v531
      %v1295 = vunpack.c.h.b16 %v531
      %v1296 = vunpack.c.l.b16 %v532
      %v1297 = vunpack.c.h.b16 %v532
      %v1298 = vunpack.c.l.b16 %v533
      %v1299 = vunpack.c.h.b16 %v533
      %v1300 = vunpack.c.l.b16 %v534
      %v1301 = vunpack.c.h.b16 %v534
      %v1302 = vunpack.c.l.b16 %v535
      %v1303 = vunpack.c.h.b16 %v535
      %v1304 = vunpack.c.l.b16 %v536
      %v1305 = vunpack.c.h.b16 %v536
      %v1306 = vunpack.c.l.b16 %v537
      %v1307 = vunpack.c.h.b16 %v537
      %v1308 = vunpack.c.l.b16 %v538
      %v1309 = vunpack.c.h.b16 %v538
      %v1310 = vunpack.c.l.b16 %v539
      %v1311 = vunpack.c.h.b16 %v539
      %v1312 = vunpack.c.l.b16 %v540
      %v1313 = vunpack.c.h.b16 %v540
      %v1314 = vunpack.c.l.b16 %v541
      %v1315 = vunpack.c.h.b16 %v541
      %v1316 = vunpack.c.l.b16 %v542
      %v1317 = vunpack.c.h.b16 %v542
      %v1318 = vunpack.c.l.b16 %v543
      %v1319 = vunpack.c.h.b16 %v543
      %v1320 = vunpack.c.l.b16 %v544
      %v1321 = vunpack.c.h.b16 %v544
      %v1322 = vunpack.c.l.b16 %v545
      %v1323 = vunpack.c.h.b16 %v545
      %v1324 = vunpack.c.l.b16 %v546
      %v1325 = vunpack.c.h.b16 %v546
      %v1326 = vunpack.c.l.b16 %v547
      %v1327 = vunpack.c.h.b16 %v547
      %v1328 = vunpack.c.l.b16 %v548
      %v1329 = vunpack.c.h.b16 %v548
      %v1330 = vunpack.c.l.b16 %v549
      %v1331 = vunpack.c.h.b16 %v549
      %v1332 = vunpack.c.l.b16 %v550
      %v1333 = vunpack.c.h.b16 %v550
      %v1334 = vunpack.c.l.b16 %v551
      %v1335 = vunpack.c.h.b16 %v551
      %v1336 = vunpack.c.l.b16 %v552
      %v1337 = vunpack.c.h.b16 %v552
      %v1338 = vunpack.c.l.b16 %v553
      %v1339 = vunpack.c.h.b16 %v553
      %v1340 = vunpack.c.l.b16 %v554
      %v1341 = vunpack.c.h.b16 %v554
      %v1342 = vunpack.c.l.b16 %v555
      %v1343 = vunpack.c.h.b16 %v555
      %v1344 = vunpack.c.l.b16 %v556
      %v1345 = vunpack.c.h.b16 %v556
      %v1346 = vunpack.c.l.b16 %v557
      %v1347 = vunpack.c.h.b16 %v557
      %v1348 = vunpack.c.l.b16 %v558
      %v1349 = vunpack.c.h.b16 %v558
      %v1350 = vunpack.c.l.b16 %v559
      %v1351 = vunpack.c.h.b16 %v559
      %v1352 = vunpack.c.l.b16 %v560
      %v1353 = vunpack.c.h.b16 %v560
      %v1354 = vunpack.c.l.b16 %v561
      %v1355 = vunpack.c.h.b16 %v561
      %v1356 = vunpack.c.l.b16 %v562
      %v1357 = vunpack.c.h.b16 %v562
      %v1358 = vunpack.c.l.b16 %v563
      %v1359 = vunpack.c.h.b16 %v563
      %v1360 = vunpack.c.l.b16 %v564
      %v1361 = vunpack.c.h.b16 %v564
      %v1362 = vunpack.c.l.b16 %v565
      %v1363 = vunpack.c.h.b16 %v565
      %v1364 = vunpack.c.l.b16 %v566
      %v1365 = vunpack.c.h.b16 %v566
      %v1366 = vunpack.c.l.b16 %v567
      %v1367 = vunpack.c.h.b16 %v567
      %v1368 = vunpack.c.l.b16 %v568
      %v1369 = vunpack.c.h.b16 %v568
      %v1370 = vunpack.c.l.b16 %v569
      %v1371 = vunpack.c.h.b16 %v569
      %v1372 = vunpack.c.l.b16 %v570
      %v1373 = vunpack.c.h.b16 %v570
      %v1374 = vunpack.c.l.b16 %v571
      %v1375 = vunpack.c.h.b16 %v571
      %v1376 = vunpack.c.l.b16 %v572
      %v1377 = vunpack.c.h.b16 %v572
      %v1378 = vunpack.c.l.b16 %v573
      %v1379 = vunpack.c.h.b16 %v573
      %v1380 = vunpack.c.l.b16 %v574
      %v1381 = vunpack.c.h.b16 %v574
      %v1382 = vunpack.c.l.b16 %v575
      %v1383 = vunpack.c.h.b16 %v575
      %v1384 = vunpack.c.l.b16 %v576
      %v1385 = vunpack.c.h.b16 %v576
      %v1386 = vunpack.c.l.b16 %v577
      %v1387 = vunpack.c.h.b16 %v577
      %v1388 = vunpack.c.l.b16 %v578
      %v1389 = vunpack.c.h.b16 %v578
      %v1390 = vunpack.c.l.b16 %v579
      %v1391 = vunpack.c.h.b16 %v579
      %v1392 = vunpack.c.l.b16 %v580
      %v1393 = vunpack.c.h.b16 %v580
      %v1394 = vunpack.c.l.b16 %v581
      %v1395 = vunpack.c.h.b16 %v581
      %v1396 = vunpack.c.l.b16 %v582
      %v1397 = vunpack.c.h.b16 %v582
      %v1398 = vunpack.c.l.b16 %v583
      %v1399 = vunpack.c.h.b16 %v583
      %v1400 = vunpack.c.l.b16 %v584
      %v1401 = vunpack.c.h.b16 %v584
      %v1402 = vunpack.c.l.b16 %v585
      %v1403 = vunpack.c.h.b16 %v585
      %v1404 = vunpack.c.l.b16 %v586
      %v1405 = vunpack.c.h.b16 %v586
      %v1406 = vunpack.c.l.b16 %v587
      %v1407 = vunpack.c.h.b16 %v587
      %v1408 = vunpack.c.l.b16 %v588
      %v1409 = vunpack.c.h.b16 %v588
      %v1410 = vunpack.c.l.b16 %v589
      %v1411 = vunpack.c.h.b16 %v589
      %v1412 = vunpack.c.l.b16 %v590
      %v1413 = vunpack.c.h.b16 %v590
      %v1414 = vunpack.c.l.b16 %v591
      %v1415 = vunpack.c.h.b16 %v591
      %v1416 = vunpack.c.l.b16 %v592
      %v1417 = vunpack.c.h.b16 %v592
      %v1418 = vunpack.c.l.b16 %v593
      %v1419 = vunpack.c.h.b16 %v593
      %v1420 = vunpack.c.l.b16 %v594
      %v1421 = vunpack.c.h.b16 %v594
      %v1422 = vunpack.c.l.b16 %v595
      %v1423 = vunpack.c.h.b16 %v595
      %v1424 = vunpack.c.l.b16 %v596
      %v1425 = vunpack.c.h.b16 %v596
      %v1426 = vunpack.c.l.b16 %v597
      %v1427 = vunpack.c.h.b16 %v597
      %v1428 = vpack.c.b16 %v920, %v916
      %v1429 = vpack.c.b16 %v921, %v917
      %v1430 = vpack.c.b16 %v922, %v918
      %v1431 = vpack.c.b16 %v923, %v919
      %v1432 = vpack.c.b16 %v928, %v924
      %v1433 = vpack.c.b16 %v929, %v925
      %v1434 = vpack.c.b16 %v930, %v926
      %v1435 = vpack.c.b16 %v931, %v927
      %v1436 = vpack.c.b16 %v936, %v932
      %v1437 = vpack.c.b16 %v937, %v933
      %v1438 = vpack.c.b16 %v938, %v934
      %v1439 = vpack.c.b16 %v939, %v935
      %v1440 = vpack.c.b16 %v944, %v940
      %v1441 = vpack.c.b16 %v945, %v941
      %v1442 = vpack.c.b16 %v946, %v942
      %v1443 = vpack.c.b16 %v947, %v943
      %v1444 = vpack.c.b16 %v952, %v948
      %v1445 = vpack.c.b16 %v953, %v949
      %v1446 = vpack.c.b16 %v954, %v950
      %v1447 = vpack.c.b16 %v955, %v951
      %v1448 = vpack.c.b16 %v960, %v956
      %v1449 = vpack.c.b16 %v961, %v957
      %v1450 = vpack.c.b16 %v962, %v958
      %v1451 = vpack.c.b16 %v963, %v959
      %v1452 = vpack.c.b16 %v968, %v964
      %v1453 = vpack.c.b16 %v969, %v965
      %v1454 = vpack.c.b16 %v970, %v966
      %v1455 = vpack.c.b16 %v971, %v967
      %v1456 = vpack.c.b16 %v976, %v972
      %v1457 = vpack.c.b16 %v977, %v973
      %v1458 = vpack.c.b16 %v978, %v974
      %v1459 = vpack.c.b16 %v979, %v975
      %v1460 = vpack.c.b16 %v984, %v980
      %v1461 = vpack.c.b16 %v985, %v981
      %v1462 = vpack.c.b16 %v986, %v982
      %v1463 = vpack.c.b16 %v987, %v983
      %v1464 = vpack.c.b16 %v992, %v988
      %v1465 = vpack.c.b16 %v993, %v989
      %v1466 = vpack.c.b16 %v994, %v990
      %v1467 = vpack.c.b16 %v995, %v991
      %v1468 = vpack.c.b16 %v1000, %v996
      %v1469 = vpack.c.b16 %v1001, %v997
      %v1470 = vpack.c.b16 %v1002, %v998
      %v1471 = vpack.c.b16 %v1003, %v999
      %v1472 = vpack.c.b16 %v1008, %v1004
      %v1473 = vpack.c.b16 %v1009, %v1005
      %v1474 = vpack.c.b16 %v1010, %v1006
      %v1475 = vpack.c.b16 %v1011, %v1007
      %v1476 = vpack.c.b16 %v1016, %v1012
      %v1477 = vpack.c.b16 %v1017, %v1013
      %v1478 = vpack.c.b16 %v1018, %v1014
      %v1479 = vpack.c.b16 %v1019, %v1015
      %v1480 = vpack.c.b16 %v1024, %v1020
      %v1481 = vpack.c.b16 %v1025, %v1021
      %v1482 = vpack.c.b16 %v1026, %v1022
      %v1483 = vpack.c.b16 %v1027, %v1023
      %v1484 = vpack.c.b16 %v1032, %v1028
      %v1485 = vpack.c.b16 %v1033, %v1029
      %v1486 = vpack.c.b16 %v1034, %v1030
      %v1487 = vpack.c.b16 %v1035, %v1031
      %v1488 = vpack.c.b16 %v1040, %v1036
      %v1489 = vpack.c.b16 %v1041, %v1037
      %v1490 = vpack.c.b16 %v1042, %v1038
      %v1491 = vpack.c.b16 %v1043, %v1039
      %v1492 = vpack.c.b16 %v1048, %v1044
      %v1493 = vpack.c.b16 %v1049, %v1045
      %v1494 = vpack.c.b16 %v1050, %v1046
      %v1495 = vpack.c.b16 %v1051, %v1047
      %v1496 = vpack.c.b16 %v1056, %v1052
      %v1497 = vpack.c.b16 %v1057, %v1053
      %v1498 = vpack.c.b16 %v1058, %v1054
      %v1499 = vpack.c.b16 %v1059, %v1055
      %v1500 = vpack.c.b16 %v1064, %v1060
      %v1501 = vpack.c.b16 %v1065, %v1061
      %v1502 = vpack.c.b16 %v1066, %v1062
      %v1503 = vpack.c.b16 %v1067, %v1063
      %v1504 = vpack.c.b16 %v1072, %v1068
      %v1505 = vpack.c.b16 %v1073, %v1069
      %v1506 = vpack.c.b16 %v1074, %v1070
      %v1507 = vpack.c.b16 %v1075, %v1071
      %v1508 = vpack.c.b16 %v1080, %v1076
      %v1509 = vpack.c.b16 %v1081, %v1077
      %v1510 = vpack.c.b16 %v1082, %v1078
      %v1511 = vpack.c.b16 %v1083, %v1079
      %v1512 = vpack.c.b16 %v1088, %v1084
      %v1513 = vpack.c.b16 %v1089, %v1085
      %v1514 = vpack.c.b16 %v1090, %v1086
      %v1515 = vpack.c.b16 %v1091, %v1087
      %v1516 = vpack.c.b16 %v1096, %v1092
      %v1517 = vpack.c.b16 %v1097, %v1093
      %v1518 = vpack.c.b16 %v1098, %v1094
      %v1519 = vpack.c.b16 %v1099, %v1095
      %v1520 = vpack.c.b16 %v1104, %v1100
      %v1521 = vpack.c.b16 %v1105, %v1101
      %v1522 = vpack.c.b16 %v1106, %v1102
      %v1523 = vpack.c.b16 %v1107, %v1103
      %v1524 = vpack.c.b16 %v1112, %v1108
      %v1525 = vpack.c.b16 %v1113, %v1109
      %v1526 = vpack.c.b16 %v1114, %v1110
      %v1527 = vpack.c.b16 %v1115, %v1111
      %v1528 = vpack.c.b16 %v1120, %v1116
      %v1529 = vpack.c.b16 %v1121, %v1117
      %v1530 = vpack.c.b16 %v1122, %v1118
      %v1531 = vpack.c.b16 %v1123, %v1119
      %v1532 = vpack.c.b16 %v1128, %v1124
      %v1533 = vpack.c.b16 %v1129, %v1125
      %v1534 = vpack.c.b16 %v1130, %v1126
      %v1535 = vpack.c.b16 %v1131, %v1127
      %v1536 = vpack.c.b16 %v1136, %v1132
      %v1537 = vpack.c.b16 %v1137, %v1133
      %v1538 = vpack.c.b16 %v1138, %v1134
      %v1539 = vpack.c.b16 %v1139, %v1135
      %v1540 = vpack.c.b16 %v1144, %v1140
      %v1541 = vpack.c.b16 %v1145, %v1141
      %v1542 = vpack.c.b16 %v1146, %v1142
      %v1543 = vpack.c.b16 %v1147, %v1143
      %v1544 = vpack.c.b16 %v1152, %v1148
      %v1545 = vpack.c.b16 %v1153, %v1149
      %v1546 = vpack.c.b16 %v1154, %v1150
      %v1547 = vpack.c.b16 %v1155, %v1151
      %v1548 = vpack.c.b16 %v1160, %v1156
      %v1549 = vpack.c.b16 %v1161, %v1157
      %v1550 = vpack.c.b16 %v1162, %v1158
      %v1551 = vpack.c.b16 %v1163, %v1159
      %v1552 = vpack.c.b16 %v1168, %v1164
      %v1553 = vpack.c.b16 %v1169, %v1165
      %v1554 = vpack.c.b16 %v1170, %v1166
      %v1555 = vpack.c.b16 %v1171, %v1167
      %v1556 = vpack.c.b16 %v1176, %v1172
      %v1557 = vpack.c.b16 %v1177, %v1173
      %v1558 = vpack.c.b16 %v1178, %v1174
      %v1559 = vpack.c.b16 %v1179, %v1175
      %v1560 = vpack.c.b16 %v1184, %v1180
      %v1561 = vpack.c.b16 %v1185, %v1181
      %v1562 = vpack.c.b16 %v1186, %v1182
      %v1563 = vpack.c.b16 %v1187, %v1183
      %v1564 = vpack.c.b16 %v1192, %v1188
      %v1565 = vpack.c.b16 %v1193, %v1189
      %v1566 = vpack.c.b16 %v1194, %v1190
      %v1567 = vpack.c.b16 %v1195, %v1191
      %v1568 = vpack.c.b16 %v1200, %v1196
      %v1569 = vpack.c.b16 %v1201, %v1197
      %v1570 = vpack.c.b16 %v1202, %v1198
      %v1571 = vpack.c.b16 %v1203, %v1199
      %v1572 = vpack.c.b16 %v1208, %v1204
      %v1573 = vpack.c.b16 %v1209, %v1205
      %v1574 = vpack.c.b16 %v1210, %v1206
      %v1575 = vpack.c.b16 %v1211, %v1207
      %v1576 = vpack.c.b16 %v1216, %v1212
      %v1577 = vpack.c.b16 %v1217, %v1213
      %v1578 = vpack.c.b16 %v1218, %v1214
      %v1579 = vpack.c.b16 %v1219, %v1215
      %v1580 = vpack.c.b16 %v1224, %v1220
      %v1581 = vpack.c.b16 %v1225, %v1221
      %v1582 = vpack.c.b16 %v1226, %v1222
      %v1583 = vpack.c.b16 %v1227, %v1223
      %v1584 = vpack.c.b16 %v1232, %v1228
      %v1585 = vpack.c.b16 %v1233, %v1229
      %v1586 = vpack.c.b16 %v1234, %v1230
      %v1587 = vpack.c.b16 %v1235, %v1231
      %v1588 = vpack.c.b16 %v1240, %v1236
      %v1589 = vpack.c.b16 %v1241, %v1237
      %v1590 = vpack.c.b16 %v1242, %v1238
      %v1591 = vpack.c.b16 %v1243, %v1239
      %v1592 = vpack.c.b16 %v1248, %v1244
      %v1593 = vpack.c.b16 %v1249, %v1245
      %v1594 = vpack.c.b16 %v1250, %v1246
      %v1595 = vpack.c.b16 %v1251, %v1247
      %v1596 = vpack.c.b16 %v1256, %v1252
      %v1597 = vpack.c.b16 %v1257, %v1253
      %v1598 = vpack.c.b16 %v1258, %v1254
      %v1599 = vpack.c.b16 %v1259, %v1255
      %v1600 = vpack.c.b16 %v1264, %v1260
      %v1601 = vpack.c.b16 %v1265, %v1261
      %v1602 = vpack.c.b16 %v1266, %v1262
      %v1603 = vpack.c.b16 %v1267, %v1263
      %v1604 = vpack.c.b16 %v1272, %v1268
      %v1605 = vpack.c.b16 %v1273, %v1269
      %v1606 = vpack.c.b16 %v1274, %v1270
      %v1607 = vpack.c.b16 %v1275, %v1271
      %v1608 = vpack.c.b16 %v1280, %v1276
      %v1609 = vpack.c.b16 %v1281, %v1277
      %v1610 = vpack.c.b16 %v1282, %v1278
      %v1611 = vpack.c.b16 %v1283, %v1279
      %v1612 = vpack.c.b16 %v1288, %v1284
      %v1613 = vpack.c.b16 %v1289, %v1285
      %v1614 = vpack.c.b16 %v1290, %v1286
      %v1615 = vpack.c.b16 %v1291, %v1287
      %v1616 = vpack.c.b16 %v1296, %v1292
      %v1617 = vpack.c.b16 %v1297, %v1293
      %v1618 = vpack.c.b16 %v1298, %v1294
      %v1619 = vpack.c.b16 %v1299, %v1295
      %v1620 = vpack.c.b16 %v1304, %v1300
      %v1621 = vpack.c.b16 %v1305, %v1301
      %v1622 = vpack.c.b16 %v1306, %v1302
      %v1623 = vpack.c.b16 %v1307, %v1303
      %v1624 = vpack.c.b16 %v1312, %v1308
      %v1625 = vpack.c.b16 %v1313, %v1309
      %v1626 = vpack.c.b16 %v1314, %v1310
      %v1627 = vpack.c.b16 %v1315, %v1311
      %v1628 = vpack.c.b16 %v1320, %v1316
      %v1629 = vpack.c.b16 %v1321, %v1317
      %v1630 = vpack.c.b16 %v1322, %v1318
      %v1631 = vpack.c.b16 %v1323, %v1319
      %v1632 = vpack.c.b16 %v1328, %v1324
      %v1633 = vpack.c.b16 %v1329, %v1325
      %v1634 = vpack.c.b16 %v1330, %v1326
      %v1635 = vpack.c.b16 %v1331, %v1327
      %v1636 = vpack.c.b16 %v1336, %v1332
      %v1637 = vpack.c.b16 %v1337, %v1333
      %v1638 = vpack.c.b16 %v1338, %v1334
      %v1639 = vpack.c.b16 %v1339, %v1335
      %v1640 = vpack.c.b16 %v1344, %v1340
      %v1641 = vpack.c.b16 %v1345, %v1341
      %v1642 = vpack.c.b16 %v1346, %v1342
      %v1643 = vpack.c.b16 %v1347, %v1343
      %v1644 = vpack.c.b16 %v1352, %v1348
      %v1645 = vpack.c.b16 %v1353, %v1349
      %v1646 = vpack.c.b16 %v1354, %v1350
      %v1647 = vpack.c.b16 %v1355, %v1351
      %v1648 = vpack.c.b16 %v1360, %v1356
      %v1649 = vpack.c.b16 %v1361, %v1357
      %v1650 = vpack.c.b16 %v1362, %v1358
      %v1651 = vpack.c.b16 %v1363, %v1359
      %v1652 = vpack.c.b16 %v1368, %v1364
      %v1653 = vpack.c.b16 %v1369, %v1365
      %v1654 = vpack.c.b16 %v1370, %v1366
      %v1655 = vpack.c.b16 %v1371, %v1367
      %v1656 = vpack.c.b16 %v1376, %v1372
      %v1657 = vpack.c.b16 %v1377, %v1373
      %v1658 = vpack.c.b16 %v1378, %v1374
      %v1659 = vpack.c.b16 %v1379, %v1375
      %v1660 = vpack.c.b16 %v1384, %v1380
      %v1661 = vpack.c.b16 %v1385, %v1381
      %v1662 = vpack.c.b16 %v1386, %v1382
      %v1663 = vpack.c.b16 %v1387, %v1383
      %v1664 = vpack.c.b16 %v1392, %v1388
      %v1665 = vpack.c.b16 %v1393, %v1389
      %v1666 = vpack.c.b16 %v1394, %v1390
      %v1667 = vpack.c.b16 %v1395, %v1391
      %v1668 = vpack.c.b16 %v1400, %v1396
      %v1669 = vpack.c.b16 %v1401, %v1397
      %v1670 = vpack.c.b16 %v1402, %v1398
      %v1671 = vpack.c.b16 %v1403, %v1399
      %v1672 = vpack.c.b16 %v1408, %v1404
      %v1673 = vpack.c.b16 %v1409, %v1405
      %v1674 = vpack.c.b16 %v1410, %v1406
      %v1675 = vpack.c.b16 %v1411, %v1407
      %v1676 = vpack.c.b16 %v1416, %v1412
      %v1677 = vpack.c.b16 %v1417, %v1413
      %v1678 = vpack.c.b16 %v1418, %v1414
      %v1679 = vpack.c.b16 %v1419, %v1415
      %v1680 = vpack.c.b16 %v1424, %v1420
      %v1681 = vpack.c.b16 %v1425, %v1421
      %v1682 = vpack.c.b16 %v1426, %v1422
      %v1683 = vpack.c.b16 %v1427, %v1423
      %1940 = vmatprep.subr.bf16.mxu0 %v1457
      %1941 = vmatpush1.bf16.msra.mxu0 %v1456
      %1942 = vmatprep.subr.bf16.mxu0 %v1453
      %1943 = vmatpush1.bf16.msra.mxu0 %v1452
      %1944 = vmatprep.subr.bf16.mxu0 %v1449
      %1945 = vmatpush1.bf16.msra.mxu0 %v1448
      %1946 = vmatprep.subr.bf16.mxu0 %v1445
      %1947 = vmatpush1.bf16.msra.mxu0 %v1444
      %1948 = vmatprep.subr.bf16.mxu0 %v1441
      %1949 = vmatpush1.bf16.msra.mxu0 %v1440
      %1950 = vmatprep.subr.bf16.mxu0 %v1437
      %1951 = vmatpush1.bf16.msra.mxu0 %v1436
      %1952 = vmatprep.subr.bf16.mxu0 %v1433
      %1953 = vmatpush1.bf16.msra.mxu0 %v1432
      %1954 = vmatprep.subr.bf16.mxu0 %v1429
      %1955 = vmatpush1.bf16.msra.mxu0 %v1428
      %1956 = vmatprep.subr.bf16.mxu0 %v1489
      %1957 = vmatpush2.bf16.msra.mxu0 %v1488
      %1958 = vmatprep.subr.bf16.mxu0 %v1485
      %1959 = vmatpush2.bf16.msra.mxu0 %v1484
      %1960 = vmatprep.subr.bf16.mxu0 %v1481
      %1961 = vmatpush2.bf16.msra.mxu0 %v1480
      %1962 = vmatprep.subr.bf16.mxu0 %v1477
      %1963 = vmatpush2.bf16.msra.mxu0 %v1476
      %1964 = vmatprep.subr.bf16.mxu0 %v1473
      %1965 = vmatpush2.bf16.msra.mxu0 %v1472
      %1966 = vmatprep.subr.bf16.mxu0 %v1469
      %1967 = vmatpush2.bf16.msra.mxu0 %v1468
      %1968 = vmatprep.subr.bf16.mxu0 %v1465
      %1969 = vmatpush2.bf16.msra.mxu0 %v1464
      %1970 = vmatprep.subr.bf16.mxu0 %v1461
      %1971 = vmatpush2.bf16.msra.mxu0 %v1460
      %1972 = vmatprep.mubr.bf16.mxu0 %v645
      %1973 = vmatmul.mubr.bf16.gmra.mxu0 %v644
      %v1974 = vpop.f32.mrf.mxu0
      %v1975 = vadd.f32 %v603, %v1974
      %v1976 = vpop.f32.mrf.mxu0
      %v1977 = vadd.f32 %v607, %v1976
      %v1978 = vpop.f32.mrf.mxu0
      %v1979 = vadd.f32 %v603, %v1978
      %v1980 = vpop.f32.mrf.mxu0
      %v1981 = vadd.f32 %v607, %v1980
      %1982 = vdwg.mxu0
      %1983 = vmatprep.subr.bf16.mxu0 %v1521
      %1984 = vmatpush1.bf16.msra.mxu0 %v1520
      %1985 = vmatprep.subr.bf16.mxu0 %v1517
      %1986 = vmatpush1.bf16.msra.mxu0 %v1516
      %1987 = vmatprep.subr.bf16.mxu0 %v1513
      %1988 = vmatpush1.bf16.msra.mxu0 %v1512
      %1989 = vmatprep.subr.bf16.mxu0 %v1509
      %1990 = vmatpush1.bf16.msra.mxu0 %v1508
      %1991 = vmatprep.subr.bf16.mxu0 %v1505
      %1992 = vmatpush1.bf16.msra.mxu0 %v1504
      %1993 = vmatprep.subr.bf16.mxu0 %v1501
      %1994 = vmatpush1.bf16.msra.mxu0 %v1500
      %1995 = vmatprep.subr.bf16.mxu0 %v1497
      %1996 = vmatpush1.bf16.msra.mxu0 %v1496
      %1997 = vmatprep.subr.bf16.mxu0 %v1493
      %1998 = vmatpush1.bf16.msra.mxu0 %v1492
      %1999 = vmatprep.subr.bf16.mxu0 %v1553
      %2000 = vmatpush2.bf16.msra.mxu0 %v1552
      %2001 = vmatprep.subr.bf16.mxu0 %v1549
      %2002 = vmatpush2.bf16.msra.mxu0 %v1548
      %2003 = vmatprep.subr.bf16.mxu0 %v1545
      %2004 = vmatpush2.bf16.msra.mxu0 %v1544
      %2005 = vmatprep.subr.bf16.mxu0 %v1541
      %2006 = vmatpush2.bf16.msra.mxu0 %v1540
      %2007 = vmatprep.subr.bf16.mxu0 %v1537
      %2008 = vmatpush2.bf16.msra.mxu0 %v1536
      %2009 = vmatprep.subr.bf16.mxu0 %v1533
      %2010 = vmatpush2.bf16.msra.mxu0 %v1532
      %2011 = vmatprep.subr.bf16.mxu0 %v1529
      %2012 = vmatpush2.bf16.msra.mxu0 %v1528
      %2013 = vmatprep.subr.bf16.mxu0 %v1525
      %2014 = vmatpush2.bf16.msra.mxu0 %v1524
      %2015 = vmatprep.mubr.bf16.mxu0 %v647
      %2016 = vmatmul.mubr.bf16.gmra.mxu0 %v646
      %v2017 = vpop.f32.mrf.mxu0
      %v2018 = vadd.f32 %v1975, %v2017
      %v2019 = vpop.f32.mrf.mxu0
      %v2020 = vadd.f32 %v1977, %v2019
      %v2021 = vpop.f32.mrf.mxu0
      %v2022 = vadd.f32 %v1979, %v2021
      %v2023 = vpop.f32.mrf.mxu0
      %v2024 = vadd.f32 %v1981, %v2023
      %2025 = vdwg.mxu0
      %2026 = vmatprep.subr.bf16.mxu0 %v1585
      %2027 = vmatpush1.bf16.msra.mxu0 %v1584
      %2028 = vmatprep.subr.bf16.mxu0 %v1581
      %2029 = vmatpush1.bf16.msra.mxu0 %v1580
      %2030 = vmatprep.subr.bf16.mxu0 %v1577
      %2031 = vmatpush1.bf16.msra.mxu0 %v1576
      %2032 = vmatprep.subr.bf16.mxu0 %v1573
      %2033 = vmatpush1.bf16.msra.mxu0 %v1572
      %2034 = vmatprep.subr.bf16.mxu0 %v1569
      %2035 = vmatpush1.bf16.msra.mxu0 %v1568
      %2036 = vmatprep.subr.bf16.mxu0 %v1565
      %2037 = vmatpush1.bf16.msra.mxu0 %v1564
      %2038 = vmatprep.subr.bf16.mxu0 %v1561
      %2039 = vmatpush1.bf16.msra.mxu0 %v1560
      %2040 = vmatprep.subr.bf16.mxu0 %v1557
      %2041 = vmatpush1.bf16.msra.mxu0 %v1556
      %2042 = vmatprep.subr.bf16.mxu0 %v1617
      %2043 = vmatpush2.bf16.msra.mxu0 %v1616
      %2044 = vmatprep.subr.bf16.mxu0 %v1613
      %2045 = vmatpush2.bf16.msra.mxu0 %v1612
      %2046 = vmatprep.subr.bf16.mxu0 %v1609
      %2047 = vmatpush2.bf16.msra.mxu0 %v1608
      %2048 = vmatprep.subr.bf16.mxu0 %v1605
      %2049 = vmatpush2.bf16.msra.mxu0 %v1604
      %2050 = vmatprep.subr.bf16.mxu0 %v1601
      %2051 = vmatpush2.bf16.msra.mxu0 %v1600
      %2052 = vmatprep.subr.bf16.mxu0 %v1597
      %2053 = vmatpush2.bf16.msra.mxu0 %v1596
      %2054 = vmatprep.subr.bf16.mxu0 %v1593
      %2055 = vmatpush2.bf16.msra.mxu0 %v1592
      %2056 = vmatprep.subr.bf16.mxu0 %v1589
      %2057 = vmatpush2.bf16.msra.mxu0 %v1588
      %2058 = vmatprep.mubr.bf16.mxu0 %v649
      %2059 = vmatmul.mubr.bf16.gmra.mxu0 %v648
      %v2060 = vpop.f32.mrf.mxu0
      %v2061 = vadd.f32 %v2018, %v2060
      %v2062 = vpop.f32.mrf.mxu0
      %v2063 = vadd.f32 %v2020, %v2062
      %v2064 = vpop.f32.mrf.mxu0
      %v2065 = vadd.f32 %v2022, %v2064
      %v2066 = vpop.f32.mrf.mxu0
      %v2067 = vadd.f32 %v2024, %v2066
      %2068 = vdwg.mxu0
      %2069 = vmatprep.subr.bf16.mxu0 %v1649
      %2070 = vmatpush1.bf16.msra.mxu0 %v1648
      %2071 = vmatprep.subr.bf16.mxu0 %v1645
      %2072 = vmatpush1.bf16.msra.mxu0 %v1644
      %2073 = vmatprep.subr.bf16.mxu0 %v1641
      %2074 = vmatpush1.bf16.msra.mxu0 %v1640
      %2075 = vmatprep.subr.bf16.mxu0 %v1637
      %2076 = vmatpush1.bf16.msra.mxu0 %v1636
      %2077 = vmatprep.subr.bf16.mxu0 %v1633
      %2078 = vmatpush1.bf16.msra.mxu0 %v1632
      %2079 = vmatprep.subr.bf16.mxu0 %v1629
      %2080 = vmatpush1.bf16.msra.mxu0 %v1628
      %2081 = vmatprep.subr.bf16.mxu0 %v1625
      %2082 = vmatpush1.bf16.msra.mxu0 %v1624
      %2083 = vmatprep.subr.bf16.mxu0 %v1621
      %2084 = vmatpush1.bf16.msra.mxu0 %v1620
      %2085 = vmatprep.subr.bf16.mxu0 %v1681
      %2086 = vmatpush2.bf16.msra.mxu0 %v1680
      %2087 = vmatprep.subr.bf16.mxu0 %v1677
      %2088 = vmatpush2.bf16.msra.mxu0 %v1676
      %2089 = vmatprep.subr.bf16.mxu0 %v1673
      %2090 = vmatpush2.bf16.msra.mxu0 %v1672
      %2091 = vmatprep.subr.bf16.mxu0 %v1669
      %2092 = vmatpush2.bf16.msra.mxu0 %v1668
      %2093 = vmatprep.subr.bf16.mxu0 %v1665
      %2094 = vmatpush2.bf16.msra.mxu0 %v1664
      %2095 = vmatprep.subr.bf16.mxu0 %v1661
      %2096 = vmatpush2.bf16.msra.mxu0 %v1660
      %2097 = vmatprep.subr.bf16.mxu0 %v1657
      %2098 = vmatpush2.bf16.msra.mxu0 %v1656
      %2099 = vmatprep.subr.bf16.mxu0 %v1653
      %2100 = vmatpush2.bf16.msra.mxu0 %v1652
      %2101 = vmatprep.mubr.bf16.mxu0 %v651
      %2102 = vmatmul.mubr.bf16.gmra.mxu0 %v650
      %v2103 = vpop.f32.mrf.mxu0
      %v2104 = vadd.f32 %v2061, %v2103
      %v2105 = vpop.f32.mrf.mxu0
      %v2106 = vadd.f32 %v2063, %v2105
      %v2107 = vpop.f32.mrf.mxu0
      %v2108 = vadd.f32 %v2065, %v2107
      %v2109 = vpop.f32.mrf.mxu0
      %v2110 = vadd.f32 %v2067, %v2109
      %2111 = vdwg.mxu0
      %2112 = vmatprep.subr.bf16.mxu0 %v1459
      %2113 = vmatpush1.bf16.msra.mxu0 %v1458
      %2114 = vmatprep.subr.bf16.mxu0 %v1455
      %2115 = vmatpush1.bf16.msra.mxu0 %v1454
      %2116 = vmatprep.subr.bf16.mxu0 %v1451
      %2117 = vmatpush1.bf16.msra.mxu0 %v1450
      %2118 = vmatprep.subr.bf16.mxu0 %v1447
      %2119 = vmatpush1.bf16.msra.mxu0 %v1446
      %2120 = vmatprep.subr.bf16.mxu0 %v1443
      %2121 = vmatpush1.bf16.msra.mxu0 %v1442
      %2122 = vmatprep.subr.bf16.mxu0 %v1439
      %2123 = vmatpush1.bf16.msra.mxu0 %v1438
      %2124 = vmatprep.subr.bf16.mxu0 %v1435
      %2125 = vmatpush1.bf16.msra.mxu0 %v1434
      %2126 = vmatprep.subr.bf16.mxu0 %v1431
      %2127 = vmatpush1.bf16.msra.mxu0 %v1430
      %2128 = vmatprep.subr.bf16.mxu0 %v1491
      %2129 = vmatpush2.bf16.msra.mxu0 %v1490
      %2130 = vmatprep.subr.bf16.mxu0 %v1487
      %2131 = vmatpush2.bf16.msra.mxu0 %v1486
      %2132 = vmatprep.subr.bf16.mxu0 %v1483
      %2133 = vmatpush2.bf16.msra.mxu0 %v1482
      %2134 = vmatprep.subr.bf16.mxu0 %v1479
      %2135 = vmatpush2.bf16.msra.mxu0 %v1478
      %2136 = vmatprep.subr.bf16.mxu0 %v1475
      %2137 = vmatpush2.bf16.msra.mxu0 %v1474
      %2138 = vmatprep.subr.bf16.mxu0 %v1471
      %2139 = vmatpush2.bf16.msra.mxu0 %v1470
      %2140 = vmatprep.subr.bf16.mxu0 %v1467
      %2141 = vmatpush2.bf16.msra.mxu0 %v1466
      %2142 = vmatprep.subr.bf16.mxu0 %v1463
      %2143 = vmatpush2.bf16.msra.mxu0 %v1462
      %2144 = vmatprep.mubr.bf16.mxu0 %v645
      %2145 = vmatmul.mubr.bf16.gmra.mxu0 %v644
      %v2146 = vpop.f32.mrf.mxu0
      %v2147 = vadd.f32 %v611, %v2146
      %v2148 = vpop.f32.mrf.mxu0
      %v2149 = vadd.f32 %v615, %v2148
      %v2150 = vpop.f32.mrf.mxu0
      %v2151 = vadd.f32 %v611, %v2150
      %v2152 = vpop.f32.mrf.mxu0
      %v2153 = vadd.f32 %v615, %v2152
      %2154 = vdwg.mxu0
      %2155 = vmatprep.subr.bf16.mxu0 %v1523
      %2156 = vmatpush1.bf16.msra.mxu0 %v1522
      %2157 = vmatprep.subr.bf16.mxu0 %v1519
      %2158 = vmatpush1.bf16.msra.mxu0 %v1518
      %2159 = vmatprep.subr.bf16.mxu0 %v1515
      %2160 = vmatpush1.bf16.msra.mxu0 %v1514
      %2161 = vmatprep.subr.bf16.mxu0 %v1511
      %2162 = vmatpush1.bf16.msra.mxu0 %v1510
      %2163 = vmatprep.subr.bf16.mxu0 %v1507
      %2164 = vmatpush1.bf16.msra.mxu0 %v1506
      %2165 = vmatprep.subr.bf16.mxu0 %v1503
      %2166 = vmatpush1.bf16.msra.mxu0 %v1502
      %2167 = vmatprep.subr.bf16.mxu0 %v1499
      %2168 = vmatpush1.bf16.msra.mxu0 %v1498
      %2169 = vmatprep.subr.bf16.mxu0 %v1495
      %2170 = vmatpush1.bf16.msra.mxu0 %v1494
      %2171 = vmatprep.subr.bf16.mxu0 %v1555
      %2172 = vmatpush2.bf16.msra.mxu0 %v1554
      %2173 = vmatprep.subr.bf16.mxu0 %v1551
      %2174 = vmatpush2.bf16.msra.mxu0 %v1550
      %2175 = vmatprep.subr.bf16.mxu0 %v1547
      %2176 = vmatpush2.bf16.msra.mxu0 %v1546
      %2177 = vmatprep.subr.bf16.mxu0 %v1543
      %2178 = vmatpush2.bf16.msra.mxu0 %v1542
      %2179 = vmatprep.subr.bf16.mxu0 %v1539
      %2180 = vmatpush2.bf16.msra.mxu0 %v1538
      %2181 = vmatprep.subr.bf16.mxu0 %v1535
      %2182 = vmatpush2.bf16.msra.mxu0 %v1534
      %2183 = vmatprep.subr.bf16.mxu0 %v1531
      %2184 = vmatpush2.bf16.msra.mxu0 %v1530
      %2185 = vmatprep.subr.bf16.mxu0 %v1527
      %2186 = vmatpush2.bf16.msra.mxu0 %v1526
      %2187 = vmatprep.mubr.bf16.mxu0 %v647
      %2188 = vmatmul.mubr.bf16.gmra.mxu0 %v646
      %v2189 = vpop.f32.mrf.mxu0
      %v2190 = vadd.f32 %v2147, %v2189
      %v2191 = vpop.f32.mrf.mxu0
      %v2192 = vadd.f32 %v2149, %v2191
      %v2193 = vpop.f32.mrf.mxu0
      %v2194 = vadd.f32 %v2151, %v2193
      %v2195 = vpop.f32.mrf.mxu0
      %v2196 = vadd.f32 %v2153, %v2195
      %2197 = vdwg.mxu0
      %2198 = vmatprep.subr.bf16.mxu0 %v1587
      %2199 = vmatpush1.bf16.msra.mxu0 %v1586
      %2200 = vmatprep.subr.bf16.mxu0 %v1583
      %2201 = vmatpush1.bf16.msra.mxu0 %v1582
      %2202 = vmatprep.subr.bf16.mxu0 %v1579
      %2203 = vmatpush1.bf16.msra.mxu0 %v1578
      %2204 = vmatprep.subr.bf16.mxu0 %v1575
      %2205 = vmatpush1.bf16.msra.mxu0 %v1574
      %2206 = vmatprep.subr.bf16.mxu0 %v1571
      %2207 = vmatpush1.bf16.msra.mxu0 %v1570
      %2208 = vmatprep.subr.bf16.mxu0 %v1567
      %2209 = vmatpush1.bf16.msra.mxu0 %v1566
      %2210 = vmatprep.subr.bf16.mxu0 %v1563
      %2211 = vmatpush1.bf16.msra.mxu0 %v1562
      %2212 = vmatprep.subr.bf16.mxu0 %v1559
      %2213 = vmatpush1.bf16.msra.mxu0 %v1558
      %2214 = vmatprep.subr.bf16.mxu0 %v1619
      %2215 = vmatpush2.bf16.msra.mxu0 %v1618
      %2216 = vmatprep.subr.bf16.mxu0 %v1615
      %2217 = vmatpush2.bf16.msra.mxu0 %v1614
      %2218 = vmatprep.subr.bf16.mxu0 %v1611
      %2219 = vmatpush2.bf16.msra.mxu0 %v1610
      %2220 = vmatprep.subr.bf16.mxu0 %v1607
      %2221 = vmatpush2.bf16.msra.mxu0 %v1606
      %2222 = vmatprep.subr.bf16.mxu0 %v1603
      %2223 = vmatpush2.bf16.msra.mxu0 %v1602
      %2224 = vmatprep.subr.bf16.mxu0 %v1599
      %2225 = vmatpush2.bf16.msra.mxu0 %v1598
      %2226 = vmatprep.subr.bf16.mxu0 %v1595
      %2227 = vmatpush2.bf16.msra.mxu0 %v1594
      %2228 = vmatprep.subr.bf16.mxu0 %v1591
      %2229 = vmatpush2.bf16.msra.mxu0 %v1590
      %2230 = vmatprep.mubr.bf16.mxu0 %v649
      %2231 = vmatmul.mubr.bf16.gmra.mxu0 %v648
      %v2232 = vpop.f32.mrf.mxu0
      %v2233 = vadd.f32 %v2190, %v2232
      %v2234 = vpop.f32.mrf.mxu0
      %v2235 = vadd.f32 %v2192, %v2234
      %v2236 = vpop.f32.mrf.mxu0
      %v2237 = vadd.f32 %v2194, %v2236
      %v2238 = vpop.f32.mrf.mxu0
      %v2239 = vadd.f32 %v2196, %v2238
      %2240 = vdwg.mxu0
      %2241 = vmatprep.subr.bf16.mxu0 %v1651
      %2242 = vmatpush1.bf16.msra.mxu0 %v1650
      %2243 = vmatprep.subr.bf16.mxu0 %v1647
      %2244 = vmatpush1.bf16.msra.mxu0 %v1646
      %2245 = vmatprep.subr.bf16.mxu0 %v1643
      %2246 = vmatpush1.bf16.msra.mxu0 %v1642
      %2247 = vmatprep.subr.bf16.mxu0 %v1639
      %2248 = vmatpush1.bf16.msra.mxu0 %v1638
      %2249 = vmatprep.subr.bf16.mxu0 %v1635
      %2250 = vmatpush1.bf16.msra.mxu0 %v1634
      %2251 = vmatprep.subr.bf16.mxu0 %v1631
      %2252 = vmatpush1.bf16.msra.mxu0 %v1630
      %2253 = vmatprep.subr.bf16.mxu0 %v1627
      %2254 = vmatpush1.bf16.msra.mxu0 %v1626
      %2255 = vmatprep.subr.bf16.mxu0 %v1623
      %2256 = vmatpush1.bf16.msra.mxu0 %v1622
      %2257 = vmatprep.subr.bf16.mxu0 %v1683
      %2258 = vmatpush2.bf16.msra.mxu0 %v1682
      %2259 = vmatprep.subr.bf16.mxu0 %v1679
      %2260 = vmatpush2.bf16.msra.mxu0 %v1678
      %2261 = vmatprep.subr.bf16.mxu0 %v1675
      %2262 = vmatpush2.bf16.msra.mxu0 %v1674
      %2263 = vmatprep.subr.bf16.mxu0 %v1671
      %2264 = vmatpush2.bf16.msra.mxu0 %v1670
      %2265 = vmatprep.subr.bf16.mxu0 %v1667
      %2266 = vmatpush2.bf16.msra.mxu0 %v1666
      %2267 = vmatprep.subr.bf16.mxu0 %v1663
      %2268 = vmatpush2.bf16.msra.mxu0 %v1662
      %2269 = vmatprep.subr.bf16.mxu0 %v1659
      %2270 = vmatpush2.bf16.msra.mxu0 %v1658
      %2271 = vmatprep.subr.bf16.mxu0 %v1655
      %2272 = vmatpush2.bf16.msra.mxu0 %v1654
      %2273 = vmatprep.mubr.bf16.mxu0 %v651
      %2274 = vmatmul.mubr.bf16.gmra.mxu0 %v650
      %v2275 = vpop.f32.mrf.mxu0
      %v2276 = vadd.f32 %v2233, %v2275
      %v2277 = vpop.f32.mrf.mxu0
      %v2278 = vadd.f32 %v2235, %v2277
      %v2279 = vpop.f32.mrf.mxu0
      %v2280 = vadd.f32 %v2237, %v2279
      %v2281 = vpop.f32.mrf.mxu0
      %v2282 = vadd.f32 %v2239, %v2281
      %2283 = vdwg.mxu0
      %v2284 = vmax.f32 %v2104, 0.0
      %v2285 = vmax.f32 %v2106, 0.0
      %v2286 = vmax.f32 %v2276, 0.0
      %v2287 = vmax.f32 %v2278, 0.0
      %v2288 = vmax.f32 %v2108, 0.0
      %v2289 = vmax.f32 %v2110, 0.0
      %v2290 = vmax.f32 %v2280, 0.0
      %v2291 = vmax.f32 %v2282, 0.0
      %v2292 = vpack.c.bf16 %v2288, %v2284
      %v2293 = vpack.c.bf16 %v2289, %v2285
      %v2294 = vpack.c.bf16 %v2290, %v2286
      %v2295 = vpack.c.bf16 %v2291, %v2287
      %v2296 = vld [vmem:[%s3] sm:$0xff]
      %v2297 = vld [vmem:[%s3 + $0x8] sm:$0xff]
      %v2298 = vld [vmem:[%s3 + $0x10] sm:$0xff]
      %v2299 = vld [vmem:[%s3 + $0x18] sm:$0xff]
      %v2300 = vld [vmem:[%s3 + $0x20] sm:$0xff]
      %v2301 = vld [vmem:[%s3 + $0x28] sm:$0xff]
      %v2302 = vld [vmem:[%s3 + $0x30] sm:$0xff]
      %v2303 = vld [vmem:[%s3 + $0x38] sm:$0xff]
      %v2304 = vld [vmem:[%s3 + $0x40] sm:$0xff]
      %v2305 = vld [vmem:[%s3 + $0x48] sm:$0xff]
      %v2306 = vld [vmem:[%s3 + $0x50] sm:$0xff]
      %v2307 = vld [vmem:[%s3 + $0x58] sm:$0xff]
      %v2308 = vld [vmem:[%s3 + $0x60] sm:$0xff]
      %v2309 = vld [vmem:[%s3 + $0x68] sm:$0xff]
      %v2310 = vld [vmem:[%s3 + $0x70] sm:$0xff]
      %v2311 = vld [vmem:[%s3 + $0x78] sm:$0xff]
      %v2312 = vld [vmem:[%s3 + $0x80] sm:$0xff]
      %v2313 = vld [vmem:[%s3 + $0x88] sm:$0xff]
      %v2314 = vld [vmem:[%s3 + $0x90] sm:$0xff]
      %v2315 = vld [vmem:[%s3 + $0x98] sm:$0xff]
      %v2316 = vld [vmem:[%s3 + $0xa0] sm:$0xff]
      %v2317 = vld [vmem:[%s3 + $0xa8] sm:$0xff]
      %v2318 = vld [vmem:[%s3 + $0xb0] sm:$0xff]
      %v2319 = vld [vmem:[%s3 + $0xb8] sm:$0xff]
      %v2320 = vld [vmem:[%s3 + $0xc0] sm:$0xff]
      %v2321 = vld [vmem:[%s3 + $0xc8] sm:$0xff]
      %v2322 = vld [vmem:[%s3 + $0xd0] sm:$0xff]
      %v2323 = vld [vmem:[%s3 + $0xd8] sm:$0xff]
      %v2324 = vld [vmem:[%s3 + $0xe0] sm:$0xff]
      %v2325 = vld [vmem:[%s3 + $0xe8] sm:$0xff]
      %v2326 = vld [vmem:[%s3 + $0xf0] sm:$0xff]
      %v2327 = vld [vmem:[%s3 + $0xf8] sm:$0xff]
      %v2328 = vld [vmem:[%s3 + $0x100] sm:$0xff]
      %v2329 = vld [vmem:[%s3 + $0x108] sm:$0xff]
      %v2330 = vld [vmem:[%s3 + $0x110] sm:$0xff]
      %v2331 = vld [vmem:[%s3 + $0x118] sm:$0xff]
      %v2332 = vld [vmem:[%s3 + $0x120] sm:$0xff]
      %v2333 = vld [vmem:[%s3 + $0x128] sm:$0xff]
      %v2334 = vld [vmem:[%s3 + $0x130] sm:$0xff]
      %v2335 = vld [vmem:[%s3 + $0x138] sm:$0xff]
      %v2336 = vld [vmem:[%s3 + $0x140] sm:$0xff]
      %v2337 = vld [vmem:[%s3 + $0x148] sm:$0xff]
      %v2338 = vld [vmem:[%s3 + $0x150] sm:$0xff]
      %v2339 = vld [vmem:[%s3 + $0x158] sm:$0xff]
      %v2340 = vld [vmem:[%s3 + $0x160] sm:$0xff]
      %v2341 = vld [vmem:[%s3 + $0x168] sm:$0xff]
      %v2342 = vld [vmem:[%s3 + $0x170] sm:$0xff]
      %v2343 = vld [vmem:[%s3 + $0x178] sm:$0xff]
      %v2344 = vld [vmem:[%s3 + $0x180] sm:$0xff]
      %v2345 = vld [vmem:[%s3 + $0x188] sm:$0xff]
      %v2346 = vld [vmem:[%s3 + $0x190] sm:$0xff]
      %v2347 = vld [vmem:[%s3 + $0x198] sm:$0xff]
      %v2348 = vld [vmem:[%s3 + $0x1a0] sm:$0xff]
      %v2349 = vld [vmem:[%s3 + $0x1a8] sm:$0xff]
      %v2350 = vld [vmem:[%s3 + $0x1b0] sm:$0xff]
      %v2351 = vld [vmem:[%s3 + $0x1b8] sm:$0xff]
      %v2352 = vld [vmem:[%s3 + $0x1c0] sm:$0xff]
      %v2353 = vld [vmem:[%s3 + $0x1c8] sm:$0xff]
      %v2354 = vld [vmem:[%s3 + $0x1d0] sm:$0xff]
      %v2355 = vld [vmem:[%s3 + $0x1d8] sm:$0xff]
      %v2356 = vld [vmem:[%s3 + $0x1e0] sm:$0xff]
      %v2357 = vld [vmem:[%s3 + $0x1e8] sm:$0xff]
      %v2358 = vld [vmem:[%s3 + $0x1f0] sm:$0xff]
      %v2359 = vld [vmem:[%s3 + $0x1f8] sm:$0xff]
      %v2360 = vld [vmem:[%s4] sm:$0x3]
      %v2362 = vlaneseq
      %v2363 = vshrl.u32 %v2362, 7
      %v2364 = vsub.s32 0, %v2363
      %v2365 = vrot.slane %v2360, %v2364
      %v2366 = vlaneseq
      %v2367 = vshrl.u32 %v2366, 7
      %v2368 = vsub.s32 1, %v2367
      %v2369 = vrot.slane %v2360, %v2368
      %v2436 = vunpack.c.l.b16 %v2296
      %v2437 = vunpack.c.h.b16 %v2296
      %v2438 = vunpack.c.l.b16 %v2297
      %v2439 = vunpack.c.h.b16 %v2297
      %v2440 = vunpack.c.l.b16 %v2298
      %v2441 = vunpack.c.h.b16 %v2298
      %v2442 = vunpack.c.l.b16 %v2299
      %v2443 = vunpack.c.h.b16 %v2299
      %v2444 = vunpack.c.l.b16 %v2300
      %v2445 = vunpack.c.h.b16 %v2300
      %v2446 = vunpack.c.l.b16 %v2301
      %v2447 = vunpack.c.h.b16 %v2301
      %v2448 = vunpack.c.l.b16 %v2302
      %v2449 = vunpack.c.h.b16 %v2302
      %v2450 = vunpack.c.l.b16 %v2303
      %v2451 = vunpack.c.h.b16 %v2303
      %v2452 = vunpack.c.l.b16 %v2304
      %v2453 = vunpack.c.h.b16 %v2304
      %v2454 = vunpack.c.l.b16 %v2305
      %v2455 = vunpack.c.h.b16 %v2305
      %v2456 = vunpack.c.l.b16 %v2306
      %v2457 = vunpack.c.h.b16 %v2306
      %v2458 = vunpack.c.l.b16 %v2307
      %v2459 = vunpack.c.h.b16 %v2307
      %v2460 = vunpack.c.l.b16 %v2308
      %v2461 = vunpack.c.h.b16 %v2308
      %v2462 = vunpack.c.l.b16 %v2309
      %v2463 = vunpack.c.h.b16 %v2309
      %v2464 = vunpack.c.l.b16 %v2310
      %v2465 = vunpack.c.h.b16 %v2310
      %v2466 = vunpack.c.l.b16 %v2311
      %v2467 = vunpack.c.h.b16 %v2311
      %v2468 = vunpack.c.l.b16 %v2312
      %v2469 = vunpack.c.h.b16 %v2312
      %v2470 = vunpack.c.l.b16 %v2313
      %v2471 = vunpack.c.h.b16 %v2313
      %v2472 = vunpack.c.l.b16 %v2314
      %v2473 = vunpack.c.h.b16 %v2314
      %v2474 = vunpack.c.l.b16 %v2315
      %v2475 = vunpack.c.h.b16 %v2315
      %v2476 = vunpack.c.l.b16 %v2316
      %v2477 = vunpack.c.h.b16 %v2316
      %v2478 = vunpack.c.l.b16 %v2317
      %v2479 = vunpack.c.h.b16 %v2317
      %v2480 = vunpack.c.l.b16 %v2318
      %v2481 = vunpack.c.h.b16 %v2318
      %v2482 = vunpack.c.l.b16 %v2319
      %v2483 = vunpack.c.h.b16 %v2319
      %v2484 = vunpack.c.l.b16 %v2320
      %v2485 = vunpack.c.h.b16 %v2320
      %v2486 = vunpack.c.l.b16 %v2321
      %v2487 = vunpack.c.h.b16 %v2321
      %v2488 = vunpack.c.l.b16 %v2322
      %v2489 = vunpack.c.h.b16 %v2322
      %v2490 = vunpack.c.l.b16 %v2323
      %v2491 = vunpack.c.h.b16 %v2323
      %v2492 = vunpack.c.l.b16 %v2324
      %v2493 = vunpack.c.h.b16 %v2324
      %v2494 = vunpack.c.l.b16 %v2325
      %v2495 = vunpack.c.h.b16 %v2325
      %v2496 = vunpack.c.l.b16 %v2326
      %v2497 = vunpack.c.h.b16 %v2326
      %v2498 = vunpack.c.l.b16 %v2327
      %v2499 = vunpack.c.h.b16 %v2327
      %v2500 = vunpack.c.l.b16 %v2328
      %v2501 = vunpack.c.h.b16 %v2328
      %v2502 = vunpack.c.l.b16 %v2329
      %v2503 = vunpack.c.h.b16 %v2329
      %v2504 = vunpack.c.l.b16 %v2330
      %v2505 = vunpack.c.h.b16 %v2330
      %v2506 = vunpack.c.l.b16 %v2331
      %v2507 = vunpack.c.h.b16 %v2331
      %v2508 = vunpack.c.l.b16 %v2332
      %v2509 = vunpack.c.h.b16 %v2332
      %v2510 = vunpack.c.l.b16 %v2333
      %v2511 = vunpack.c.h.b16 %v2333
      %v2512 = vunpack.c.l.b16 %v2334
      %v2513 = vunpack.c.h.b16 %v2334
      %v2514 = vunpack.c.l.b16 %v2335
      %v2515 = vunpack.c.h.b16 %v2335
      %v2516 = vunpack.c.l.b16 %v2336
      %v2517 = vunpack.c.h.b16 %v2336
      %v2518 = vunpack.c.l.b16 %v2337
      %v2519 = vunpack.c.h.b16 %v2337
      %v2520 = vunpack.c.l.b16 %v2338
      %v2521 = vunpack.c.h.b16 %v2338
      %v2522 = vunpack.c.l.b16 %v2339
      %v2523 = vunpack.c.h.b16 %v2339
      %v2524 = vunpack.c.l.b16 %v2340
      %v2525 = vunpack.c.h.b16 %v2340
      %v2526 = vunpack.c.l.b16 %v2341
      %v2527 = vunpack.c.h.b16 %v2341
      %v2528 = vunpack.c.l.b16 %v2342
      %v2529 = vunpack.c.h.b16 %v2342
      %v2530 = vunpack.c.l.b16 %v2343
      %v2531 = vunpack.c.h.b16 %v2343
      %v2532 = vunpack.c.l.b16 %v2344
      %v2533 = vunpack.c.h.b16 %v2344
      %v2534 = vunpack.c.l.b16 %v2345
      %v2535 = vunpack.c.h.b16 %v2345
      %v2536 = vunpack.c.l.b16 %v2346
      %v2537 = vunpack.c.h.b16 %v2346
      %v2538 = vunpack.c.l.b16 %v2347
      %v2539 = vunpack.c.h.b16 %v2347
      %v2540 = vunpack.c.l.b16 %v2348
      %v2541 = vunpack.c.h.b16 %v2348
      %v2542 = vunpack.c.l.b16 %v2349
      %v2543 = vunpack.c.h.b16 %v2349
      %v2544 = vunpack.c.l.b16 %v2350
      %v2545 = vunpack.c.h.b16 %v2350
      %v2546 = vunpack.c.l.b16 %v2351
      %v2547 = vunpack.c.h.b16 %v2351
      %v2548 = vunpack.c.l.b16 %v2352
      %v2549 = vunpack.c.h.b16 %v2352
      %v2550 = vunpack.c.l.b16 %v2353
      %v2551 = vunpack.c.h.b16 %v2353
      %v2552 = vunpack.c.l.b16 %v2354
      %v2553 = vunpack.c.h.b16 %v2354
      %v2554 = vunpack.c.l.b16 %v2355
      %v2555 = vunpack.c.h.b16 %v2355
      %v2556 = vunpack.c.l.b16 %v2356
      %v2557 = vunpack.c.h.b16 %v2356
      %v2558 = vunpack.c.l.b16 %v2357
      %v2559 = vunpack.c.h.b16 %v2357
      %v2560 = vunpack.c.l.b16 %v2358
      %v2561 = vunpack.c.h.b16 %v2358
      %v2562 = vunpack.c.l.b16 %v2359
      %v2563 = vunpack.c.h.b16 %v2359
      %v2564 = vpack.c.b16 %v2438, %v2436
      %v2565 = vpack.c.b16 %v2439, %v2437
      %v2566 = vpack.c.b16 %v2442, %v2440
      %v2567 = vpack.c.b16 %v2443, %v2441
      %v2568 = vpack.c.b16 %v2446, %v2444
      %v2569 = vpack.c.b16 %v2447, %v2445
      %v2570 = vpack.c.b16 %v2450, %v2448
      %v2571 = vpack.c.b16 %v2451, %v2449
      %v2572 = vpack.c.b16 %v2454, %v2452
      %v2573 = vpack.c.b16 %v2455, %v2453
      %v2574 = vpack.c.b16 %v2458, %v2456
      %v2575 = vpack.c.b16 %v2459, %v2457
      %v2576 = vpack.c.b16 %v2462, %v2460
      %v2577 = vpack.c.b16 %v2463, %v2461
      %v2578 = vpack.c.b16 %v2466, %v2464
      %v2579 = vpack.c.b16 %v2467, %v2465
      %v2580 = vpack.c.b16 %v2470, %v2468
      %v2581 = vpack.c.b16 %v2471, %v2469
      %v2582 = vpack.c.b16 %v2474, %v2472
      %v2583 = vpack.c.b16 %v2475, %v2473
      %v2584 = vpack.c.b16 %v2478, %v2476
      %v2585 = vpack.c.b16 %v2479, %v2477
      %v2586 = vpack.c.b16 %v2482, %v2480
      %v2587 = vpack.c.b16 %v2483, %v2481
      %v2588 = vpack.c.b16 %v2486, %v2484
      %v2589 = vpack.c.b16 %v2487, %v2485
      %v2590 = vpack.c.b16 %v2490, %v2488
      %v2591 = vpack.c.b16 %v2491, %v2489
      %v2592 = vpack.c.b16 %v2494, %v2492
      %v2593 = vpack.c.b16 %v2495, %v2493
      %v2594 = vpack.c.b16 %v2498, %v2496
      %v2595 = vpack.c.b16 %v2499, %v2497
      %v2596 = vpack.c.b16 %v2502, %v2500
      %v2597 = vpack.c.b16 %v2503, %v2501
      %v2598 = vpack.c.b16 %v2506, %v2504
      %v2599 = vpack.c.b16 %v2507, %v2505
      %v2600 = vpack.c.b16 %v2510, %v2508
      %v2601 = vpack.c.b16 %v2511, %v2509
      %v2602 = vpack.c.b16 %v2514, %v2512
      %v2603 = vpack.c.b16 %v2515, %v2513
      %v2604 = vpack.c.b16 %v2518, %v2516
      %v2605 = vpack.c.b16 %v2519, %v2517
      %v2606 = vpack.c.b16 %v2522, %v2520
      %v2607 = vpack.c.b16 %v2523, %v2521
      %v2608 = vpack.c.b16 %v2526, %v2524
      %v2609 = vpack.c.b16 %v2527, %v2525
      %v2610 = vpack.c.b16 %v2530, %v2528
      %v2611 = vpack.c.b16 %v2531, %v2529
      %v2612 = vpack.c.b16 %v2534, %v2532
      %v2613 = vpack.c.b16 %v2535, %v2533
      %v2614 = vpack.c.b16 %v2538, %v2536
      %v2615 = vpack.c.b16 %v2539, %v2537
      %v2616 = vpack.c.b16 %v2542, %v2540
      %v2617 = vpack.c.b16 %v2543, %v2541
      %v2618 = vpack.c.b16 %v2546, %v2544
      %v2619 = vpack.c.b16 %v2547, %v2545
      %v2620 = vpack.c.b16 %v2550, %v2548
      %v2621 = vpack.c.b16 %v2551, %v2549
      %v2622 = vpack.c.b16 %v2554, %v2552
      %v2623 = vpack.c.b16 %v2555, %v2553
      %v2624 = vpack.c.b16 %v2558, %v2556
      %v2625 = vpack.c.b16 %v2559, %v2557
      %v2626 = vpack.c.b16 %v2562, %v2560
      %v2627 = vpack.c.b16 %v2563, %v2561
      %2692 = vmatprep.subr.bf16.mxu0 %v2579
      %2693 = vmatpush1.bf16.msra.mxu0 %v2578
      %2694 = vmatprep.subr.bf16.mxu0 %v2577
      %2695 = vmatpush1.bf16.msra.mxu0 %v2576
      %2696 = vmatprep.subr.bf16.mxu0 %v2575
      %2697 = vmatpush1.bf16.msra.mxu0 %v2574
      %2698 = vmatprep.subr.bf16.mxu0 %v2573
      %2699 = vmatpush1.bf16.msra.mxu0 %v2572
      %2700 = vmatprep.subr.bf16.mxu0 %v2571
      %2701 = vmatpush1.bf16.msra.mxu0 %v2570
      %2702 = vmatprep.subr.bf16.mxu0 %v2569
      %2703 = vmatpush1.bf16.msra.mxu0 %v2568
      %2704 = vmatprep.subr.bf16.mxu0 %v2567
      %2705 = vmatpush1.bf16.msra.mxu0 %v2566
      %2706 = vmatprep.subr.bf16.mxu0 %v2565
      %2707 = vmatpush1.bf16.msra.mxu0 %v2564
      %2708 = vmatprep.subr.bf16.mxu0 %v2595
      %2709 = vmatpush2.bf16.msra.mxu0 %v2594
      %2710 = vmatprep.subr.bf16.mxu0 %v2593
      %2711 = vmatpush2.bf16.msra.mxu0 %v2592
      %2712 = vmatprep.subr.bf16.mxu0 %v2591
      %2713 = vmatpush2.bf16.msra.mxu0 %v2590
      %2714 = vmatprep.subr.bf16.mxu0 %v2589
      %2715 = vmatpush2.bf16.msra.mxu0 %v2588
      %2716 = vmatprep.subr.bf16.mxu0 %v2587
      %2717 = vmatpush2.bf16.msra.mxu0 %v2586
      %2718 = vmatprep.subr.bf16.mxu0 %v2585
      %2719 = vmatpush2.bf16.msra.mxu0 %v2584
      %2720 = vmatprep.subr.bf16.mxu0 %v2583
      %2721 = vmatpush2.bf16.msra.mxu0 %v2582
      %2722 = vmatprep.subr.bf16.mxu0 %v2581
      %2723 = vmatpush2.bf16.msra.mxu0 %v2580
      %2724 = vmatprep.mubr.bf16.mxu0 %v2293
      %2725 = vmatmul.mubr.bf16.gmra.mxu0 %v2292
      %v2726 = vpop.f32.mrf.mxu0
      %v2727 = vadd.f32 %v2365, %v2726
      %v2728 = vpop.f32.mrf.mxu0
      %v2729 = vadd.f32 %v2369, %v2728
      %v2730 = vpop.f32.mrf.mxu0
      %v2731 = vadd.f32 %v2365, %v2730
      %v2732 = vpop.f32.mrf.mxu0
      %v2733 = vadd.f32 %v2369, %v2732
      %2734 = vdwg.mxu0
      %2735 = vmatprep.subr.bf16.mxu0 %v2611
      %2736 = vmatpush1.bf16.msra.mxu0 %v2610
      %2737 = vmatprep.subr.bf16.mxu0 %v2609
      %2738 = vmatpush1.bf16.msra.mxu0 %v2608
      %2739 = vmatprep.subr.bf16.mxu0 %v2607
      %2740 = vmatpush1.bf16.msra.mxu0 %v2606
      %2741 = vmatprep.subr.bf16.mxu0 %v2605
      %2742 = vmatpush1.bf16.msra.mxu0 %v2604
      %2743 = vmatprep.subr.bf16.mxu0 %v2603
      %2744 = vmatpush1.bf16.msra.mxu0 %v2602
      %2745 = vmatprep.subr.bf16.mxu0 %v2601
      %2746 = vmatpush1.bf16.msra.mxu0 %v2600
      %2747 = vmatprep.subr.bf16.mxu0 %v2599
      %2748 = vmatpush1.bf16.msra.mxu0 %v2598
      %2749 = vmatprep.subr.bf16.mxu0 %v2597
      %2750 = vmatpush1.bf16.msra.mxu0 %v2596
      %2751 = vmatprep.subr.bf16.mxu0 %v2627
      %2752 = vmatpush2.bf16.msra.mxu0 %v2626
      %2753 = vmatprep.subr.bf16.mxu0 %v2625
      %2754 = vmatpush2.bf16.msra.mxu0 %v2624
      %2755 = vmatprep.subr.bf16.mxu0 %v2623
      %2756 = vmatpush2.bf16.msra.mxu0 %v2622
      %2757 = vmatprep.subr.bf16.mxu0 %v2621
      %2758 = vmatpush2.bf16.msra.mxu0 %v2620
      %2759 = vmatprep.subr.bf16.mxu0 %v2619
      %2760 = vmatpush2.bf16.msra.mxu0 %v2618
      %2761 = vmatprep.subr.bf16.mxu0 %v2617
      %2762 = vmatpush2.bf16.msra.mxu0 %v2616
      %2763 = vmatprep.subr.bf16.mxu0 %v2615
      %2764 = vmatpush2.bf16.msra.mxu0 %v2614
      %2765 = vmatprep.subr.bf16.mxu0 %v2613
      %2766 = vmatpush2.bf16.msra.mxu0 %v2612
      %2767 = vmatprep.mubr.bf16.mxu0 %v2295
      %2768 = vmatmul.mubr.bf16.gmra.mxu0 %v2294
      %v2769 = vpop.f32.mrf.mxu0
      %v2770 = vadd.f32 %v2727, %v2769
      %v2771 = vpop.f32.mrf.mxu0
      %v2772 = vadd.f32 %v2729, %v2771
      %v2773 = vpop.f32.mrf.mxu0
      %v2774 = vadd.f32 %v2731, %v2773
      %v2775 = vpop.f32.mrf.mxu0
      %v2776 = vadd.f32 %v2733, %v2775
      %2777 = vdwg.mxu0
      %v2778 = vmax.f32 %v2770, 0.0
      %v2779 = vmax.f32 %v2772, 0.0
      %v2780 = vmax.f32 %v2774, 0.0
      %v2781 = vmax.f32 %v2776, 0.0
      %v2782 = vpack.c.bf16 %v2780, %v2778
      %v2783 = vpack.c.bf16 %v2781, %v2779
      %v2784 = vld [vmem:[%s5] sm:$0xf]
      %v2785 = vld [vmem:[%s5 + $0x4] sm:$0xf]
      %v2786 = vld [vmem:[%s5 + $0x8] sm:$0xf]
      %v2787 = vld [vmem:[%s5 + $0xc] sm:$0xf]
      %v2788 = vld [vmem:[%s5 + $0x10] sm:$0xf]
      %v2789 = vld [vmem:[%s5 + $0x14] sm:$0xf]
      %v2790 = vld [vmem:[%s5 + $0x18] sm:$0xf]
      %v2791 = vld [vmem:[%s5 + $0x1c] sm:$0xf]
      %v2792 = vld [vmem:[%s5 + $0x20] sm:$0xf]
      %v2793 = vld [vmem:[%s5 + $0x24] sm:$0xf]
      %v2794 = vld [vmem:[%s5 + $0x28] sm:$0xf]
      %v2795 = vld [vmem:[%s5 + $0x2c] sm:$0xf]
      %v2796 = vld [vmem:[%s5 + $0x30] sm:$0xf]
      %v2797 = vld [vmem:[%s5 + $0x34] sm:$0xf]
      %v2798 = vld [vmem:[%s5 + $0x38] sm:$0xf]
      %v2799 = vld [vmem:[%s5 + $0x3c] sm:$0xf]
      %v2800 = vld [vmem:[%s5 + $0x40] sm:$0xf]
      %v2801 = vld [vmem:[%s5 + $0x44] sm:$0xf]
      %v2802 = vld [vmem:[%s5 + $0x48] sm:$0xf]
      %v2803 = vld [vmem:[%s5 + $0x4c] sm:$0xf]
      %v2804 = vld [vmem:[%s5 + $0x50] sm:$0xf]
      %v2805 = vld [vmem:[%s5 + $0x54] sm:$0xf]
      %v2806 = vld [vmem:[%s5 + $0x58] sm:$0xf]
      %v2807 = vld [vmem:[%s5 + $0x5c] sm:$0xf]
      %v2808 = vld [vmem:[%s5 + $0x60] sm:$0xf]
      %v2809 = vld [vmem:[%s5 + $0x64] sm:$0xf]
      %v2810 = vld [vmem:[%s5 + $0x68] sm:$0xf]
      %v2811 = vld [vmem:[%s5 + $0x6c] sm:$0xf]
      %v2812 = vld [vmem:[%s5 + $0x70] sm:$0xf]
      %v2813 = vld [vmem:[%s5 + $0x74] sm:$0xf]
      %v2814 = vld [vmem:[%s5 + $0x78] sm:$0xf]
      %v2815 = vld [vmem:[%s5 + $0x7c] sm:$0xf]
      %v2816 = vld [vmem:[%s6] sm:$0x1]
      %v2818 = vlaneseq
      %v2819 = vshrl.u32 %v2818, 7
      %v2820 = vsub.s32 0, %v2819
      %v2821 = vrot.slane %v2816, %v2820
      %v2855 = vunpack.c.l.b16 %v2784
      %v2856 = vunpack.c.l.b16 %v2785
      %v2857 = vunpack.c.l.b16 %v2786
      %v2858 = vunpack.c.l.b16 %v2787
      %v2859 = vunpack.c.l.b16 %v2788
      %v2860 = vunpack.c.l.b16 %v2789
      %v2861 = vunpack.c.l.b16 %v2790
      %v2862 = vunpack.c.l.b16 %v2791
      %v2863 = vunpack.c.l.b16 %v2792
      %v2864 = vunpack.c.l.b16 %v2793
      %v2865 = vunpack.c.l.b16 %v2794
      %v2866 = vunpack.c.l.b16 %v2795
      %v2867 = vunpack.c.l.b16 %v2796
      %v2868 = vunpack.c.l.b16 %v2797
      %v2869 = vunpack.c.l.b16 %v2798
      %v2870 = vunpack.c.l.b16 %v2799
      %v2871 = vunpack.c.l.b16 %v2800
      %v2872 = vunpack.c.l.b16 %v2801
      %v2873 = vunpack.c.l.b16 %v2802
      %v2874 = vunpack.c.l.b16 %v2803
      %v2875 = vunpack.c.l.b16 %v2804
      %v2876 = vunpack.c.l.b16 %v2805
      %v2877 = vunpack.c.l.b16 %v2806
      %v2878 = vunpack.c.l.b16 %v2807
      %v2879 = vunpack.c.l.b16 %v2808
      %v2880 = vunpack.c.l.b16 %v2809
      %v2881 = vunpack.c.l.b16 %v2810
      %v2882 = vunpack.c.l.b16 %v2811
      %v2883 = vunpack.c.l.b16 %v2812
      %v2884 = vunpack.c.l.b16 %v2813
      %v2885 = vunpack.c.l.b16 %v2814
      %v2886 = vunpack.c.l.b16 %v2815
      %v2887 = vpack.c.b16 %v2856, %v2855
      %v2888 = vpack.c.b16 %v2858, %v2857
      %v2889 = vpack.c.b16 %v2860, %v2859
      %v2890 = vpack.c.b16 %v2862, %v2861
      %v2891 = vpack.c.b16 %v2864, %v2863
      %v2892 = vpack.c.b16 %v2866, %v2865
      %v2893 = vpack.c.b16 %v2868, %v2867
      %v2894 = vpack.c.b16 %v2870, %v2869
      %v2895 = vpack.c.b16 %v2872, %v2871
      %v2896 = vpack.c.b16 %v2874, %v2873
      %v2897 = vpack.c.b16 %v2876, %v2875
      %v2898 = vpack.c.b16 %v2878, %v2877
      %v2899 = vpack.c.b16 %v2880, %v2879
      %v2900 = vpack.c.b16 %v2882, %v2881
      %v2901 = vpack.c.b16 %v2884, %v2883
      %v2902 = vpack.c.b16 %v2886, %v2885
      %2919 = vmatprep.subr.bf16.mxu0 0
      %2920 = vmatpush1.bf16.msra.mxu0 %v2894
      %2921 = vmatprep.subr.bf16.mxu0 0
      %2922 = vmatpush1.bf16.msra.mxu0 %v2893
      %2923 = vmatprep.subr.bf16.mxu0 0
      %2924 = vmatpush1.bf16.msra.mxu0 %v2892
      %2925 = vmatprep.subr.bf16.mxu0 0
      %2926 = vmatpush1.bf16.msra.mxu0 %v2891
      %2927 = vmatprep.subr.bf16.mxu0 0
      %2928 = vmatpush1.bf16.msra.mxu0 %v2890
      %2929 = vmatprep.subr.bf16.mxu0 0
      %2930 = vmatpush1.bf16.msra.mxu0 %v2889
      %2931 = vmatprep.subr.bf16.mxu0 0
      %2932 = vmatpush1.bf16.msra.mxu0 %v2888
      %2933 = vmatprep.subr.bf16.mxu0 0
      %2934 = vmatpush1.bf16.msra.mxu0 %v2887
      %2935 = vmatprep.subr.bf16.mxu0 0
      %2936 = vmatpush2.bf16.msra.mxu0 %v2902
      %2937 = vmatprep.subr.bf16.mxu0 0
      %2938 = vmatpush2.bf16.msra.mxu0 %v2901
      %2939 = vmatprep.subr.bf16.mxu0 0
      %2940 = vmatpush2.bf16.msra.mxu0 %v2900
      %2941 = vmatprep.subr.bf16.mxu0 0
      %2942 = vmatpush2.bf16.msra.mxu0 %v2899
      %2943 = vmatprep.subr.bf16.mxu0 0
      %2944 = vmatpush2.bf16.msra.mxu0 %v2898
      %2945 = vmatprep.subr.bf16.mxu0 0
      %2946 = vmatpush2.bf16.msra.mxu0 %v2897
      %2947 = vmatprep.subr.bf16.mxu0 0
      %2948 = vmatpush2.bf16.msra.mxu0 %v2896
      %2949 = vmatprep.subr.bf16.mxu0 0
      %2950 = vmatpush2.bf16.msra.mxu0 %v2895
      %2951 = vmatprep.mubr.bf16.mxu0 %v2783
      %2952 = vmatmul.mubr.bf16.gmra.mxu0 %v2782
      %v2953 = vpop.f32.mrf.mxu0
      %v2954 = vadd.f32 %v2821, %v2953
      %v2955 = vpop.f32.mrf.mxu0
      %v2956 = vpop.f32.mrf.mxu0
      %v2957 = vadd.f32 %v2821, %v2956
      %v2958 = vpop.f32.mrf.mxu0
      %2959 = vdwg.mxu0
      %v2960 = vmax.f32 %v2954, 0.0
      %v2961 = vmax.f32 %v2957, 0.0
      %v2962 = vpack.c.bf16 %v2961, %v2960
      %v2963 = vld [vmem:[%s7] sm:$0xf]
      %v2964 = vld [vmem:[%s7 + $0x4] sm:$0xf]
      %v2965 = vld [vmem:[%s7 + $0x8] sm:$0xf]
      %v2966 = vld [vmem:[%s7 + $0xc] sm:$0xf]
      %v2967 = vld [vmem:[%s7 + $0x10] sm:$0xf]
      %v2968 = vld [vmem:[%s7 + $0x14] sm:$0xf]
      %v2969 = vld [vmem:[%s7 + $0x18] sm:$0xf]
      %v2970 = vld [vmem:[%s7 + $0x1c] sm:$0xf]
      %v2971 = vld [vmem:[%s7 + $0x20] sm:$0xf]
      %v2972 = vld [vmem:[%s7 + $0x24] sm:$0xf]
      %v2973 = vld [vmem:[%s7 + $0x28] sm:$0xf]
      %v2974 = vld [vmem:[%s7 + $0x2c] sm:$0xf]
      %v2975 = vld [vmem:[%s7 + $0x30] sm:$0xf]
      %v2976 = vld [vmem:[%s7 + $0x34] sm:$0xf]
      %v2977 = vld [vmem:[%s7 + $0x38] sm:$0xf]
      %v2978 = vld [vmem:[%s7 + $0x3c] sm:$0xf]
      %v2979 = vld [vmem:[%s8] sm:$0x1]
      %v2981 = vlaneseq
      %v2982 = vshrl.u32 %v2981, 7
      %v2983 = vsub.s32 0, %v2982
      %v2984 = vrot.slane %v2979, %v2983
      %v3002 = vunpack.c.l.b16 %v2963
      %v3003 = vunpack.c.l.b16 %v2964
      %v3004 = vunpack.c.l.b16 %v2965
      %v3005 = vunpack.c.l.b16 %v2966
      %v3006 = vunpack.c.l.b16 %v2967
      %v3007 = vunpack.c.l.b16 %v2968
      %v3008 = vunpack.c.l.b16 %v2969
      %v3009 = vunpack.c.l.b16 %v2970
      %v3010 = vunpack.c.l.b16 %v2971
      %v3011 = vunpack.c.l.b16 %v2972
      %v3012 = vunpack.c.l.b16 %v2973
      %v3013 = vunpack.c.l.b16 %v2974
      %v3014 = vunpack.c.l.b16 %v2975
      %v3015 = vunpack.c.l.b16 %v2976
      %v3016 = vunpack.c.l.b16 %v2977
      %v3017 = vunpack.c.l.b16 %v2978
      %v3018 = vpack.c.b16 %v3003, %v3002
      %v3019 = vpack.c.b16 %v3005, %v3004
      %v3020 = vpack.c.b16 %v3007, %v3006
      %v3021 = vpack.c.b16 %v3009, %v3008
      %v3022 = vpack.c.b16 %v3011, %v3010
      %v3023 = vpack.c.b16 %v3013, %v3012
      %v3024 = vpack.c.b16 %v3015, %v3014
      %v3025 = vpack.c.b16 %v3017, %v3016
      %3034 = vmatprep.subr.bf16.mxu0 0
      %3035 = vmatpush1.bf16.msra.mxu0 %v3025
      %3036 = vmatprep.subr.bf16.mxu0 0
      %3037 = vmatpush1.bf16.msra.mxu0 %v3024
      %3038 = vmatprep.subr.bf16.mxu0 0
      %3039 = vmatpush1.bf16.msra.mxu0 %v3023
      %3040 = vmatprep.subr.bf16.mxu0 0
      %3041 = vmatpush1.bf16.msra.mxu0 %v3022
      %3042 = vmatprep.subr.bf16.mxu0 0
      %3043 = vmatpush1.bf16.msra.mxu0 %v3021
      %3044 = vmatprep.subr.bf16.mxu0 0
      %3045 = vmatpush1.bf16.msra.mxu0 %v3020
      %3046 = vmatprep.subr.bf16.mxu0 0
      %3047 = vmatpush1.bf16.msra.mxu0 %v3019
      %3048 = vmatprep.subr.bf16.mxu0 0
      %3049 = vmatpush1.bf16.msra.mxu0 %v3018
      %3050 = vmatprep.subr.bf16.mxu0 0
      %3051 = vmatpush2.bf16.msra.mxu0 0
      %3052 = vmatprep.subr.bf16.mxu0 0
      %3053 = vmatpush2.bf16.msra.mxu0 0
      %3054 = vmatprep.subr.bf16.mxu0 0
      %3055 = vmatpush2.bf16.msra.mxu0 0
      %3056 = vmatprep.subr.bf16.mxu0 0
      %3057 = vmatpush2.bf16.msra.mxu0 0
      %3058 = vmatprep.subr.bf16.mxu0 0
      %3059 = vmatpush2.bf16.msra.mxu0 0
      %3060 = vmatprep.subr.bf16.mxu0 0
      %3061 = vmatpush2.bf16.msra.mxu0 0
      %3062 = vmatprep.subr.bf16.mxu0 0
      %3063 = vmatpush2.bf16.msra.mxu0 0
      %3064 = vmatprep.subr.bf16.mxu0 0
      %3065 = vmatpush2.bf16.msra.mxu0 0
      %3066 = vmatprep.mubr.bf16.mxu0 0
      %3067 = vmatmul.mubr.bf16.gmra.mxu0 %v2962
      %v3068 = vpop.f32.mrf.mxu0
      %v3069 = vadd.f32 %v2984, %v3068
      %v3070 = vpop.f32.mrf.mxu0
      %v3071 = vpop.f32.mrf.mxu0
      %v3072 = vadd.f32 %v2984, %v3071
      %v3073 = vpop.f32.mrf.mxu0
      %3074 = vdwg.mxu0
      %vm3075 = vcmask 48128
      %3076 = vst.msk [vmem:[%s332] sm:$0xff] %vm3075, %v3069
      %3077 = vst.msk [vmem:[%s332 + $0x8] sm:$0xff] %vm3075, %v3072
      %p3078 = scmp.lt.s32.totalorder %s20, 1
      %s3079 = scalar_select %p3078, %s20, 1
      %s3080 = smul.addr %s3079, 2
      %s3081 = smul.addr %s3080, 8
      %s3082 = scalar_lea.vmem %s9, %s3081
      // Predicated region
      $region57: #{refer_model_forward.2} parent=55 // pred_check
        %p3083 = pneg %p232
      $region58: #{refer_model_forward.2} parent=55 // pred_check_branch
        %3085 = sbr.rel (%p3083) target = $region60
      $region59: #{refer_model_forward.2} parent=55 // pred_region
        _
      $region60: #{refer_model_forward.2} parent=55 // pred_fallthru
        _
    $region56: #{refer_model_forward.2} parent=5 // pred_fallthru
      _
    %p3086 = scmp.le.s32.totalorder 2, %s15
    // Predicated region
    $region61: #{refer_model_forward.2} parent=5 // pred_check
      %p3087 = pneg %p3086
    $region62: #{refer_model_forward.2} parent=5 // pred_check_branch
      %3089 = sbr.rel (%p3087) target = $region64
    $region63: #{refer_model_forward.2} parent=5 // pred_region
      %s3090 = ssub.s32 %s15, 2
      // Predicated region
      $region65: #{refer_model_forward.2} parent=63 // pred_check
        %p3091 = pneg %p238
      $region66: #{refer_model_forward.2} parent=63 // pred_check_branch
        %3093 = sbr.rel (%p3091) target = $region68
      $region67: #{refer_model_forward.2} parent=63 // pred_region
        %p3094 = scmp.lt.s32.totalorder %s21, 1
        %s3095 = scalar_select %p3094, %s21, 1
        %s3096 = smul.addr %s3095, 2
        %s3097 = smul.addr %s3096, 8
        %s3098 = scalar_lea.vmem %s9, %s3097
      $region68: #{refer_model_forward.2} parent=63 // pred_fallthru
        _
    $region64: #{refer_model_forward.2} parent=5 // pred_fallthru
      _
  $region6: #{refer_model_forward.2} parent=0 // loop_footer
    %s19 = sadd.s32 1, %s15
  $region7: #{refer_model_forward.2} parent=0 // loop_footer_branch
    %14 = sbr.rel target = $region3
  $region8: #{refer_model_forward.2} parent=0 // loop_exit
    _

</llo_original>
